<compile_context>
chip_gen: v7x
topology: tpu7x:2x2x1
jax: 0.10.0
libtpu: 0.0.40
codegen_flags: <defaults>
</compile_context>

<pallas_src>
import functools

import jax
import jax.numpy as jnp
from jax.experimental import pallas as pl
from jax.experimental.pallas import tpu as pltpu

# ---- mini CodeBERT-like config ----
VOCAB = 100
V_PAD = 128                # vocab padded to a full lane width
HIDDEN = 32
NUM_LAYERS = 2
NUM_HEADS = 4
HEAD_DIM = HIDDEN // NUM_HEADS
INTERMEDIATE = 64
MAX_POS = 16
OUTPUT_DIM = 3
OUT_PAD = 128              # lane-dense padded logits width (sliced to OUTPUT_DIM outside)
INIT_RANGE = 0.02          # config.initializer_range
LN_EPS = 1e-12
NEG_INF = -1e9
BATCH = 2
SEQ = 8
LANES = 128

# ---- bf16 weight-slab row layout (lanes always 0:width of each matrix) ----
WQ_R, WK_R, WV_R, WO_R = 0 * HIDDEN, 1 * HIDDEN, 2 * HIDDEN, 3 * HIDDEN
W1_R = 4 * HIDDEN
W2_R = 5 * HIDDEN
LROWS = 5 * HIDDEN + INTERMEDIATE          # rows per encoder layer (224)
LAYER_W_OFF = V_PAD                        # word-emb table occupies rows 0:V_PAD
HEAD_OFF = LAYER_W_OFF + NUM_LAYERS * LROWS
WM_ROWS = HEAD_OFF + 2 * HIDDEN            # + dense_w + out_w

# ---- f32 vector-slab row layout (biases / LN params / pos-emb) ----
VEC_LROWS = 16                             # rows reserved per encoder layer
BQ_ROW, BK_ROW, BV_ROW, BO_ROW = 0, 1, 2, 3
LN1G_ROW, LN1B_ROW = 4, 5
B1_ROW, B2_ROW = 6, 7
LN2G_ROW, LN2B_ROW = 8, 9
POS_ROW = NUM_LAYERS * VEC_LROWS
EMB_LN_G_ROW = POS_ROW + MAX_POS
EMB_LN_B_ROW = EMB_LN_G_ROW + 1
DENSE_B_ROW = EMB_LN_G_ROW + 2
OUT_B_ROW = EMB_LN_G_ROW + 3
VEC_ROWS = ((OUT_B_ROW + 1 + 7) // 8) * 8


# ------------------------------ fused kernel --------------------------------

def _layernorm(x, g, b, eps=LN_EPS):
    mean = jnp.mean(x, axis=-1, keepdims=True)
    var = jnp.mean(jnp.square(x - mean), axis=-1, keepdims=True)
    return (x - mean) * jax.lax.rsqrt(var + eps) * g + b


def _fused_forward_kernel(ids_ref, mask_ref, wm_ref, vec_ref, o_ref, *, batch, seq):
    BS = batch * seq
    H, I, dh = HIDDEN, INTERMEDIATE, HEAD_DIM
    f32, bf16 = jnp.float32, jnp.bfloat16

    # ---- embeddings: lane-aligned one-hot gather on the MXU ----
    ids = ids_ref[...]                                              # (BS, 1) int32
    vocab_iota = jax.lax.broadcasted_iota(jnp.int32, (BS, V_PAD), 1)
    onehot = (vocab_iota == ids).astype(bf16)                       # (BS, 128) — one bf16 vreg
    emb_tab = wm_ref[0:V_PAD, 0:H]                                  # (128, H) bf16
    x = jnp.dot(onehot, emb_tab, preferred_element_type=f32)        # (BS, H) f32

    pos = vec_ref[POS_ROW:POS_ROW + seq, 0:H]                       # (S, H) f32
    # TODO(synk): RoBERTa padding-aware position ids / token_type embeddings omitted.
    x = x + jnp.concatenate([pos] * batch, axis=0)                  # broadcast over batch
    h = _layernorm(x,
                   vec_ref[EMB_LN_G_ROW:EMB_LN_G_ROW + 1, 0:H],
                   vec_ref[EMB_LN_B_ROW:EMB_LN_B_ROW + 1, 0:H])

    # ---- block-diagonal (same batch) & key-validity mask, built in-kernel ----
    kv_ok = mask_ref[...] > 0                                       # (1, BS) bool (key axis)
    q_idx = jax.lax.broadcasted_iota(jnp.int32, (BS, BS), 0)
    k_idx = jax.lax.broadcasted_iota(jnp.int32, (BS, BS), 1)
    same_batch = jnp.zeros((BS, BS), dtype=jnp.bool_)
    for b in range(batch):                                          # static, avoids int div
        lo, hi = b * seq, (b + 1) * seq
        same_batch = same_batch | ((q_idx >= lo) & (q_idx < hi) &
                                   (k_idx >= lo) & (k_idx < hi))
    attendable = same_batch & kv_ok                                 # (BS, BS)

    for l in range(NUM_LAYERS):                                     # unrolled (2 layers)
        wb = LAYER_W_OFF + l * LROWS
        vb = l * VEC_LROWS
        h_bf = h.astype(bf16)

        attn = jnp.zeros((BS, H), f32)
        for hd in range(NUM_HEADS):                                 # static head loop
            c0, c1 = hd * dh, (hd + 1) * dh
            # per-head Q/K/V directly from ref-sliced weight columns (no
            # activation lane-slicing); Wq/bq pre-scaled by 1/sqrt(dh) at init.
            q = jnp.dot(h_bf, wm_ref[wb + WQ_R:wb + WQ_R + H, c0:c1],
                        preferred_element_type=f32) + vec_ref[vb + BQ_ROW:vb + BQ_ROW + 1, c0:c1]
            k = jnp.dot(h_bf, wm_ref[wb + WK_R:wb + WK_R + H, c0:c1],
                        preferred_element_type=f32) + vec_ref[vb + BK_ROW:vb + BK_ROW + 1, c0:c1]
            v = jnp.dot(h_bf, wm_ref[wb + WV_R:wb + WV_R + H, c0:c1],
                        preferred_element_type=f32) + vec_ref[vb + BV_ROW:vb + BV_ROW + 1, c0:c1]

            s = jax.lax.dot_general(q.astype(bf16), k.astype(bf16),
                                    (((1,), (1,)), ((), ())),
                                    preferred_element_type=f32)     # (BS, BS) f32
            s = jnp.where(attendable, s, NEG_INF)
            s = s - jnp.max(s, axis=-1, keepdims=True)
            p = jnp.exp(s)                                          # f32 (v5e: no bf16 EUP)
            # TODO(synk): approx reciprocal (EUP) deviates slightly from exact softmax division.
            p = p * pl.reciprocal(jnp.sum(p, axis=-1, keepdims=True), approx=True)

            pv = jnp.dot(p.astype(bf16), v.astype(bf16),
                         preferred_element_type=f32)                # (BS, dh)
            # fold output projection per head -> no jnp.concatenate of heads
            wo_h = wm_ref[wb + WO_R + c0:wb + WO_R + c1, 0:H]       # (dh, H) bf16
            attn = attn + jnp.dot(pv.astype(bf16), wo_h, preferred_element_type=f32)

        attn = attn + vec_ref[vb + BO_ROW:vb + BO_ROW + 1, 0:H]
        h1 = _layernorm(h + attn,
                        vec_ref[vb + LN1G_ROW:vb + LN1G_ROW + 1, 0:H],
                        vec_ref[vb + LN1B_ROW:vb + LN1B_ROW + 1, 0:H])

        ff = jnp.dot(h1.astype(bf16), wm_ref[wb + W1_R:wb + W1_R + H, 0:I],
                     preferred_element_type=f32) + vec_ref[vb + B1_ROW:vb + B1_ROW + 1, 0:I]
        # TODO(synk): HF BERT/CodeBERT uses exact erf GELU; tanh approximation used here.
        ff = jax.nn.gelu(ff, approximate=True)
        ff = jnp.dot(ff.astype(bf16), wm_ref[wb + W2_R:wb + W2_R + I, 0:H],
                     preferred_element_type=f32) + vec_ref[vb + B2_ROW:vb + B2_ROW + 1, 0:H]
        h = _layernorm(h1 + ff,
                       vec_ref[vb + LN2G_ROW:vb + LN2G_ROW + 1, 0:H],
                       vec_ref[vb + LN2B_ROW:vb + LN2B_ROW + 1, 0:H])

    # ---- CLS rows (token 0 of each sequence), exact f32 row slices ----
    cls = jnp.concatenate([h[b * seq:b * seq + 1, :] for b in range(batch)], axis=0)  # (B, H)

    # ---- classifier head (dropout == identity in eval mode) ----
    # TODO(synk): training-mode nn.Dropout randomness not reproduced (eval semantics).
    dense_w = wm_ref[HEAD_OFF:HEAD_OFF + H, 0:H]                    # (H, H) bf16
    out_w = wm_ref[HEAD_OFF + H:HEAD_OFF + 2 * H, 0:OUT_PAD]        # (H, 128) bf16
    hdn = jnp.tanh(jnp.dot(cls.astype(bf16), dense_w, preferred_element_type=f32)
                   + vec_ref[DENSE_B_ROW:DENSE_B_ROW + 1, 0:H])
    logits = (jnp.dot(hdn.astype(bf16), out_w, preferred_element_type=f32)
              + vec_ref[OUT_B_ROW:OUT_B_ROW + 1, 0:OUT_PAD])
    o_ref[...] = logits.astype(o_ref.dtype)                         # (B, OUT_PAD), lane-dense


# ------------------------------ parameters ----------------------------------

def init_params(key):
    """Builds the two packed slabs: bf16 matrix slab + f32 vector slab."""
    ks = jax.random.split(key, 8)

    def nrm(k, shape):
        return INIT_RANGE * jax.random.normal(k, shape, jnp.float32)

    H, I, L = HIDDEN, INTERMEDIATE, NUM_LAYERS
    inv_sqrt_dh = 1.0 / (HEAD_DIM ** 0.5)

    wm = jnp.zeros((WM_ROWS, LANES), jnp.float32)
    vec = jnp.zeros((VEC_ROWS, LANES), jnp.float32)

    # embeddings (vocab padded 100 -> 128 with zero rows)
    wm = wm.at[0:VOCAB, 0:H].set(nrm(ks[0], (VOCAB, H)))
    vec = vec.at[POS_ROW:POS_ROW + MAX_POS, 0:H].set(nrm(ks[1], (MAX_POS, H)))
    vec = vec.at[EMB_LN_G_ROW, 0:H].set(1.0)                        # emb LN gamma / beta=0

    # encoder layers
    lkeys = jax.random.split(ks[2], L)
    for l in range(L):
        kq, kk, kv_, ko, k1, k2 = jax.random.split(lkeys[l], 6)
        base = LAYER_W_OFF + l * LROWS
        # 1/sqrt(head_dim) folded into Wq (and bq, which is zero) at init.
        wm = wm.at[base + WQ_R:base + WQ_R + H, 0:H].set(nrm(kq, (H, H)) * inv_sqrt_dh)
        wm = wm.at[base + WK_R:base + WK_R + H, 0:H].set(nrm(kk, (H, H)))
        wm = wm.at[base + WV_R:base + WV_R + H, 0:H].set(nrm(kv_, (H, H)))
        wm = wm.at[base + WO_R:base + WO_R + H, 0:H].set(nrm(ko, (H, H)))
        wm = wm.at[base + W1_R:base + W1_R + H, 0:I].set(nrm(k1, (H, I)))
        wm = wm.at[base + W2_R:base + W2_R + I, 0:H].set(nrm(k2, (I, H)))
        vb = l * VEC_LROWS
        vec = vec.at[vb + LN1G_ROW, 0:H].set(1.0)                   # LN gammas; betas/biases = 0
        vec = vec.at[vb + LN2G_ROW, 0:H].set(1.0)

    # predictor head (init_predictor_head: normal(0, init_range), out_proj bias zeroed)
    wm = wm.at[HEAD_OFF:HEAD_OFF + H, 0:H].set(nrm(ks[3], (H, H)))
    wm = wm.at[HEAD_OFF + H:HEAD_OFF + 2 * H, 0:OUTPUT_DIM].set(nrm(ks[4], (H, OUTPUT_DIM)))

    return {'wm': wm.astype(jnp.bfloat16), 'vec': vec}


# -------------------------------- forward -----------------------------------

@jax.jit
def forward(params, input_ids, attention_mask):
    B, S = input_ids.shape
    BS = B * S

    ids2d = input_ids.reshape(BS, 1).astype(jnp.int32)              # column form for one-hot
    mask_row = attention_mask.reshape(1, BS).astype(jnp.int32)      # key-validity in lane form

    kernel = functools.partial(_fused_forward_kernel, batch=B, seq=S)
    vmem_spec = lambda: pl.BlockSpec(memory_space=pltpu.MemorySpace.VMEM)

    padded = pl.pallas_call(
        kernel,
        out_shape=jax.ShapeDtypeStruct((B, OUT_PAD), jnp.float32),
        in_specs=[vmem_spec() for _ in range(4)],
        out_specs=vmem_spec(),
    )(ids2d, mask_row, params['wm'], params['vec'])
    return padded[:, :OUTPUT_DIM]


# ---------------------------------- main -------------------------------------

if __name__ == "__main__":
    key = jax.random.PRNGKey(0)
    pkey, ikey = jax.random.split(key)
    params = init_params(pkey)

    input_ids = jax.random.randint(ikey, (BATCH, SEQ), 0, VOCAB, dtype=jnp.int32)
    attention_mask = jnp.array([[1] * SEQ,
                                [1] * (SEQ - 2) + [0, 0]], dtype=jnp.int32)

    logits = forward(params, input_ids, attention_mask)
    jax.block_until_ready(logits)
    assert logits.shape == (BATCH, OUTPUT_DIM)
    assert bool(jnp.all(jnp.isfinite(logits)))
    print("KERNEL_OK")
</pallas_src>

<mosaic_0001>
module attributes {stable_mosaic.version = 11 : i64} {
  func.func @_fused_forward_kernel(%arg0: memref<16x1xi32, #tpu.memory_space<vmem>>, %arg1: memref<1x16xi32, #tpu.memory_space<vmem>>, %arg2: memref<640x128xbf16, #tpu.memory_space<vmem>>, %arg3: memref<56x128xf32, #tpu.memory_space<vmem>>, %arg4: memref<2x128xf32, #tpu.memory_space<vmem>>) attributes {dimension_semantics = [], scalar_prefetch = 0 : i64, scratch_operands = 0 : i64, tpu.core_type = #tpu.core_type<tc>} {
    %c0 = arith.constant 0 : index
    %c0_0 = arith.constant 0 : index
    %0 = vector.load %arg0[%c0, %c0_0] : memref<16x1xi32, #tpu.memory_space<vmem>>, vector<16x1xi32>
    %1 = tpu.iota {dimensions = array<i32: 1>} : vector<16x128xi32>
    %2 = vector.broadcast %0 : vector<16x1xi32> to vector<16x128xi32>
    %3 = arith.cmpi eq, %1, %2 : vector<16x128xi32>
    %4 = arith.extui %3 : vector<16x128xi1> to vector<16x128xi32>
    %5 = arith.sitofp %4 : vector<16x128xi32> to vector<16x128xf32>
    %6 = arith.truncf %5 : vector<16x128xf32> to vector<16x128xbf16>
    %c0_1 = arith.constant 0 : index
    %c0_2 = arith.constant 0 : index
    %7 = vector.load %arg2[%c0_1, %c0_2] : memref<640x128xbf16, #tpu.memory_space<vmem>>, vector<128x32xbf16>
    %cst = arith.constant dense<0.000000e+00> : vector<16x32xf32>
    %8 = tpu.matmul %6, %7, %cst {dimension_numbers = #tpu.dot_dimension_numbers<[1], [0], [0], [1], [0, 0, 1, 1], [], []>} : vector<16x128xbf16>, vector<128x32xbf16>, vector<16x32xf32> -> vector<16x32xf32>
    %c32 = arith.constant 32 : index
    %c0_3 = arith.constant 0 : index
    %9 = vector.load %arg3[%c32, %c0_3] : memref<56x128xf32, #tpu.memory_space<vmem>>, vector<8x32xf32>
    %10 = tpu.concatenate %9, %9 in 0 : vector<8x32xf32>, vector<8x32xf32> -> vector<16x32xf32>
    %11 = arith.addf %8, %10 : vector<16x32xf32>
    %c48 = arith.constant 48 : index
    %c0_4 = arith.constant 0 : index
    %12 = vector.load %arg3[%c48, %c0_4] : memref<56x128xf32, #tpu.memory_space<vmem>>, vector<1x32xf32>
    %c49 = arith.constant 49 : index
    %c0_5 = arith.constant 0 : index
    %13 = vector.load %arg3[%c49, %c0_5] : memref<56x128xf32, #tpu.memory_space<vmem>>, vector<1x32xf32>
    %cst_6 = arith.constant dense<0.000000e+00> : vector<16xf32>
    %14 = vector.multi_reduction <add>, %11, %cst_6 [1] : vector<16x32xf32> to vector<16xf32>
    %15 = vector.shape_cast %14 : vector<16xf32> to vector<16x1xf32>
    %cst_7 = arith.constant 3.200000e+01 : f32
    %16 = vector.broadcast %cst_7 : f32 to vector<16x1xf32>
    %17 = arith.divf %15, %16 : vector<16x1xf32>
    %18 = vector.broadcast %17 : vector<16x1xf32> to vector<16x32xf32>
    %19 = arith.subf %11, %18 : vector<16x32xf32>
    %20 = arith.mulf %19, %19 : vector<16x32xf32>
    %cst_8 = arith.constant dense<0.000000e+00> : vector<16xf32>
    %21 = vector.multi_reduction <add>, %20, %cst_8 [1] : vector<16x32xf32> to vector<16xf32>
    %22 = vector.shape_cast %21 : vector<16xf32> to vector<16x1xf32>
    %cst_9 = arith.constant 3.200000e+01 : f32
    %23 = vector.broadcast %cst_9 : f32 to vector<16x1xf32>
    %24 = arith.divf %22, %23 : vector<16x1xf32>
    %25 = vector.broadcast %17 : vector<16x1xf32> to vector<16x32xf32>
    %26 = arith.subf %11, %25 : vector<16x32xf32>
    %cst_10 = arith.constant 9.99999996E-13 : f32
    %27 = vector.broadcast %cst_10 : f32 to vector<16x1xf32>
    %28 = arith.addf %24, %27 : vector<16x1xf32>
    %29 = math.rsqrt %28 : vector<16x1xf32>
    %30 = vector.broadcast %29 : vector<16x1xf32> to vector<16x32xf32>
    %31 = arith.mulf %26, %30 : vector<16x32xf32>
    %32 = vector.broadcast %12 : vector<1x32xf32> to vector<16x32xf32>
    %33 = arith.mulf %31, %32 : vector<16x32xf32>
    %34 = vector.broadcast %13 : vector<1x32xf32> to vector<16x32xf32>
    %35 = arith.addf %33, %34 : vector<16x32xf32>
    %c0_11 = arith.constant 0 : index
    %c0_12 = arith.constant 0 : index
    %36 = vector.load %arg1[%c0_11, %c0_12] : memref<1x16xi32, #tpu.memory_space<vmem>>, vector<1x16xi32>
    %c0_i32 = arith.constant 0 : i32
    %37 = vector.broadcast %c0_i32 : i32 to vector<1x16xi32>
    %38 = arith.cmpi sgt, %36, %37 : vector<1x16xi32>
    %39 = tpu.iota {dimensions = array<i32: 0>} : vector<16x16xi32>
    %40 = tpu.iota {dimensions = array<i32: 1>} : vector<16x16xi32>
    %false = arith.constant false
    %41 = vector.broadcast %false : i1 to vector<16x16xi1>
    %c0_i32_13 = arith.constant 0 : i32
    %42 = vector.broadcast %c0_i32_13 : i32 to vector<16x16xi32>
    %43 = arith.cmpi sge, %39, %42 : vector<16x16xi32>
    %c8_i32 = arith.constant 8 : i32
    %44 = vector.broadcast %c8_i32 : i32 to vector<16x16xi32>
    %45 = arith.cmpi slt, %39, %44 : vector<16x16xi32>
    %46 = arith.andi %43, %45 : vector<16x16xi1>
    %c0_i32_14 = arith.constant 0 : i32
    %47 = vector.broadcast %c0_i32_14 : i32 to vector<16x16xi32>
    %48 = arith.cmpi sge, %40, %47 : vector<16x16xi32>
    %49 = arith.andi %46, %48 : vector<16x16xi1>
    %c8_i32_15 = arith.constant 8 : i32
    %50 = vector.broadcast %c8_i32_15 : i32 to vector<16x16xi32>
    %51 = arith.cmpi slt, %40, %50 : vector<16x16xi32>
    %52 = arith.andi %49, %51 : vector<16x16xi1>
    %53 = arith.ori %41, %52 : vector<16x16xi1>
    %c8_i32_16 = arith.constant 8 : i32
    %54 = vector.broadcast %c8_i32_16 : i32 to vector<16x16xi32>
    %55 = arith.cmpi sge, %39, %54 : vector<16x16xi32>
    %c16_i32 = arith.constant 16 : i32
    %56 = vector.broadcast %c16_i32 : i32 to vector<16x16xi32>
    %57 = arith.cmpi slt, %39, %56 : vector<16x16xi32>
    %58 = arith.andi %55, %57 : vector<16x16xi1>
    %c8_i32_17 = arith.constant 8 : i32
    %59 = vector.broadcast %c8_i32_17 : i32 to vector<16x16xi32>
    %60 = arith.cmpi sge, %40, %59 : vector<16x16xi32>
    %61 = arith.andi %58, %60 : vector<16x16xi1>
    %c16_i32_18 = arith.constant 16 : i32
    %62 = vector.broadcast %c16_i32_18 : i32 to vector<16x16xi32>
    %63 = arith.cmpi slt, %40, %62 : vector<16x16xi32>
    %64 = arith.andi %61, %63 : vector<16x16xi1>
    %65 = arith.ori %53, %64 : vector<16x16xi1>
    %66 = vector.broadcast %38 : vector<1x16xi1> to vector<16x16xi1>
    %67 = arith.andi %65, %66 : vector<16x16xi1>
    %68 = arith.truncf %35 : vector<16x32xf32> to vector<16x32xbf16>
    %cst_19 = arith.constant 0.000000e+00 : f32
    %69 = vector.broadcast %cst_19 : f32 to vector<16x32xf32>
    %c128 = arith.constant 128 : index
    %c0_20 = arith.constant 0 : index
    %70 = vector.load %arg2[%c128, %c0_20] : memref<640x128xbf16, #tpu.memory_space<vmem>>, vector<32x8xbf16>
    %cst_21 = arith.constant dense<0.000000e+00> : vector<16x8xf32>
    %71 = tpu.matmul %68, %70, %cst_21 {dimension_numbers = #tpu.dot_dimension_numbers<[1], [0], [0], [1], [0, 0, 1, 1], [], []>} : vector<16x32xbf16>, vector<32x8xbf16>, vector<16x8xf32> -> vector<16x8xf32>
    %c0_22 = arith.constant 0 : index
    %c0_23 = arith.constant 0 : index
    %72 = vector.load %arg3[%c0_22, %c0_23] : memref<56x128xf32, #tpu.memory_space<vmem>>, vector<1x8xf32>
    %73 = vector.broadcast %72 : vector<1x8xf32> to vector<16x8xf32>
    %74 = arith.addf %71, %73 : vector<16x8xf32>
    %c160 = arith.constant 160 : index
    %c0_24 = arith.constant 0 : index
    %75 = vector.load %arg2[%c160, %c0_24] : memref<640x128xbf16, #tpu.memory_space<vmem>>, vector<32x8xbf16>
    %cst_25 = arith.constant dense<0.000000e+00> : vector<16x8xf32>
    %76 = tpu.matmul %68, %75, %cst_25 {dimension_numbers = #tpu.dot_dimension_numbers<[1], [0], [0], [1], [0, 0, 1, 1], [], []>} : vector<16x32xbf16>, vector<32x8xbf16>, vector<16x8xf32> -> vector<16x8xf32>
    %c1 = arith.constant 1 : index
    %c0_26 = arith.constant 0 : index
    %77 = vector.load %arg3[%c1, %c0_26] : memref<56x128xf32, #tpu.memory_space<vmem>>, vector<1x8xf32>
    %78 = vector.broadcast %77 : vector<1x8xf32> to vector<16x8xf32>
    %79 = arith.addf %76, %78 : vector<16x8xf32>
    %c192 = arith.constant 192 : index
    %c0_27 = arith.constant 0 : index
    %80 = vector.load %arg2[%c192, %c0_27] : memref<640x128xbf16, #tpu.memory_space<vmem>>, vector<32x8xbf16>
    %cst_28 = arith.constant dense<0.000000e+00> : vector<16x8xf32>
    %81 = tpu.matmul %68, %80, %cst_28 {dimension_numbers = #tpu.dot_dimension_numbers<[1], [0], [0], [1], [0, 0, 1, 1], [], []>} : vector<16x32xbf16>, vector<32x8xbf16>, vector<16x8xf32> -> vector<16x8xf32>
    %c2 = arith.constant 2 : index
    %c0_29 = arith.constant 0 : index
    %82 = vector.load %arg3[%c2, %c0_29] : memref<56x128xf32, #tpu.memory_space<vmem>>, vector<1x8xf32>
    %83 = vector.broadcast %82 : vector<1x8xf32> to vector<16x8xf32>
    %84 = arith.addf %81, %83 : vector<16x8xf32>
    %85 = arith.truncf %74 : vector<16x8xf32> to vector<16x8xbf16>
    %86 = arith.truncf %79 : vector<16x8xf32> to vector<16x8xbf16>
    %cst_30 = arith.constant dense<0.000000e+00> : vector<16x16xf32>
    %87 = tpu.matmul %85, %86, %cst_30 {dimension_numbers = #tpu.dot_dimension_numbers<[1], [1], [0], [0], [0, 0, 1, 0], [], []>} : vector<16x8xbf16>, vector<16x8xbf16>, vector<16x16xf32> -> vector<16x16xf32>
    %cst_31 = arith.constant -1.000000e+09 : f32
    %88 = vector.broadcast %cst_31 : f32 to vector<16x16xf32>
    %89 = arith.select %67, %87, %88 : vector<16x16xi1>, vector<16x16xf32>
    %cst_32 = arith.constant dense<0xFF800000> : vector<16xf32>
    %90 = vector.multi_reduction <maximumf>, %89, %cst_32 [1] : vector<16x16xf32> to vector<16xf32>
    %91 = vector.shape_cast %90 : vector<16xf32> to vector<16x1xf32>
    %92 = vector.broadcast %91 : vector<16x1xf32> to vector<16x16xf32>
    %93 = arith.subf %89, %92 : vector<16x16xf32>
    %94 = math.exp %93 : vector<16x16xf32>
    %cst_33 = arith.constant dense<0.000000e+00> : vector<16xf32>
    %95 = vector.multi_reduction <add>, %94, %cst_33 [1] : vector<16x16xf32> to vector<16xf32>
    %96 = vector.shape_cast %95 : vector<16xf32> to vector<16x1xf32>
    %97 = tpu.reciprocal %96 {approx = true} : vector<16x1xf32> -> vector<16x1xf32>
    %98 = vector.broadcast %97 : vector<16x1xf32> to vector<16x16xf32>
    %99 = arith.mulf %94, %98 : vector<16x16xf32>
    %100 = arith.truncf %99 : vector<16x16xf32> to vector<16x16xbf16>
    %101 = arith.truncf %84 : vector<16x8xf32> to vector<16x8xbf16>
    %cst_34 = arith.constant dense<0.000000e+00> : vector<16x8xf32>
    %102 = tpu.matmul %100, %101, %cst_34 {dimension_numbers = #tpu.dot_dimension_numbers<[1], [0], [0], [1], [0, 0, 1, 1], [], []>} : vector<16x16xbf16>, vector<16x8xbf16>, vector<16x8xf32> -> vector<16x8xf32>
    %c224 = arith.constant 224 : index
    %c0_35 = arith.constant 0 : index
    %103 = vector.load %arg2[%c224, %c0_35] : memref<640x128xbf16, #tpu.memory_space<vmem>>, vector<8x32xbf16>
    %104 = arith.truncf %102 : vector<16x8xf32> to vector<16x8xbf16>
    %cst_36 = arith.constant dense<0.000000e+00> : vector<16x32xf32>
    %105 = tpu.matmul %104, %103, %cst_36 {dimension_numbers = #tpu.dot_dimension_numbers<[1], [0], [0], [1], [0, 0, 1, 1], [], []>} : vector<16x8xbf16>, vector<8x32xbf16>, vector<16x32xf32> -> vector<16x32xf32>
    %106 = arith.addf %69, %105 : vector<16x32xf32>
    %c128_37 = arith.constant 128 : index
    %c8 = arith.constant 8 : index
    %107 = vector.load %arg2[%c128_37, %c8] : memref<640x128xbf16, #tpu.memory_space<vmem>>, vector<32x8xbf16>
    %cst_38 = arith.constant dense<0.000000e+00> : vector<16x8xf32>
    %108 = tpu.matmul %68, %107, %cst_38 {dimension_numbers = #tpu.dot_dimension_numbers<[1], [0], [0], [1], [0, 0, 1, 1], [], []>} : vector<16x32xbf16>, vector<32x8xbf16>, vector<16x8xf32> -> vector<16x8xf32>
    %c0_39 = arith.constant 0 : index
    %c8_40 = arith.constant 8 : index
    %109 = vector.load %arg3[%c0_39, %c8_40] : memref<56x128xf32, #tpu.memory_space<vmem>>, vector<1x8xf32>
    %110 = vector.broadcast %109 : vector<1x8xf32> to vector<16x8xf32>
    %111 = arith.addf %108, %110 : vector<16x8xf32>
    %c160_41 = arith.constant 160 : index
    %c8_42 = arith.constant 8 : index
    %112 = vector.load %arg2[%c160_41, %c8_42] : memref<640x128xbf16, #tpu.memory_space<vmem>>, vector<32x8xbf16>
    %cst_43 = arith.constant dense<0.000000e+00> : vector<16x8xf32>
    %113 = tpu.matmul %68, %112, %cst_43 {dimension_numbers = #tpu.dot_dimension_numbers<[1], [0], [0], [1], [0, 0, 1, 1], [], []>} : vector<16x32xbf16>, vector<32x8xbf16>, vector<16x8xf32> -> vector<16x8xf32>
    %c1_44 = arith.constant 1 : index
    %c8_45 = arith.constant 8 : index
    %114 = vector.load %arg3[%c1_44, %c8_45] : memref<56x128xf32, #tpu.memory_space<vmem>>, vector<1x8xf32>
    %115 = vector.broadcast %114 : vector<1x8xf32> to vector<16x8xf32>
    %116 = arith.addf %113, %115 : vector<16x8xf32>
    %c192_46 = arith.constant 192 : index
    %c8_47 = arith.constant 8 : index
    %117 = vector.load %arg2[%c192_46, %c8_47] : memref<640x128xbf16, #tpu.memory_space<vmem>>, vector<32x8xbf16>
    %cst_48 = arith.constant dense<0.000000e+00> : vector<16x8xf32>
    %118 = tpu.matmul %68, %117, %cst_48 {dimension_numbers = #tpu.dot_dimension_numbers<[1], [0], [0], [1], [0, 0, 1, 1], [], []>} : vector<16x32xbf16>, vector<32x8xbf16>, vector<16x8xf32> -> vector<16x8xf32>
    %c2_49 = arith.constant 2 : index
    %c8_50 = arith.constant 8 : index
    %119 = vector.load %arg3[%c2_49, %c8_50] : memref<56x128xf32, #tpu.memory_space<vmem>>, vector<1x8xf32>
    %120 = vector.broadcast %119 : vector<1x8xf32> to vector<16x8xf32>
    %121 = arith.addf %118, %120 : vector<16x8xf32>
    %122 = arith.truncf %111 : vector<16x8xf32> to vector<16x8xbf16>
    %123 = arith.truncf %116 : vector<16x8xf32> to vector<16x8xbf16>
    %cst_51 = arith.constant dense<0.000000e+00> : vector<16x16xf32>
    %124 = tpu.matmul %122, %123, %cst_51 {dimension_numbers = #tpu.dot_dimension_numbers<[1], [1], [0], [0], [0, 0, 1, 0], [], []>} : vector<16x8xbf16>, vector<16x8xbf16>, vector<16x16xf32> -> vector<16x16xf32>
    %cst_52 = arith.constant -1.000000e+09 : f32
    %125 = vector.broadcast %cst_52 : f32 to vector<16x16xf32>
    %126 = arith.select %67, %124, %125 : vector<16x16xi1>, vector<16x16xf32>
    %cst_53 = arith.constant dense<0xFF800000> : vector<16xf32>
    %127 = vector.multi_reduction <maximumf>, %126, %cst_53 [1] : vector<16x16xf32> to vector<16xf32>
    %128 = vector.shape_cast %127 : vector<16xf32> to vector<16x1xf32>
    %129 = vector.broadcast %128 : vector<16x1xf32> to vector<16x16xf32>
    %130 = arith.subf %126, %129 : vector<16x16xf32>
    %131 = math.exp %130 : vector<16x16xf32>
    %cst_54 = arith.constant dense<0.000000e+00> : vector<16xf32>
    %132 = vector.multi_reduction <add>, %131, %cst_54 [1] : vector<16x16xf32> to vector<16xf32>
    %133 = vector.shape_cast %132 : vector<16xf32> to vector<16x1xf32>
    %134 = tpu.reciprocal %133 {approx = true} : vector<16x1xf32> -> vector<16x1xf32>
    %135 = vector.broadcast %134 : vector<16x1xf32> to vector<16x16xf32>
    %136 = arith.mulf %131, %135 : vector<16x16xf32>
    %137 = arith.truncf %136 : vector<16x16xf32> to vector<16x16xbf16>
    %138 = arith.truncf %121 : vector<16x8xf32> to vector<16x8xbf16>
    %cst_55 = arith.constant dense<0.000000e+00> : vector<16x8xf32>
    %139 = tpu.matmul %137, %138, %cst_55 {dimension_numbers = #tpu.dot_dimension_numbers<[1], [0], [0], [1], [0, 0, 1, 1], [], []>} : vector<16x16xbf16>, vector<16x8xbf16>, vector<16x8xf32> -> vector<16x8xf32>
    %c232 = arith.constant 232 : index
    %c0_56 = arith.constant 0 : index
    %140 = vector.load %arg2[%c232, %c0_56] : memref<640x128xbf16, #tpu.memory_space<vmem>>, vector<8x32xbf16>
    %141 = arith.truncf %139 : vector<16x8xf32> to vector<16x8xbf16>
    %cst_57 = arith.constant dense<0.000000e+00> : vector<16x32xf32>
    %142 = tpu.matmul %141, %140, %cst_57 {dimension_numbers = #tpu.dot_dimension_numbers<[1], [0], [0], [1], [0, 0, 1, 1], [], []>} : vector<16x8xbf16>, vector<8x32xbf16>, vector<16x32xf32> -> vector<16x32xf32>
    %143 = arith.addf %106, %142 : vector<16x32xf32>
    %c128_58 = arith.constant 128 : index
    %c16 = arith.constant 16 : index
    %144 = vector.load %arg2[%c128_58, %c16] : memref<640x128xbf16, #tpu.memory_space<vmem>>, vector<32x8xbf16>
    %cst_59 = arith.constant dense<0.000000e+00> : vector<16x8xf32>
    %145 = tpu.matmul %68, %144, %cst_59 {dimension_numbers = #tpu.dot_dimension_numbers<[1], [0], [0], [1], [0, 0, 1, 1], [], []>} : vector<16x32xbf16>, vector<32x8xbf16>, vector<16x8xf32> -> vector<16x8xf32>
    %c0_60 = arith.constant 0 : index
    %c16_61 = arith.constant 16 : index
    %146 = vector.load %arg3[%c0_60, %c16_61] : memref<56x128xf32, #tpu.memory_space<vmem>>, vector<1x8xf32>
    %147 = vector.broadcast %146 : vector<1x8xf32> to vector<16x8xf32>
    %148 = arith.addf %145, %147 : vector<16x8xf32>
    %c160_62 = arith.constant 160 : index
    %c16_63 = arith.constant 16 : index
    %149 = vector.load %arg2[%c160_62, %c16_63] : memref<640x128xbf16, #tpu.memory_space<vmem>>, vector<32x8xbf16>
    %cst_64 = arith.constant dense<0.000000e+00> : vector<16x8xf32>
    %150 = tpu.matmul %68, %149, %cst_64 {dimension_numbers = #tpu.dot_dimension_numbers<[1], [0], [0], [1], [0, 0, 1, 1], [], []>} : vector<16x32xbf16>, vector<32x8xbf16>, vector<16x8xf32> -> vector<16x8xf32>
    %c1_65 = arith.constant 1 : index
    %c16_66 = arith.constant 16 : index
    %151 = vector.load %arg3[%c1_65, %c16_66] : memref<56x128xf32, #tpu.memory_space<vmem>>, vector<1x8xf32>
    %152 = vector.broadcast %151 : vector<1x8xf32> to vector<16x8xf32>
    %153 = arith.addf %150, %152 : vector<16x8xf32>
    %c192_67 = arith.constant 192 : index
    %c16_68 = arith.constant 16 : index
    %154 = vector.load %arg2[%c192_67, %c16_68] : memref<640x128xbf16, #tpu.memory_space<vmem>>, vector<32x8xbf16>
    %cst_69 = arith.constant dense<0.000000e+00> : vector<16x8xf32>
    %155 = tpu.matmul %68, %154, %cst_69 {dimension_numbers = #tpu.dot_dimension_numbers<[1], [0], [0], [1], [0, 0, 1, 1], [], []>} : vector<16x32xbf16>, vector<32x8xbf16>, vector<16x8xf32> -> vector<16x8xf32>
    %c2_70 = arith.constant 2 : index
    %c16_71 = arith.constant 16 : index
    %156 = vector.load %arg3[%c2_70, %c16_71] : memref<56x128xf32, #tpu.memory_space<vmem>>, vector<1x8xf32>
    %157 = vector.broadcast %156 : vector<1x8xf32> to vector<16x8xf32>
    %158 = arith.addf %155, %157 : vector<16x8xf32>
    %159 = arith.truncf %148 : vector<16x8xf32> to vector<16x8xbf16>
    %160 = arith.truncf %153 : vector<16x8xf32> to vector<16x8xbf16>
    %cst_72 = arith.constant dense<0.000000e+00> : vector<16x16xf32>
    %161 = tpu.matmul %159, %160, %cst_72 {dimension_numbers = #tpu.dot_dimension_numbers<[1], [1], [0], [0], [0, 0, 1, 0], [], []>} : vector<16x8xbf16>, vector<16x8xbf16>, vector<16x16xf32> -> vector<16x16xf32>
    %cst_73 = arith.constant -1.000000e+09 : f32
    %162 = vector.broadcast %cst_73 : f32 to vector<16x16xf32>
    %163 = arith.select %67, %161, %162 : vector<16x16xi1>, vector<16x16xf32>
    %cst_74 = arith.constant dense<0xFF800000> : vector<16xf32>
    %164 = vector.multi_reduction <maximumf>, %163, %cst_74 [1] : vector<16x16xf32> to vector<16xf32>
    %165 = vector.shape_cast %164 : vector<16xf32> to vector<16x1xf32>
    %166 = vector.broadcast %165 : vector<16x1xf32> to vector<16x16xf32>
    %167 = arith.subf %163, %166 : vector<16x16xf32>
    %168 = math.exp %167 : vector<16x16xf32>
    %cst_75 = arith.constant dense<0.000000e+00> : vector<16xf32>
    %169 = vector.multi_reduction <add>, %168, %cst_75 [1] : vector<16x16xf32> to vector<16xf32>
    %170 = vector.shape_cast %169 : vector<16xf32> to vector<16x1xf32>
    %171 = tpu.reciprocal %170 {approx = true} : vector<16x1xf32> -> vector<16x1xf32>
    %172 = vector.broadcast %171 : vector<16x1xf32> to vector<16x16xf32>
    %173 = arith.mulf %168, %172 : vector<16x16xf32>
    %174 = arith.truncf %173 : vector<16x16xf32> to vector<16x16xbf16>
    %175 = arith.truncf %158 : vector<16x8xf32> to vector<16x8xbf16>
    %cst_76 = arith.constant dense<0.000000e+00> : vector<16x8xf32>
    %176 = tpu.matmul %174, %175, %cst_76 {dimension_numbers = #tpu.dot_dimension_numbers<[1], [0], [0], [1], [0, 0, 1, 1], [], []>} : vector<16x16xbf16>, vector<16x8xbf16>, vector<16x8xf32> -> vector<16x8xf32>
    %c240 = arith.constant 240 : index
    %c0_77 = arith.constant 0 : index
    %177 = vector.load %arg2[%c240, %c0_77] : memref<640x128xbf16, #tpu.memory_space<vmem>>, vector<8x32xbf16>
    %178 = arith.truncf %176 : vector<16x8xf32> to vector<16x8xbf16>
    %cst_78 = arith.constant dense<0.000000e+00> : vector<16x32xf32>
    %179 = tpu.matmul %178, %177, %cst_78 {dimension_numbers = #tpu.dot_dimension_numbers<[1], [0], [0], [1], [0, 0, 1, 1], [], []>} : vector<16x8xbf16>, vector<8x32xbf16>, vector<16x32xf32> -> vector<16x32xf32>
    %180 = arith.addf %143, %179 : vector<16x32xf32>
    %c128_79 = arith.constant 128 : index
    %c24 = arith.constant 24 : index
    %181 = vector.load %arg2[%c128_79, %c24] : memref<640x128xbf16, #tpu.memory_space<vmem>>, vector<32x8xbf16>
    %cst_80 = arith.constant dense<0.000000e+00> : vector<16x8xf32>
    %182 = tpu.matmul %68, %181, %cst_80 {dimension_numbers = #tpu.dot_dimension_numbers<[1], [0], [0], [1], [0, 0, 1, 1], [], []>} : vector<16x32xbf16>, vector<32x8xbf16>, vector<16x8xf32> -> vector<16x8xf32>
    %c0_81 = arith.constant 0 : index
    %c24_82 = arith.constant 24 : index
    %183 = vector.load %arg3[%c0_81, %c24_82] : memref<56x128xf32, #tpu.memory_space<vmem>>, vector<1x8xf32>
    %184 = vector.broadcast %183 : vector<1x8xf32> to vector<16x8xf32>
    %185 = arith.addf %182, %184 : vector<16x8xf32>
    %c160_83 = arith.constant 160 : index
    %c24_84 = arith.constant 24 : index
    %186 = vector.load %arg2[%c160_83, %c24_84] : memref<640x128xbf16, #tpu.memory_space<vmem>>, vector<32x8xbf16>
    %cst_85 = arith.constant dense<0.000000e+00> : vector<16x8xf32>
    %187 = tpu.matmul %68, %186, %cst_85 {dimension_numbers = #tpu.dot_dimension_numbers<[1], [0], [0], [1], [0, 0, 1, 1], [], []>} : vector<16x32xbf16>, vector<32x8xbf16>, vector<16x8xf32> -> vector<16x8xf32>
    %c1_86 = arith.constant 1 : index
    %c24_87 = arith.constant 24 : index
    %188 = vector.load %arg3[%c1_86, %c24_87] : memref<56x128xf32, #tpu.memory_space<vmem>>, vector<1x8xf32>
    %189 = vector.broadcast %188 : vector<1x8xf32> to vector<16x8xf32>
    %190 = arith.addf %187, %189 : vector<16x8xf32>
    %c192_88 = arith.constant 192 : index
    %c24_89 = arith.constant 24 : index
    %191 = vector.load %arg2[%c192_88, %c24_89] : memref<640x128xbf16, #tpu.memory_space<vmem>>, vector<32x8xbf16>
    %cst_90 = arith.constant dense<0.000000e+00> : vector<16x8xf32>
    %192 = tpu.matmul %68, %191, %cst_90 {dimension_numbers = #tpu.dot_dimension_numbers<[1], [0], [0], [1], [0, 0, 1, 1], [], []>} : vector<16x32xbf16>, vector<32x8xbf16>, vector<16x8xf32> -> vector<16x8xf32>
    %c2_91 = arith.constant 2 : index
    %c24_92 = arith.constant 24 : index
    %193 = vector.load %arg3[%c2_91, %c24_92] : memref<56x128xf32, #tpu.memory_space<vmem>>, vector<1x8xf32>
    %194 = vector.broadcast %193 : vector<1x8xf32> to vector<16x8xf32>
    %195 = arith.addf %192, %194 : vector<16x8xf32>
    %196 = arith.truncf %185 : vector<16x8xf32> to vector<16x8xbf16>
    %197 = arith.truncf %190 : vector<16x8xf32> to vector<16x8xbf16>
    %cst_93 = arith.constant dense<0.000000e+00> : vector<16x16xf32>
    %198 = tpu.matmul %196, %197, %cst_93 {dimension_numbers = #tpu.dot_dimension_numbers<[1], [1], [0], [0], [0, 0, 1, 0], [], []>} : vector<16x8xbf16>, vector<16x8xbf16>, vector<16x16xf32> -> vector<16x16xf32>
    %cst_94 = arith.constant -1.000000e+09 : f32
    %199 = vector.broadcast %cst_94 : f32 to vector<16x16xf32>
    %200 = arith.select %67, %198, %199 : vector<16x16xi1>, vector<16x16xf32>
    %cst_95 = arith.constant dense<0xFF800000> : vector<16xf32>
    %201 = vector.multi_reduction <maximumf>, %200, %cst_95 [1] : vector<16x16xf32> to vector<16xf32>
    %202 = vector.shape_cast %201 : vector<16xf32> to vector<16x1xf32>
    %203 = vector.broadcast %202 : vector<16x1xf32> to vector<16x16xf32>
    %204 = arith.subf %200, %203 : vector<16x16xf32>
    %205 = math.exp %204 : vector<16x16xf32>
    %cst_96 = arith.constant dense<0.000000e+00> : vector<16xf32>
    %206 = vector.multi_reduction <add>, %205, %cst_96 [1] : vector<16x16xf32> to vector<16xf32>
    %207 = vector.shape_cast %206 : vector<16xf32> to vector<16x1xf32>
    %208 = tpu.reciprocal %207 {approx = true} : vector<16x1xf32> -> vector<16x1xf32>
    %209 = vector.broadcast %208 : vector<16x1xf32> to vector<16x16xf32>
    %210 = arith.mulf %205, %209 : vector<16x16xf32>
    %211 = arith.truncf %210 : vector<16x16xf32> to vector<16x16xbf16>
    %212 = arith.truncf %195 : vector<16x8xf32> to vector<16x8xbf16>
    %cst_97 = arith.constant dense<0.000000e+00> : vector<16x8xf32>
    %213 = tpu.matmul %211, %212, %cst_97 {dimension_numbers = #tpu.dot_dimension_numbers<[1], [0], [0], [1], [0, 0, 1, 1], [], []>} : vector<16x16xbf16>, vector<16x8xbf16>, vector<16x8xf32> -> vector<16x8xf32>
    %c248 = arith.constant 248 : index
    %c0_98 = arith.constant 0 : index
    %214 = vector.load %arg2[%c248, %c0_98] : memref<640x128xbf16, #tpu.memory_space<vmem>>, vector<8x32xbf16>
    %215 = arith.truncf %213 : vector<16x8xf32> to vector<16x8xbf16>
    %cst_99 = arith.constant dense<0.000000e+00> : vector<16x32xf32>
    %216 = tpu.matmul %215, %214, %cst_99 {dimension_numbers = #tpu.dot_dimension_numbers<[1], [0], [0], [1], [0, 0, 1, 1], [], []>} : vector<16x8xbf16>, vector<8x32xbf16>, vector<16x32xf32> -> vector<16x32xf32>
    %217 = arith.addf %180, %216 : vector<16x32xf32>
    %c3 = arith.constant 3 : index
    %c0_100 = arith.constant 0 : index
    %218 = vector.load %arg3[%c3, %c0_100] : memref<56x128xf32, #tpu.memory_space<vmem>>, vector<1x32xf32>
    %219 = vector.broadcast %218 : vector<1x32xf32> to vector<16x32xf32>
    %220 = arith.addf %217, %219 : vector<16x32xf32>
    %221 = arith.addf %35, %220 : vector<16x32xf32>
    %c4 = arith.constant 4 : index
    %c0_101 = arith.constant 0 : index
    %222 = vector.load %arg3[%c4, %c0_101] : memref<56x128xf32, #tpu.memory_space<vmem>>, vector<1x32xf32>
    %c5 = arith.constant 5 : index
    %c0_102 = arith.constant 0 : index
    %223 = vector.load %arg3[%c5, %c0_102] : memref<56x128xf32, #tpu.memory_space<vmem>>, vector<1x32xf32>
    %cst_103 = arith.constant dense<0.000000e+00> : vector<16xf32>
    %224 = vector.multi_reduction <add>, %221, %cst_103 [1] : vector<16x32xf32> to vector<16xf32>
    %225 = vector.shape_cast %224 : vector<16xf32> to vector<16x1xf32>
    %cst_104 = arith.constant 3.200000e+01 : f32
    %226 = vector.broadcast %cst_104 : f32 to vector<16x1xf32>
    %227 = arith.divf %225, %226 : vector<16x1xf32>
    %228 = vector.broadcast %227 : vector<16x1xf32> to vector<16x32xf32>
    %229 = arith.subf %221, %228 : vector<16x32xf32>
    %230 = arith.mulf %229, %229 : vector<16x32xf32>
    %cst_105 = arith.constant dense<0.000000e+00> : vector<16xf32>
    %231 = vector.multi_reduction <add>, %230, %cst_105 [1] : vector<16x32xf32> to vector<16xf32>
    %232 = vector.shape_cast %231 : vector<16xf32> to vector<16x1xf32>
    %cst_106 = arith.constant 3.200000e+01 : f32
    %233 = vector.broadcast %cst_106 : f32 to vector<16x1xf32>
    %234 = arith.divf %232, %233 : vector<16x1xf32>
    %235 = vector.broadcast %227 : vector<16x1xf32> to vector<16x32xf32>
    %236 = arith.subf %221, %235 : vector<16x32xf32>
    %cst_107 = arith.constant 9.99999996E-13 : f32
    %237 = vector.broadcast %cst_107 : f32 to vector<16x1xf32>
    %238 = arith.addf %234, %237 : vector<16x1xf32>
    %239 = math.rsqrt %238 : vector<16x1xf32>
    %240 = vector.broadcast %239 : vector<16x1xf32> to vector<16x32xf32>
    %241 = arith.mulf %236, %240 : vector<16x32xf32>
    %242 = vector.broadcast %222 : vector<1x32xf32> to vector<16x32xf32>
    %243 = arith.mulf %241, %242 : vector<16x32xf32>
    %244 = vector.broadcast %223 : vector<1x32xf32> to vector<16x32xf32>
    %245 = arith.addf %243, %244 : vector<16x32xf32>
    %246 = arith.truncf %245 : vector<16x32xf32> to vector<16x32xbf16>
    %c256 = arith.constant 256 : index
    %c0_108 = arith.constant 0 : index
    %247 = vector.load %arg2[%c256, %c0_108] : memref<640x128xbf16, #tpu.memory_space<vmem>>, vector<32x64xbf16>
    %cst_109 = arith.constant dense<0.000000e+00> : vector<16x64xf32>
    %248 = tpu.matmul %246, %247, %cst_109 {dimension_numbers = #tpu.dot_dimension_numbers<[1], [0], [0], [1], [0, 0, 1, 1], [], []>} : vector<16x32xbf16>, vector<32x64xbf16>, vector<16x64xf32> -> vector<16x64xf32>
    %c6 = arith.constant 6 : index
    %c0_110 = arith.constant 0 : index
    %249 = vector.load %arg3[%c6, %c0_110] : memref<56x128xf32, #tpu.memory_space<vmem>>, vector<1x64xf32>
    %250 = vector.broadcast %249 : vector<1x64xf32> to vector<16x64xf32>
    %251 = arith.addf %248, %250 : vector<16x64xf32>
    %252 = arith.mulf %251, %251 : vector<16x64xf32>
    %253 = arith.mulf %251, %252 : vector<16x64xf32>
    %cst_111 = arith.constant 4.471500e-02 : f32
    %254 = vector.broadcast %cst_111 : f32 to vector<16x64xf32>
    %255 = arith.mulf %254, %253 : vector<16x64xf32>
    %256 = arith.addf %251, %255 : vector<16x64xf32>
    %cst_112 = arith.constant 0.797884583 : f32
    %257 = vector.broadcast %cst_112 : f32 to vector<16x64xf32>
    %258 = arith.mulf %257, %256 : vector<16x64xf32>
    %259 = math.tanh %258 : vector<16x64xf32>
    %cst_113 = arith.constant 1.000000e+00 : f32
    %260 = vector.broadcast %cst_113 : f32 to vector<16x64xf32>
    %261 = arith.addf %260, %259 : vector<16x64xf32>
    %cst_114 = arith.constant 5.000000e-01 : f32
    %262 = vector.broadcast %cst_114 : f32 to vector<16x64xf32>
    %263 = arith.mulf %262, %261 : vector<16x64xf32>
    %264 = arith.mulf %251, %263 : vector<16x64xf32>
    %265 = arith.truncf %264 : vector<16x64xf32> to vector<16x64xbf16>
    %c288 = arith.constant 288 : index
    %c0_115 = arith.constant 0 : index
    %266 = vector.load %arg2[%c288, %c0_115] : memref<640x128xbf16, #tpu.memory_space<vmem>>, vector<64x32xbf16>
    %cst_116 = arith.constant dense<0.000000e+00> : vector<16x32xf32>
    %267 = tpu.matmul %265, %266, %cst_116 {dimension_numbers = #tpu.dot_dimension_numbers<[1], [0], [0], [1], [0, 0, 1, 1], [], []>} : vector<16x64xbf16>, vector<64x32xbf16>, vector<16x32xf32> -> vector<16x32xf32>
    %c7 = arith.constant 7 : index
    %c0_117 = arith.constant 0 : index
    %268 = vector.load %arg3[%c7, %c0_117] : memref<56x128xf32, #tpu.memory_space<vmem>>, vector<1x32xf32>
    %269 = vector.broadcast %268 : vector<1x32xf32> to vector<16x32xf32>
    %270 = arith.addf %267, %269 : vector<16x32xf32>
    %271 = arith.addf %245, %270 : vector<16x32xf32>
    %c8_118 = arith.constant 8 : index
    %c0_119 = arith.constant 0 : index
    %272 = vector.load %arg3[%c8_118, %c0_119] : memref<56x128xf32, #tpu.memory_space<vmem>>, vector<1x32xf32>
    %c9 = arith.constant 9 : index
    %c0_120 = arith.constant 0 : index
    %273 = vector.load %arg3[%c9, %c0_120] : memref<56x128xf32, #tpu.memory_space<vmem>>, vector<1x32xf32>
    %cst_121 = arith.constant dense<0.000000e+00> : vector<16xf32>
    %274 = vector.multi_reduction <add>, %271, %cst_121 [1] : vector<16x32xf32> to vector<16xf32>
    %275 = vector.shape_cast %274 : vector<16xf32> to vector<16x1xf32>
    %cst_122 = arith.constant 3.200000e+01 : f32
    %276 = vector.broadcast %cst_122 : f32 to vector<16x1xf32>
    %277 = arith.divf %275, %276 : vector<16x1xf32>
    %278 = vector.broadcast %277 : vector<16x1xf32> to vector<16x32xf32>
    %279 = arith.subf %271, %278 : vector<16x32xf32>
    %280 = arith.mulf %279, %279 : vector<16x32xf32>
    %cst_123 = arith.constant dense<0.000000e+00> : vector<16xf32>
    %281 = vector.multi_reduction <add>, %280, %cst_123 [1] : vector<16x32xf32> to vector<16xf32>
    %282 = vector.shape_cast %281 : vector<16xf32> to vector<16x1xf32>
    %cst_124 = arith.constant 3.200000e+01 : f32
    %283 = vector.broadcast %cst_124 : f32 to vector<16x1xf32>
    %284 = arith.divf %282, %283 : vector<16x1xf32>
    %285 = vector.broadcast %277 : vector<16x1xf32> to vector<16x32xf32>
    %286 = arith.subf %271, %285 : vector<16x32xf32>
    %cst_125 = arith.constant 9.99999996E-13 : f32
    %287 = vector.broadcast %cst_125 : f32 to vector<16x1xf32>
    %288 = arith.addf %284, %287 : vector<16x1xf32>
    %289 = math.rsqrt %288 : vector<16x1xf32>
    %290 = vector.broadcast %289 : vector<16x1xf32> to vector<16x32xf32>
    %291 = arith.mulf %286, %290 : vector<16x32xf32>
    %292 = vector.broadcast %272 : vector<1x32xf32> to vector<16x32xf32>
    %293 = arith.mulf %291, %292 : vector<16x32xf32>
    %294 = vector.broadcast %273 : vector<1x32xf32> to vector<16x32xf32>
    %295 = arith.addf %293, %294 : vector<16x32xf32>
    %296 = arith.truncf %295 : vector<16x32xf32> to vector<16x32xbf16>
    %cst_126 = arith.constant 0.000000e+00 : f32
    %297 = vector.broadcast %cst_126 : f32 to vector<16x32xf32>
    %c352 = arith.constant 352 : index
    %c0_127 = arith.constant 0 : index
    %298 = vector.load %arg2[%c352, %c0_127] : memref<640x128xbf16, #tpu.memory_space<vmem>>, vector<32x8xbf16>
    %cst_128 = arith.constant dense<0.000000e+00> : vector<16x8xf32>
    %299 = tpu.matmul %296, %298, %cst_128 {dimension_numbers = #tpu.dot_dimension_numbers<[1], [0], [0], [1], [0, 0, 1, 1], [], []>} : vector<16x32xbf16>, vector<32x8xbf16>, vector<16x8xf32> -> vector<16x8xf32>
    %c16_129 = arith.constant 16 : index
    %c0_130 = arith.constant 0 : index
    %300 = vector.load %arg3[%c16_129, %c0_130] : memref<56x128xf32, #tpu.memory_space<vmem>>, vector<1x8xf32>
    %301 = vector.broadcast %300 : vector<1x8xf32> to vector<16x8xf32>
    %302 = arith.addf %299, %301 : vector<16x8xf32>
    %c384 = arith.constant 384 : index
    %c0_131 = arith.constant 0 : index
    %303 = vector.load %arg2[%c384, %c0_131] : memref<640x128xbf16, #tpu.memory_space<vmem>>, vector<32x8xbf16>
    %cst_132 = arith.constant dense<0.000000e+00> : vector<16x8xf32>
    %304 = tpu.matmul %296, %303, %cst_132 {dimension_numbers = #tpu.dot_dimension_numbers<[1], [0], [0], [1], [0, 0, 1, 1], [], []>} : vector<16x32xbf16>, vector<32x8xbf16>, vector<16x8xf32> -> vector<16x8xf32>
    %c17 = arith.constant 17 : index
    %c0_133 = arith.constant 0 : index
    %305 = vector.load %arg3[%c17, %c0_133] : memref<56x128xf32, #tpu.memory_space<vmem>>, vector<1x8xf32>
    %306 = vector.broadcast %305 : vector<1x8xf32> to vector<16x8xf32>
    %307 = arith.addf %304, %306 : vector<16x8xf32>
    %c416 = arith.constant 416 : index
    %c0_134 = arith.constant 0 : index
    %308 = vector.load %arg2[%c416, %c0_134] : memref<640x128xbf16, #tpu.memory_space<vmem>>, vector<32x8xbf16>
    %cst_135 = arith.constant dense<0.000000e+00> : vector<16x8xf32>
    %309 = tpu.matmul %296, %308, %cst_135 {dimension_numbers = #tpu.dot_dimension_numbers<[1], [0], [0], [1], [0, 0, 1, 1], [], []>} : vector<16x32xbf16>, vector<32x8xbf16>, vector<16x8xf32> -> vector<16x8xf32>
    %c18 = arith.constant 18 : index
    %c0_136 = arith.constant 0 : index
    %310 = vector.load %arg3[%c18, %c0_136] : memref<56x128xf32, #tpu.memory_space<vmem>>, vector<1x8xf32>
    %311 = vector.broadcast %310 : vector<1x8xf32> to vector<16x8xf32>
    %312 = arith.addf %309, %311 : vector<16x8xf32>
    %313 = arith.truncf %302 : vector<16x8xf32> to vector<16x8xbf16>
    %314 = arith.truncf %307 : vector<16x8xf32> to vector<16x8xbf16>
    %cst_137 = arith.constant dense<0.000000e+00> : vector<16x16xf32>
    %315 = tpu.matmul %313, %314, %cst_137 {dimension_numbers = #tpu.dot_dimension_numbers<[1], [1], [0], [0], [0, 0, 1, 0], [], []>} : vector<16x8xbf16>, vector<16x8xbf16>, vector<16x16xf32> -> vector<16x16xf32>
    %cst_138 = arith.constant -1.000000e+09 : f32
    %316 = vector.broadcast %cst_138 : f32 to vector<16x16xf32>
    %317 = arith.select %67, %315, %316 : vector<16x16xi1>, vector<16x16xf32>
    %cst_139 = arith.constant dense<0xFF800000> : vector<16xf32>
    %318 = vector.multi_reduction <maximumf>, %317, %cst_139 [1] : vector<16x16xf32> to vector<16xf32>
    %319 = vector.shape_cast %318 : vector<16xf32> to vector<16x1xf32>
    %320 = vector.broadcast %319 : vector<16x1xf32> to vector<16x16xf32>
    %321 = arith.subf %317, %320 : vector<16x16xf32>
    %322 = math.exp %321 : vector<16x16xf32>
    %cst_140 = arith.constant dense<0.000000e+00> : vector<16xf32>
    %323 = vector.multi_reduction <add>, %322, %cst_140 [1] : vector<16x16xf32> to vector<16xf32>
    %324 = vector.shape_cast %323 : vector<16xf32> to vector<16x1xf32>
    %325 = tpu.reciprocal %324 {approx = true} : vector<16x1xf32> -> vector<16x1xf32>
    %326 = vector.broadcast %325 : vector<16x1xf32> to vector<16x16xf32>
    %327 = arith.mulf %322, %326 : vector<16x16xf32>
    %328 = arith.truncf %327 : vector<16x16xf32> to vector<16x16xbf16>
    %329 = arith.truncf %312 : vector<16x8xf32> to vector<16x8xbf16>
    %cst_141 = arith.constant dense<0.000000e+00> : vector<16x8xf32>
    %330 = tpu.matmul %328, %329, %cst_141 {dimension_numbers = #tpu.dot_dimension_numbers<[1], [0], [0], [1], [0, 0, 1, 1], [], []>} : vector<16x16xbf16>, vector<16x8xbf16>, vector<16x8xf32> -> vector<16x8xf32>
    %c448 = arith.constant 448 : index
    %c0_142 = arith.constant 0 : index
    %331 = vector.load %arg2[%c448, %c0_142] : memref<640x128xbf16, #tpu.memory_space<vmem>>, vector<8x32xbf16>
    %332 = arith.truncf %330 : vector<16x8xf32> to vector<16x8xbf16>
    %cst_143 = arith.constant dense<0.000000e+00> : vector<16x32xf32>
    %333 = tpu.matmul %332, %331, %cst_143 {dimension_numbers = #tpu.dot_dimension_numbers<[1], [0], [0], [1], [0, 0, 1, 1], [], []>} : vector<16x8xbf16>, vector<8x32xbf16>, vector<16x32xf32> -> vector<16x32xf32>
    %334 = arith.addf %297, %333 : vector<16x32xf32>
    %c352_144 = arith.constant 352 : index
    %c8_145 = arith.constant 8 : index
    %335 = vector.load %arg2[%c352_144, %c8_145] : memref<640x128xbf16, #tpu.memory_space<vmem>>, vector<32x8xbf16>
    %cst_146 = arith.constant dense<0.000000e+00> : vector<16x8xf32>
    %336 = tpu.matmul %296, %335, %cst_146 {dimension_numbers = #tpu.dot_dimension_numbers<[1], [0], [0], [1], [0, 0, 1, 1], [], []>} : vector<16x32xbf16>, vector<32x8xbf16>, vector<16x8xf32> -> vector<16x8xf32>
    %c16_147 = arith.constant 16 : index
    %c8_148 = arith.constant 8 : index
    %337 = vector.load %arg3[%c16_147, %c8_148] : memref<56x128xf32, #tpu.memory_space<vmem>>, vector<1x8xf32>
    %338 = vector.broadcast %337 : vector<1x8xf32> to vector<16x8xf32>
    %339 = arith.addf %336, %338 : vector<16x8xf32>
    %c384_149 = arith.constant 384 : index
    %c8_150 = arith.constant 8 : index
    %340 = vector.load %arg2[%c384_149, %c8_150] : memref<640x128xbf16, #tpu.memory_space<vmem>>, vector<32x8xbf16>
    %cst_151 = arith.constant dense<0.000000e+00> : vector<16x8xf32>
    %341 = tpu.matmul %296, %340, %cst_151 {dimension_numbers = #tpu.dot_dimension_numbers<[1], [0], [0], [1], [0, 0, 1, 1], [], []>} : vector<16x32xbf16>, vector<32x8xbf16>, vector<16x8xf32> -> vector<16x8xf32>
    %c17_152 = arith.constant 17 : index
    %c8_153 = arith.constant 8 : index
    %342 = vector.load %arg3[%c17_152, %c8_153] : memref<56x128xf32, #tpu.memory_space<vmem>>, vector<1x8xf32>
    %343 = vector.broadcast %342 : vector<1x8xf32> to vector<16x8xf32>
    %344 = arith.addf %341, %343 : vector<16x8xf32>
    %c416_154 = arith.constant 416 : index
    %c8_155 = arith.constant 8 : index
    %345 = vector.load %arg2[%c416_154, %c8_155] : memref<640x128xbf16, #tpu.memory_space<vmem>>, vector<32x8xbf16>
    %cst_156 = arith.constant dense<0.000000e+00> : vector<16x8xf32>
    %346 = tpu.matmul %296, %345, %cst_156 {dimension_numbers = #tpu.dot_dimension_numbers<[1], [0], [0], [1], [0, 0, 1, 1], [], []>} : vector<16x32xbf16>, vector<32x8xbf16>, vector<16x8xf32> -> vector<16x8xf32>
    %c18_157 = arith.constant 18 : index
    %c8_158 = arith.constant 8 : index
    %347 = vector.load %arg3[%c18_157, %c8_158] : memref<56x128xf32, #tpu.memory_space<vmem>>, vector<1x8xf32>
    %348 = vector.broadcast %347 : vector<1x8xf32> to vector<16x8xf32>
    %349 = arith.addf %346, %348 : vector<16x8xf32>
    %350 = arith.truncf %339 : vector<16x8xf32> to vector<16x8xbf16>
    %351 = arith.truncf %344 : vector<16x8xf32> to vector<16x8xbf16>
    %cst_159 = arith.constant dense<0.000000e+00> : vector<16x16xf32>
    %352 = tpu.matmul %350, %351, %cst_159 {dimension_numbers = #tpu.dot_dimension_numbers<[1], [1], [0], [0], [0, 0, 1, 0], [], []>} : vector<16x8xbf16>, vector<16x8xbf16>, vector<16x16xf32> -> vector<16x16xf32>
    %cst_160 = arith.constant -1.000000e+09 : f32
    %353 = vector.broadcast %cst_160 : f32 to vector<16x16xf32>
    %354 = arith.select %67, %352, %353 : vector<16x16xi1>, vector<16x16xf32>
    %cst_161 = arith.constant dense<0xFF800000> : vector<16xf32>
    %355 = vector.multi_reduction <maximumf>, %354, %cst_161 [1] : vector<16x16xf32> to vector<16xf32>
    %356 = vector.shape_cast %355 : vector<16xf32> to vector<16x1xf32>
    %357 = vector.broadcast %356 : vector<16x1xf32> to vector<16x16xf32>
    %358 = arith.subf %354, %357 : vector<16x16xf32>
    %359 = math.exp %358 : vector<16x16xf32>
    %cst_162 = arith.constant dense<0.000000e+00> : vector<16xf32>
    %360 = vector.multi_reduction <add>, %359, %cst_162 [1] : vector<16x16xf32> to vector<16xf32>
    %361 = vector.shape_cast %360 : vector<16xf32> to vector<16x1xf32>
    %362 = tpu.reciprocal %361 {approx = true} : vector<16x1xf32> -> vector<16x1xf32>
    %363 = vector.broadcast %362 : vector<16x1xf32> to vector<16x16xf32>
    %364 = arith.mulf %359, %363 : vector<16x16xf32>
    %365 = arith.truncf %364 : vector<16x16xf32> to vector<16x16xbf16>
    %366 = arith.truncf %349 : vector<16x8xf32> to vector<16x8xbf16>
    %cst_163 = arith.constant dense<0.000000e+00> : vector<16x8xf32>
    %367 = tpu.matmul %365, %366, %cst_163 {dimension_numbers = #tpu.dot_dimension_numbers<[1], [0], [0], [1], [0, 0, 1, 1], [], []>} : vector<16x16xbf16>, vector<16x8xbf16>, vector<16x8xf32> -> vector<16x8xf32>
    %c456 = arith.constant 456 : index
    %c0_164 = arith.constant 0 : index
    %368 = vector.load %arg2[%c456, %c0_164] : memref<640x128xbf16, #tpu.memory_space<vmem>>, vector<8x32xbf16>
    %369 = arith.truncf %367 : vector<16x8xf32> to vector<16x8xbf16>
    %cst_165 = arith.constant dense<0.000000e+00> : vector<16x32xf32>
    %370 = tpu.matmul %369, %368, %cst_165 {dimension_numbers = #tpu.dot_dimension_numbers<[1], [0], [0], [1], [0, 0, 1, 1], [], []>} : vector<16x8xbf16>, vector<8x32xbf16>, vector<16x32xf32> -> vector<16x32xf32>
    %371 = arith.addf %334, %370 : vector<16x32xf32>
    %c352_166 = arith.constant 352 : index
    %c16_167 = arith.constant 16 : index
    %372 = vector.load %arg2[%c352_166, %c16_167] : memref<640x128xbf16, #tpu.memory_space<vmem>>, vector<32x8xbf16>
    %cst_168 = arith.constant dense<0.000000e+00> : vector<16x8xf32>
    %373 = tpu.matmul %296, %372, %cst_168 {dimension_numbers = #tpu.dot_dimension_numbers<[1], [0], [0], [1], [0, 0, 1, 1], [], []>} : vector<16x32xbf16>, vector<32x8xbf16>, vector<16x8xf32> -> vector<16x8xf32>
    %c16_169 = arith.constant 16 : index
    %c16_170 = arith.constant 16 : index
    %374 = vector.load %arg3[%c16_169, %c16_170] : memref<56x128xf32, #tpu.memory_space<vmem>>, vector<1x8xf32>
    %375 = vector.broadcast %374 : vector<1x8xf32> to vector<16x8xf32>
    %376 = arith.addf %373, %375 : vector<16x8xf32>
    %c384_171 = arith.constant 384 : index
    %c16_172 = arith.constant 16 : index
    %377 = vector.load %arg2[%c384_171, %c16_172] : memref<640x128xbf16, #tpu.memory_space<vmem>>, vector<32x8xbf16>
    %cst_173 = arith.constant dense<0.000000e+00> : vector<16x8xf32>
    %378 = tpu.matmul %296, %377, %cst_173 {dimension_numbers = #tpu.dot_dimension_numbers<[1], [0], [0], [1], [0, 0, 1, 1], [], []>} : vector<16x32xbf16>, vector<32x8xbf16>, vector<16x8xf32> -> vector<16x8xf32>
    %c17_174 = arith.constant 17 : index
    %c16_175 = arith.constant 16 : index
    %379 = vector.load %arg3[%c17_174, %c16_175] : memref<56x128xf32, #tpu.memory_space<vmem>>, vector<1x8xf32>
    %380 = vector.broadcast %379 : vector<1x8xf32> to vector<16x8xf32>
    %381 = arith.addf %378, %380 : vector<16x8xf32>
    %c416_176 = arith.constant 416 : index
    %c16_177 = arith.constant 16 : index
    %382 = vector.load %arg2[%c416_176, %c16_177] : memref<640x128xbf16, #tpu.memory_space<vmem>>, vector<32x8xbf16>
    %cst_178 = arith.constant dense<0.000000e+00> : vector<16x8xf32>
    %383 = tpu.matmul %296, %382, %cst_178 {dimension_numbers = #tpu.dot_dimension_numbers<[1], [0], [0], [1], [0, 0, 1, 1], [], []>} : vector<16x32xbf16>, vector<32x8xbf16>, vector<16x8xf32> -> vector<16x8xf32>
    %c18_179 = arith.constant 18 : index
    %c16_180 = arith.constant 16 : index
    %384 = vector.load %arg3[%c18_179, %c16_180] : memref<56x128xf32, #tpu.memory_space<vmem>>, vector<1x8xf32>
    %385 = vector.broadcast %384 : vector<1x8xf32> to vector<16x8xf32>
    %386 = arith.addf %383, %385 : vector<16x8xf32>
    %387 = arith.truncf %376 : vector<16x8xf32> to vector<16x8xbf16>
    %388 = arith.truncf %381 : vector<16x8xf32> to vector<16x8xbf16>
    %cst_181 = arith.constant dense<0.000000e+00> : vector<16x16xf32>
    %389 = tpu.matmul %387, %388, %cst_181 {dimension_numbers = #tpu.dot_dimension_numbers<[1], [1], [0], [0], [0, 0, 1, 0], [], []>} : vector<16x8xbf16>, vector<16x8xbf16>, vector<16x16xf32> -> vector<16x16xf32>
    %cst_182 = arith.constant -1.000000e+09 : f32
    %390 = vector.broadcast %cst_182 : f32 to vector<16x16xf32>
    %391 = arith.select %67, %389, %390 : vector<16x16xi1>, vector<16x16xf32>
    %cst_183 = arith.constant dense<0xFF800000> : vector<16xf32>
    %392 = vector.multi_reduction <maximumf>, %391, %cst_183 [1] : vector<16x16xf32> to vector<16xf32>
    %393 = vector.shape_cast %392 : vector<16xf32> to vector<16x1xf32>
    %394 = vector.broadcast %393 : vector<16x1xf32> to vector<16x16xf32>
    %395 = arith.subf %391, %394 : vector<16x16xf32>
    %396 = math.exp %395 : vector<16x16xf32>
    %cst_184 = arith.constant dense<0.000000e+00> : vector<16xf32>
    %397 = vector.multi_reduction <add>, %396, %cst_184 [1] : vector<16x16xf32> to vector<16xf32>
    %398 = vector.shape_cast %397 : vector<16xf32> to vector<16x1xf32>
    %399 = tpu.reciprocal %398 {approx = true} : vector<16x1xf32> -> vector<16x1xf32>
    %400 = vector.broadcast %399 : vector<16x1xf32> to vector<16x16xf32>
    %401 = arith.mulf %396, %400 : vector<16x16xf32>
    %402 = arith.truncf %401 : vector<16x16xf32> to vector<16x16xbf16>
    %403 = arith.truncf %386 : vector<16x8xf32> to vector<16x8xbf16>
    %cst_185 = arith.constant dense<0.000000e+00> : vector<16x8xf32>
    %404 = tpu.matmul %402, %403, %cst_185 {dimension_numbers = #tpu.dot_dimension_numbers<[1], [0], [0], [1], [0, 0, 1, 1], [], []>} : vector<16x16xbf16>, vector<16x8xbf16>, vector<16x8xf32> -> vector<16x8xf32>
    %c464 = arith.constant 464 : index
    %c0_186 = arith.constant 0 : index
    %405 = vector.load %arg2[%c464, %c0_186] : memref<640x128xbf16, #tpu.memory_space<vmem>>, vector<8x32xbf16>
    %406 = arith.truncf %404 : vector<16x8xf32> to vector<16x8xbf16>
    %cst_187 = arith.constant dense<0.000000e+00> : vector<16x32xf32>
    %407 = tpu.matmul %406, %405, %cst_187 {dimension_numbers = #tpu.dot_dimension_numbers<[1], [0], [0], [1], [0, 0, 1, 1], [], []>} : vector<16x8xbf16>, vector<8x32xbf16>, vector<16x32xf32> -> vector<16x32xf32>
    %408 = arith.addf %371, %407 : vector<16x32xf32>
    %c352_188 = arith.constant 352 : index
    %c24_189 = arith.constant 24 : index
    %409 = vector.load %arg2[%c352_188, %c24_189] : memref<640x128xbf16, #tpu.memory_space<vmem>>, vector<32x8xbf16>
    %cst_190 = arith.constant dense<0.000000e+00> : vector<16x8xf32>
    %410 = tpu.matmul %296, %409, %cst_190 {dimension_numbers = #tpu.dot_dimension_numbers<[1], [0], [0], [1], [0, 0, 1, 1], [], []>} : vector<16x32xbf16>, vector<32x8xbf16>, vector<16x8xf32> -> vector<16x8xf32>
    %c16_191 = arith.constant 16 : index
    %c24_192 = arith.constant 24 : index
    %411 = vector.load %arg3[%c16_191, %c24_192] : memref<56x128xf32, #tpu.memory_space<vmem>>, vector<1x8xf32>
    %412 = vector.broadcast %411 : vector<1x8xf32> to vector<16x8xf32>
    %413 = arith.addf %410, %412 : vector<16x8xf32>
    %c384_193 = arith.constant 384 : index
    %c24_194 = arith.constant 24 : index
    %414 = vector.load %arg2[%c384_193, %c24_194] : memref<640x128xbf16, #tpu.memory_space<vmem>>, vector<32x8xbf16>
    %cst_195 = arith.constant dense<0.000000e+00> : vector<16x8xf32>
    %415 = tpu.matmul %296, %414, %cst_195 {dimension_numbers = #tpu.dot_dimension_numbers<[1], [0], [0], [1], [0, 0, 1, 1], [], []>} : vector<16x32xbf16>, vector<32x8xbf16>, vector<16x8xf32> -> vector<16x8xf32>
    %c17_196 = arith.constant 17 : index
    %c24_197 = arith.constant 24 : index
    %416 = vector.load %arg3[%c17_196, %c24_197] : memref<56x128xf32, #tpu.memory_space<vmem>>, vector<1x8xf32>
    %417 = vector.broadcast %416 : vector<1x8xf32> to vector<16x8xf32>
    %418 = arith.addf %415, %417 : vector<16x8xf32>
    %c416_198 = arith.constant 416 : index
    %c24_199 = arith.constant 24 : index
    %419 = vector.load %arg2[%c416_198, %c24_199] : memref<640x128xbf16, #tpu.memory_space<vmem>>, vector<32x8xbf16>
    %cst_200 = arith.constant dense<0.000000e+00> : vector<16x8xf32>
    %420 = tpu.matmul %296, %419, %cst_200 {dimension_numbers = #tpu.dot_dimension_numbers<[1], [0], [0], [1], [0, 0, 1, 1], [], []>} : vector<16x32xbf16>, vector<32x8xbf16>, vector<16x8xf32> -> vector<16x8xf32>
    %c18_201 = arith.constant 18 : index
    %c24_202 = arith.constant 24 : index
    %421 = vector.load %arg3[%c18_201, %c24_202] : memref<56x128xf32, #tpu.memory_space<vmem>>, vector<1x8xf32>
    %422 = vector.broadcast %421 : vector<1x8xf32> to vector<16x8xf32>
    %423 = arith.addf %420, %422 : vector<16x8xf32>
    %424 = arith.truncf %413 : vector<16x8xf32> to vector<16x8xbf16>
    %425 = arith.truncf %418 : vector<16x8xf32> to vector<16x8xbf16>
    %cst_203 = arith.constant dense<0.000000e+00> : vector<16x16xf32>
    %426 = tpu.matmul %424, %425, %cst_203 {dimension_numbers = #tpu.dot_dimension_numbers<[1], [1], [0], [0], [0, 0, 1, 0], [], []>} : vector<16x8xbf16>, vector<16x8xbf16>, vector<16x16xf32> -> vector<16x16xf32>
    %cst_204 = arith.constant -1.000000e+09 : f32
    %427 = vector.broadcast %cst_204 : f32 to vector<16x16xf32>
    %428 = arith.select %67, %426, %427 : vector<16x16xi1>, vector<16x16xf32>
    %cst_205 = arith.constant dense<0xFF800000> : vector<16xf32>
    %429 = vector.multi_reduction <maximumf>, %428, %cst_205 [1] : vector<16x16xf32> to vector<16xf32>
    %430 = vector.shape_cast %429 : vector<16xf32> to vector<16x1xf32>
    %431 = vector.broadcast %430 : vector<16x1xf32> to vector<16x16xf32>
    %432 = arith.subf %428, %431 : vector<16x16xf32>
    %433 = math.exp %432 : vector<16x16xf32>
    %cst_206 = arith.constant dense<0.000000e+00> : vector<16xf32>
    %434 = vector.multi_reduction <add>, %433, %cst_206 [1] : vector<16x16xf32> to vector<16xf32>
    %435 = vector.shape_cast %434 : vector<16xf32> to vector<16x1xf32>
    %436 = tpu.reciprocal %435 {approx = true} : vector<16x1xf32> -> vector<16x1xf32>
    %437 = vector.broadcast %436 : vector<16x1xf32> to vector<16x16xf32>
    %438 = arith.mulf %433, %437 : vector<16x16xf32>
    %439 = arith.truncf %438 : vector<16x16xf32> to vector<16x16xbf16>
    %440 = arith.truncf %423 : vector<16x8xf32> to vector<16x8xbf16>
    %cst_207 = arith.constant dense<0.000000e+00> : vector<16x8xf32>
    %441 = tpu.matmul %439, %440, %cst_207 {dimension_numbers = #tpu.dot_dimension_numbers<[1], [0], [0], [1], [0, 0, 1, 1], [], []>} : vector<16x16xbf16>, vector<16x8xbf16>, vector<16x8xf32> -> vector<16x8xf32>
    %c472 = arith.constant 472 : index
    %c0_208 = arith.constant 0 : index
    %442 = vector.load %arg2[%c472, %c0_208] : memref<640x128xbf16, #tpu.memory_space<vmem>>, vector<8x32xbf16>
    %443 = arith.truncf %441 : vector<16x8xf32> to vector<16x8xbf16>
    %cst_209 = arith.constant dense<0.000000e+00> : vector<16x32xf32>
    %444 = tpu.matmul %443, %442, %cst_209 {dimension_numbers = #tpu.dot_dimension_numbers<[1], [0], [0], [1], [0, 0, 1, 1], [], []>} : vector<16x8xbf16>, vector<8x32xbf16>, vector<16x32xf32> -> vector<16x32xf32>
    %445 = arith.addf %408, %444 : vector<16x32xf32>
    %c19 = arith.constant 19 : index
    %c0_210 = arith.constant 0 : index
    %446 = vector.load %arg3[%c19, %c0_210] : memref<56x128xf32, #tpu.memory_space<vmem>>, vector<1x32xf32>
    %447 = vector.broadcast %446 : vector<1x32xf32> to vector<16x32xf32>
    %448 = arith.addf %445, %447 : vector<16x32xf32>
    %449 = arith.addf %295, %448 : vector<16x32xf32>
    %c20 = arith.constant 20 : index
    %c0_211 = arith.constant 0 : index
    %450 = vector.load %arg3[%c20, %c0_211] : memref<56x128xf32, #tpu.memory_space<vmem>>, vector<1x32xf32>
    %c21 = arith.constant 21 : index
    %c0_212 = arith.constant 0 : index
    %451 = vector.load %arg3[%c21, %c0_212] : memref<56x128xf32, #tpu.memory_space<vmem>>, vector<1x32xf32>
    %cst_213 = arith.constant dense<0.000000e+00> : vector<16xf32>
    %452 = vector.multi_reduction <add>, %449, %cst_213 [1] : vector<16x32xf32> to vector<16xf32>
    %453 = vector.shape_cast %452 : vector<16xf32> to vector<16x1xf32>
    %cst_214 = arith.constant 3.200000e+01 : f32
    %454 = vector.broadcast %cst_214 : f32 to vector<16x1xf32>
    %455 = arith.divf %453, %454 : vector<16x1xf32>
    %456 = vector.broadcast %455 : vector<16x1xf32> to vector<16x32xf32>
    %457 = arith.subf %449, %456 : vector<16x32xf32>
    %458 = arith.mulf %457, %457 : vector<16x32xf32>
    %cst_215 = arith.constant dense<0.000000e+00> : vector<16xf32>
    %459 = vector.multi_reduction <add>, %458, %cst_215 [1] : vector<16x32xf32> to vector<16xf32>
    %460 = vector.shape_cast %459 : vector<16xf32> to vector<16x1xf32>
    %cst_216 = arith.constant 3.200000e+01 : f32
    %461 = vector.broadcast %cst_216 : f32 to vector<16x1xf32>
    %462 = arith.divf %460, %461 : vector<16x1xf32>
    %463 = vector.broadcast %455 : vector<16x1xf32> to vector<16x32xf32>
    %464 = arith.subf %449, %463 : vector<16x32xf32>
    %cst_217 = arith.constant 9.99999996E-13 : f32
    %465 = vector.broadcast %cst_217 : f32 to vector<16x1xf32>
    %466 = arith.addf %462, %465 : vector<16x1xf32>
    %467 = math.rsqrt %466 : vector<16x1xf32>
    %468 = vector.broadcast %467 : vector<16x1xf32> to vector<16x32xf32>
    %469 = arith.mulf %464, %468 : vector<16x32xf32>
    %470 = vector.broadcast %450 : vector<1x32xf32> to vector<16x32xf32>
    %471 = arith.mulf %469, %470 : vector<16x32xf32>
    %472 = vector.broadcast %451 : vector<1x32xf32> to vector<16x32xf32>
    %473 = arith.addf %471, %472 : vector<16x32xf32>
    %474 = arith.truncf %473 : vector<16x32xf32> to vector<16x32xbf16>
    %c480 = arith.constant 480 : index
    %c0_218 = arith.constant 0 : index
    %475 = vector.load %arg2[%c480, %c0_218] : memref<640x128xbf16, #tpu.memory_space<vmem>>, vector<32x64xbf16>
    %cst_219 = arith.constant dense<0.000000e+00> : vector<16x64xf32>
    %476 = tpu.matmul %474, %475, %cst_219 {dimension_numbers = #tpu.dot_dimension_numbers<[1], [0], [0], [1], [0, 0, 1, 1], [], []>} : vector<16x32xbf16>, vector<32x64xbf16>, vector<16x64xf32> -> vector<16x64xf32>
    %c22 = arith.constant 22 : index
    %c0_220 = arith.constant 0 : index
    %477 = vector.load %arg3[%c22, %c0_220] : memref<56x128xf32, #tpu.memory_space<vmem>>, vector<1x64xf32>
    %478 = vector.broadcast %477 : vector<1x64xf32> to vector<16x64xf32>
    %479 = arith.addf %476, %478 : vector<16x64xf32>
    %480 = arith.mulf %479, %479 : vector<16x64xf32>
    %481 = arith.mulf %479, %480 : vector<16x64xf32>
    %cst_221 = arith.constant 4.471500e-02 : f32
    %482 = vector.broadcast %cst_221 : f32 to vector<16x64xf32>
    %483 = arith.mulf %482, %481 : vector<16x64xf32>
    %484 = arith.addf %479, %483 : vector<16x64xf32>
    %cst_222 = arith.constant 0.797884583 : f32
    %485 = vector.broadcast %cst_222 : f32 to vector<16x64xf32>
    %486 = arith.mulf %485, %484 : vector<16x64xf32>
    %487 = math.tanh %486 : vector<16x64xf32>
    %cst_223 = arith.constant 1.000000e+00 : f32
    %488 = vector.broadcast %cst_223 : f32 to vector<16x64xf32>
    %489 = arith.addf %488, %487 : vector<16x64xf32>
    %cst_224 = arith.constant 5.000000e-01 : f32
    %490 = vector.broadcast %cst_224 : f32 to vector<16x64xf32>
    %491 = arith.mulf %490, %489 : vector<16x64xf32>
    %492 = arith.mulf %479, %491 : vector<16x64xf32>
    %493 = arith.truncf %492 : vector<16x64xf32> to vector<16x64xbf16>
    %c512 = arith.constant 512 : index
    %c0_225 = arith.constant 0 : index
    %494 = vector.load %arg2[%c512, %c0_225] : memref<640x128xbf16, #tpu.memory_space<vmem>>, vector<64x32xbf16>
    %cst_226 = arith.constant dense<0.000000e+00> : vector<16x32xf32>
    %495 = tpu.matmul %493, %494, %cst_226 {dimension_numbers = #tpu.dot_dimension_numbers<[1], [0], [0], [1], [0, 0, 1, 1], [], []>} : vector<16x64xbf16>, vector<64x32xbf16>, vector<16x32xf32> -> vector<16x32xf32>
    %c23 = arith.constant 23 : index
    %c0_227 = arith.constant 0 : index
    %496 = vector.load %arg3[%c23, %c0_227] : memref<56x128xf32, #tpu.memory_space<vmem>>, vector<1x32xf32>
    %497 = vector.broadcast %496 : vector<1x32xf32> to vector<16x32xf32>
    %498 = arith.addf %495, %497 : vector<16x32xf32>
    %499 = arith.addf %473, %498 : vector<16x32xf32>
    %c24_228 = arith.constant 24 : index
    %c0_229 = arith.constant 0 : index
    %500 = vector.load %arg3[%c24_228, %c0_229] : memref<56x128xf32, #tpu.memory_space<vmem>>, vector<1x32xf32>
    %c25 = arith.constant 25 : index
    %c0_230 = arith.constant 0 : index
    %501 = vector.load %arg3[%c25, %c0_230] : memref<56x128xf32, #tpu.memory_space<vmem>>, vector<1x32xf32>
    %cst_231 = arith.constant dense<0.000000e+00> : vector<16xf32>
    %502 = vector.multi_reduction <add>, %499, %cst_231 [1] : vector<16x32xf32> to vector<16xf32>
    %503 = vector.shape_cast %502 : vector<16xf32> to vector<16x1xf32>
    %cst_232 = arith.constant 3.200000e+01 : f32
    %504 = vector.broadcast %cst_232 : f32 to vector<16x1xf32>
    %505 = arith.divf %503, %504 : vector<16x1xf32>
    %506 = vector.broadcast %505 : vector<16x1xf32> to vector<16x32xf32>
    %507 = arith.subf %499, %506 : vector<16x32xf32>
    %508 = arith.mulf %507, %507 : vector<16x32xf32>
    %cst_233 = arith.constant dense<0.000000e+00> : vector<16xf32>
    %509 = vector.multi_reduction <add>, %508, %cst_233 [1] : vector<16x32xf32> to vector<16xf32>
    %510 = vector.shape_cast %509 : vector<16xf32> to vector<16x1xf32>
    %cst_234 = arith.constant 3.200000e+01 : f32
    %511 = vector.broadcast %cst_234 : f32 to vector<16x1xf32>
    %512 = arith.divf %510, %511 : vector<16x1xf32>
    %513 = vector.broadcast %505 : vector<16x1xf32> to vector<16x32xf32>
    %514 = arith.subf %499, %513 : vector<16x32xf32>
    %cst_235 = arith.constant 9.99999996E-13 : f32
    %515 = vector.broadcast %cst_235 : f32 to vector<16x1xf32>
    %516 = arith.addf %512, %515 : vector<16x1xf32>
    %517 = math.rsqrt %516 : vector<16x1xf32>
    %518 = vector.broadcast %517 : vector<16x1xf32> to vector<16x32xf32>
    %519 = arith.mulf %514, %518 : vector<16x32xf32>
    %520 = vector.broadcast %500 : vector<1x32xf32> to vector<16x32xf32>
    %521 = arith.mulf %519, %520 : vector<16x32xf32>
    %522 = vector.broadcast %501 : vector<1x32xf32> to vector<16x32xf32>
    %523 = arith.addf %521, %522 : vector<16x32xf32>
    %524 = vector.extract_strided_slice %523 {offsets = [0, 0], sizes = [1, 32], strides = [1, 1]} : vector<16x32xf32> to vector<1x32xf32>
    %525 = vector.extract_strided_slice %523 {offsets = [8, 0], sizes = [1, 32], strides = [1, 1]} : vector<16x32xf32> to vector<1x32xf32>
    %526 = tpu.concatenate %524, %525 in 0 : vector<1x32xf32>, vector<1x32xf32> -> vector<2x32xf32>
    %c576 = arith.constant 576 : index
    %c0_236 = arith.constant 0 : index
    %527 = vector.load %arg2[%c576, %c0_236] : memref<640x128xbf16, #tpu.memory_space<vmem>>, vector<32x32xbf16>
    %c608 = arith.constant 608 : index
    %c0_237 = arith.constant 0 : index
    %528 = vector.load %arg2[%c608, %c0_237] : memref<640x128xbf16, #tpu.memory_space<vmem>>, vector<32x128xbf16>
    %529 = arith.truncf %526 : vector<2x32xf32> to vector<2x32xbf16>
    %cst_238 = arith.constant dense<0.000000e+00> : vector<2x32xf32>
    %530 = tpu.matmul %529, %527, %cst_238 {dimension_numbers = #tpu.dot_dimension_numbers<[1], [0], [0], [1], [0, 0, 1, 1], [], []>} : vector<2x32xbf16>, vector<32x32xbf16>, vector<2x32xf32> -> vector<2x32xf32>
    %c50 = arith.constant 50 : index
    %c0_239 = arith.constant 0 : index
    %531 = vector.load %arg3[%c50, %c0_239] : memref<56x128xf32, #tpu.memory_space<vmem>>, vector<1x32xf32>
    %532 = vector.broadcast %531 : vector<1x32xf32> to vector<2x32xf32>
    %533 = arith.addf %530, %532 : vector<2x32xf32>
    %534 = math.tanh %533 : vector<2x32xf32>
    %535 = arith.truncf %534 : vector<2x32xf32> to vector<2x32xbf16>
    %cst_240 = arith.constant dense<0.000000e+00> : vector<2x128xf32>
    %536 = tpu.matmul %535, %528, %cst_240 {dimension_numbers = #tpu.dot_dimension_numbers<[1], [0], [0], [1], [0, 0, 1, 1], [], []>} : vector<2x32xbf16>, vector<32x128xbf16>, vector<2x128xf32> -> vector<2x128xf32>
    %c51 = arith.constant 51 : index
    %c0_241 = arith.constant 0 : index
    %537 = vector.load %arg3[%c51, %c0_241] : memref<56x128xf32, #tpu.memory_space<vmem>>, vector<1x128xf32>
    %538 = vector.broadcast %537 : vector<1x128xf32> to vector<2x128xf32>
    %539 = arith.addf %536, %538 : vector<2x128xf32>
    %c0_242 = arith.constant 0 : index
    %c0_243 = arith.constant 0 : index
    %540 = vector.load %arg4[%c0_242, %c0_243] : memref<2x128xf32, #tpu.memory_space<vmem>>, vector<2x128xf32>
    tpu.vector_store %arg4[%c0_242, %c0_243], %539 {strides = array<i32>} : memref<2x128xf32, #tpu.memory_space<vmem>>, vector<2x128xf32>,
    return
  }
}

</mosaic_0001>

<llo_original>
// kernel: forward.1
$region0: #{forward.1}
  #allocation0 [shape = 'u32[]', space=smem, size = 0x4, offset = 0x4, fixed_abs, tag = 'smem constant byte address 0x4 - core index']
  #allocation1 [shape = 'u32[144,128]{1,0:T(1,128)}', space=vmem, size = 0x12000, scoped, tag = 'internal scratch']
  %s0 = inlined_call_operand.vmem [shape: s32[16,1], index: 0, kind: input, shape index: {}]
  %s1 = inlined_call_operand.vmem [shape: s32[1,16], index: 1, kind: input, shape index: {}]
  %s2 = inlined_call_operand.hbm [shape: bf16[640,128], index: 2, kind: input, shape index: {}]
  %s3 = inlined_call_operand.hbm [shape: f32[56,128], index: 3, kind: input, shape index: {}]
  %s4 = inlined_call_operand.hbm [shape: f32[2,128], index: 4, kind: output, shape index: {}]
  %s5 = sld [smem:[#allocation0]]
  $region34: #{forward.1} parent=0
    _
  %s7 = ssub.s32 1, %s5
  %s8 = scalar_select 0, %s7, %s5
  $region1: #{forward.1} parent=0
    #allocation2 [shape = 'u8[163840]{0}', space=vmem, size = 0x28000, scoped, tag = 'input window, operand 2, single buffered']
    #allocation3 [shape = 's32[1]{0}', space=sflag, size = 0x4, scoped, tag = 'scoped memory for forward.1']
    #allocation4 [shape = 's32[1]{0}', space=sflag, size = 0x4, scoped, tag = 'scoped memory for forward.1']
    #allocation5 [shape = 'u8[28672]{0}', space=vmem, size = 0x7000, scoped, tag = 'input window, operand 3, single buffered']
    #allocation6 [shape = 's32[1]{0}', space=sflag, size = 0x4, scoped, tag = 'scoped memory for forward.1']
    #allocation7 [shape = 'u8[1024]{0}', space=vmem, size = 0x400, scoped, tag = 'output window, operand 0, single buffered']
    %9 = vsyncpa [#allocation3], 0
    %10 = vsyncpa [#allocation6], 0
    %11 = vsyncpa [#allocation4], 0
    // Predicated region
    $region2: #{forward.1} parent=1 // pred_check
      _
    $region3: #{forward.1} parent=1 // pred_check_branch
      %13 = sbr.rel (0) target = $region5
    $region4: #{forward.1} parent=1 // pred_region
      _
    $region5: #{forward.1} parent=1 // pred_fallthru
      _
    // Predicated region
    $region6: #{forward.1} parent=1 // pred_check
      _
    $region7: #{forward.1} parent=1 // pred_check_branch
      %15 = sbr.rel (0) target = $region9
    $region8: #{forward.1} parent=1 // pred_region
      _
    $region9: #{forward.1} parent=1 // pred_fallthru
      _
    // Predicated region
    $region10: #{forward.1} parent=1 // pred_check
      _
    $region11: #{forward.1} parent=1 // pred_check_branch
      %17 = sbr.rel (0) target = $region13
    $region12: #{forward.1} parent=1 // pred_region
      %s19 = ssub.s32 5120, 5120
      %20 = vsyncadd [#allocation3], %s19
      %s21 = sshll.u32 [#allocation2], 4
      %s22 = int_to_ptr.vmem [resolvable:$true] %s21
      %27 = dma.hbm_to_vmem [thread:$0]  %s2, 5120, %s22, [#allocation3], 64, 64, 4
    $region13: #{forward.1} parent=1 // pred_fallthru
      _
    // Predicated region
    $region14: #{forward.1} parent=1 // pred_check
      _
    $region15: #{forward.1} parent=1 // pred_check_branch
      %29 = sbr.rel (0) target = $region17
    $region16: #{forward.1} parent=1 // pred_region
      %s31 = ssub.s32 896, 896
      %32 = vsyncadd [#allocation6], %s31
      %s33 = sshll.u32 [#allocation5], 4
      %s34 = int_to_ptr.vmem [resolvable:$true] %s33
      %39 = dma.hbm_to_vmem [thread:$0]  %s3, 896, %s34, [#allocation6], 128, 128, 8
    $region17: #{forward.1} parent=1 // pred_fallthru
      _
    // Predicated region
    $region18: #{forward.1} parent=1 // pred_check
      _
    $region19: #{forward.1} parent=1 // pred_check_branch
      %41 = sbr.rel (0) target = $region21
    $region20: #{forward.1} parent=1 // pred_region
      %42 = dma.done [#allocation3], 5120
    $region21: #{forward.1} parent=1 // pred_fallthru
      _
    // Predicated region
    $region22: #{forward.1} parent=1 // pred_check
      _
    $region23: #{forward.1} parent=1 // pred_check_branch
      %44 = sbr.rel (0) target = $region25
    $region24: #{forward.1} parent=1 // pred_region
      %45 = dma.done [#allocation6], 896
    $region25: #{forward.1} parent=1 // pred_fallthru
      _
    %v47 = vld [vmem:[%s0] sm:$0xff]
    %v48 = vld [vmem:[%s0 + $0x8] sm:$0xff]
    %v49 = vlaneseq
    %v50 = vand.u32 %v49, 127
    %51 = vset.pattern.permute.xlu0 0
    %52 = vperm.xlu0 %51, %v47
    %v53 = vpop.permute.xlu0 %52
    %54 = vset.pattern.permute.xlu0 0
    %55 = vperm.xlu0 %54, %v48
    %v56 = vpop.permute.xlu0 %55
    %vm57 = vcmp.eq.s32.totalorder %v50, %v53
    %vm58 = vcmp.eq.s32.totalorder %v50, %v56
    %v59 = vsel %vm57, 1, 0
    %v60 = vsel %vm58, 1, 0
    %v61 = vcvt.s32.f32 %v59
    %v62 = vcvt.s32.f32 %v60
    %v63 = vpack.c.bf16 %v62, %v61
    %v64 = vld [vmem:[#allocation2] sm:$0xf]
    %v65 = vld [vmem:[#allocation2 + $0x4] sm:$0xf]
    %v66 = vld [vmem:[#allocation2 + $0x8] sm:$0xf]
    %v67 = vld [vmem:[#allocation2 + $0xc] sm:$0xf]
    %v68 = vld [vmem:[#allocation2 + $0x10] sm:$0xf]
    %v69 = vld [vmem:[#allocation2 + $0x14] sm:$0xf]
    %v70 = vld [vmem:[#allocation2 + $0x18] sm:$0xf]
    %v71 = vld [vmem:[#allocation2 + $0x1c] sm:$0xf]
    %v72 = vld [vmem:[#allocation2 + $0x20] sm:$0xf]
    %v73 = vld [vmem:[#allocation2 + $0x24] sm:$0xf]
    %v74 = vld [vmem:[#allocation2 + $0x28] sm:$0xf]
    %v75 = vld [vmem:[#allocation2 + $0x2c] sm:$0xf]
    %v76 = vld [vmem:[#allocation2 + $0x30] sm:$0xf]
    %v77 = vld [vmem:[#allocation2 + $0x34] sm:$0xf]
    %v78 = vld [vmem:[#allocation2 + $0x38] sm:$0xf]
    %v79 = vld [vmem:[#allocation2 + $0x3c] sm:$0xf]
    %v80 = vld [vmem:[#allocation5 + $0x20] sm:$0xff]
    %v97 = vunpack.c.l.b16 %v64
    %v98 = vunpack.c.l.b16 %v65
    %v99 = vunpack.c.l.b16 %v66
    %v100 = vunpack.c.l.b16 %v67
    %v101 = vunpack.c.l.b16 %v68
    %v102 = vunpack.c.l.b16 %v69
    %v103 = vunpack.c.l.b16 %v70
    %v104 = vunpack.c.l.b16 %v71
    %v105 = vunpack.c.l.b16 %v72
    %v106 = vunpack.c.l.b16 %v73
    %v107 = vunpack.c.l.b16 %v74
    %v108 = vunpack.c.l.b16 %v75
    %v109 = vunpack.c.l.b16 %v76
    %v110 = vunpack.c.l.b16 %v77
    %v111 = vunpack.c.l.b16 %v78
    %v112 = vunpack.c.l.b16 %v79
    %v113 = vpack.c.b16 %v98, %v97
    %v114 = vpack.c.b16 %v100, %v99
    %v115 = vpack.c.b16 %v102, %v101
    %v116 = vpack.c.b16 %v104, %v103
    %v117 = vpack.c.b16 %v106, %v105
    %v118 = vpack.c.b16 %v108, %v107
    %v119 = vpack.c.b16 %v110, %v109
    %v120 = vpack.c.b16 %v112, %v111
    %129 = vmatprep.subr.bf16.mxu0 0
    %130 = vmatpush1.bf16.msra.mxu0 %v113
    %131 = vmatprep.subr.bf16.mxu0 0
    %132 = vmatpush1.bf16.msra.mxu0 %v114
    %133 = vmatprep.subr.bf16.mxu0 0
    %134 = vmatpush1.bf16.msra.mxu0 %v115
    %135 = vmatprep.subr.bf16.mxu0 0
    %136 = vmatpush1.bf16.msra.mxu0 %v116
    %137 = vmatprep.subr.bf16.mxu0 0
    %138 = vmatpush1.bf16.msra.mxu0 %v117
    %139 = vmatprep.subr.bf16.mxu0 0
    %140 = vmatpush1.bf16.msra.mxu0 %v118
    %141 = vmatprep.subr.bf16.mxu0 0
    %142 = vmatpush1.bf16.msra.mxu0 %v119
    %143 = vmatprep.subr.bf16.mxu0 0
    %144 = vmatpush1.bf16.msra.mxu0 %v120
    %145 = vmatprep.subr.bf16.mxu0 0
    %146 = vmatpush1.bf16.msra.mxu0 0
    %147 = vmatprep.subr.bf16.mxu0 0
    %148 = vmatpush1.bf16.msra.mxu0 0
    %149 = vmatprep.subr.bf16.mxu0 0
    %150 = vmatpush1.bf16.msra.mxu0 0
    %151 = vmatprep.subr.bf16.mxu0 0
    %152 = vmatpush1.bf16.msra.mxu0 0
    %153 = vmatprep.subr.bf16.mxu0 0
    %154 = vmatpush1.bf16.msra.mxu0 0
    %155 = vmatprep.subr.bf16.mxu0 0
    %156 = vmatpush1.bf16.msra.mxu0 0
    %157 = vmatprep.subr.bf16.mxu0 0
    %158 = vmatpush1.bf16.msra.mxu0 0
    %159 = vmatprep.subr.bf16.mxu0 0
    %160 = vmatpush1.bf16.msra.mxu0 0
    %161 = vmatprep.mubr.bf16.mxu0 0
    %162 = vmatmul.mubr.bf16.gmra.mrb[0].mxu0 %v63
    %v163 = vpop.f32.mrb[0].mxu0
    %v164 = vadd.f32 %v80, %v163
    %v165 = vpop.f32.mrb[0].mxu0
    %v166 = vpop.f32.mrb[0].mxu0
    %v167 = vadd.f32 %v80, %v166
    %v168 = vpop.f32.mrb[0].mxu0
    %169 = vdwg.mxu0
    %v170 = vld [vmem:[#allocation5 + $0x30] sm:$0x1]
    %v171 = vld [vmem:[#allocation5 + $0x31] sm:$0x1]
    %vm172 = vcmask 261120
    %v173 = vsel %vm172, %v164, 0.0
    %174 = vadd.xlane.f32.xlu0 %v173
    %v175 = vpop.xlane.xlu0 %174
    %v176 = vsel %vm172, %v167, 0.0
    %177 = vadd.xlane.f32.xlu0 %v176
    %v178 = vpop.xlane.xlu0 %177
    %v179 = vrcp.pop 32.0
    %v180 = vmul.f32 %v175, %v179
    %v181 = vmul.f32 %v178, %v179
    %v182 = vsub.f32 %v164, %v180
    %v183 = vsub.f32 %v167, %v181
    %v184 = vmul.f32 %v182, %v182
    %v185 = vmul.f32 %v183, %v183
    %v186 = vsel %vm172, %v184, 0.0
    %187 = vadd.xlane.f32.xlu0 %v186
    %v188 = vpop.xlane.xlu0 %187
    %v189 = vsel %vm172, %v185, 0.0
    %190 = vadd.xlane.f32.xlu0 %v189
    %v191 = vpop.xlane.xlu0 %190
    %v192 = vmul.f32 %v188, %v179
    %v193 = vmul.f32 %v191, %v179
    %v194 = vadd.f32 %v192, 1e-12
    %v195 = vadd.f32 %v193, 1e-12
    %v196 = vrsqrt.pop %v194
    %v197 = vrsqrt.pop %v195
    %v198 = vmul.f32 %v182, %v196
    %v199 = vmul.f32 %v183, %v197
    %v200 = vlaneseq
    %v201 = vshrl.u32 %v200, 7
    %v202 = vsub.s32 0, %v201
    %v203 = vrot.slane %v170, %v202
    %v204 = vmul.f32 %v198, %v203
    %v205 = vmul.f32 %v199, %v203
    %v206 = vlaneseq
    %v207 = vshrl.u32 %v206, 7
    %v208 = vsub.s32 0, %v207
    %v209 = vrot.slane %v171, %v208
    %v210 = vadd.f32 %v204, %v209
    %v211 = vadd.f32 %v205, %v209
    %v212 = vld [vmem:[%s1] sm:$0x1]
    %vm213 = vcmp.gt.s32.totalorder %v212, 0
    %v214 = vlaneseq
    %v215 = vshrl.u32 %v214, 7
    %v216 = vadd.s32 %v215, 8
    %vm217 = vcmp.ge.s32.totalorder %v215, 0
    %vm218 = vcmp.ge.s32.totalorder %v216, 0
    %vm219 = vcmp.lt.s32.totalorder %v215, 8
    %vm220 = vcmp.lt.s32.totalorder %v216, 8
    %vm221 = vmand %vm217, %vm219
    %vm222 = vmand %vm218, %vm220
    %vm223 = vcmp.ge.s32.totalorder %v50, 0
    %vm224 = vmand %vm221, %vm223
    %vm225 = vmand %vm222, %vm223
    %vm226 = vcmp.lt.s32.totalorder %v50, 8
    %vm227 = vmand %vm224, %vm226
    %vm228 = vmand %vm225, %vm226
    %vm229 = vcmp.ge.s32.totalorder %v215, 8
    %vm230 = vcmp.ge.s32.totalorder %v216, 8
    %vm231 = vcmp.lt.s32.totalorder %v215, 16
    %vm232 = vcmp.lt.s32.totalorder %v216, 16
    %vm233 = vmand %vm229, %vm231
    %vm234 = vmand %vm230, %vm232
    %vm235 = vcmp.ge.s32.totalorder %v50, 8
    %vm236 = vmand %vm233, %vm235
    %vm237 = vmand %vm234, %vm235
    %vm238 = vcmp.lt.s32.totalorder %v50, 16
    %vm239 = vmand %vm236, %vm238
    %vm240 = vmand %vm237, %vm238
    %vm241 = vmor %vm227, %vm239
    %vm242 = vmor %vm228, %vm240
    %v243 = vsel %vm213, 1, 0
    %v244 = vlaneseq
    %v245 = vshrl.u32 %v244, 7
    %v246 = vsub.s32 0, %v245
    %v247 = vrot.slane %v243, %v246
    %vm248 = vcmp.eq.s32.totalorder %v247, 1
    %vm249 = vmand %vm241, %vm248
    %vm250 = vmand %vm242, %vm248
    %v251 = vpack.c.bf16 %v211, %v210
    %v252 = vld [vmem:[#allocation2 + $0x40] sm:$0xf]
    %v253 = vld [vmem:[#allocation2 + $0x44] sm:$0xf]
    %v254 = vld [vmem:[#allocation2 + $0x48] sm:$0xf]
    %v255 = vld [vmem:[#allocation2 + $0x4c] sm:$0xf]
    %v256 = vld [vmem:[#allocation5] sm:$0x1]
    %v257 = vlaneseq
    %v258 = vshrl.u32 %v257, 7
    %v259 = vsub.s32 0, %v258
    %v260 = vrot.slane %v256, %v259
    %v265 = vunpack.c.l.b16 %v252
    %v266 = vunpack.c.l.b16 %v253
    %v267 = vunpack.c.l.b16 %v254
    %v268 = vunpack.c.l.b16 %v255
    %v269 = vpack.c.b16 %v266, %v265
    %v270 = vpack.c.b16 %v268, %v267
    %v274 = vsel %vm172, %v251, 0
    %276 = vmatprep.subr.bf16.mxu0 0
    %277 = vmatpush1.bf16.msra.mxu0 %v269
    %278 = vmatprep.subr.bf16.mxu0 0
    %279 = vmatpush1.bf16.msra.mxu0 %v270
    %280 = vmatprep.subr.bf16.mxu0 0
    %281 = vmatpush1.bf16.msra.mxu0 0
    %282 = vmatprep.subr.bf16.mxu0 0
    %283 = vmatpush1.bf16.msra.mxu0 0
    %284 = vmatprep.subr.bf16.mxu0 0
    %285 = vmatpush1.bf16.msra.mxu0 0
    %286 = vmatprep.subr.bf16.mxu0 0
    %287 = vmatpush1.bf16.msra.mxu0 0
    %288 = vmatprep.subr.bf16.mxu0 0
    %289 = vmatpush1.bf16.msra.mxu0 0
    %290 = vmatprep.subr.bf16.mxu0 0
    %291 = vmatpush1.bf16.msra.mxu0 0
    %292 = vmatprep.subr.bf16.mxu0 0
    %293 = vmatpush1.bf16.msra.mxu0 0
    %294 = vmatprep.subr.bf16.mxu0 0
    %295 = vmatpush1.bf16.msra.mxu0 0
    %296 = vmatprep.subr.bf16.mxu0 0
    %297 = vmatpush1.bf16.msra.mxu0 0
    %298 = vmatprep.subr.bf16.mxu0 0
    %299 = vmatpush1.bf16.msra.mxu0 0
    %300 = vmatprep.subr.bf16.mxu0 0
    %301 = vmatpush1.bf16.msra.mxu0 0
    %302 = vmatprep.subr.bf16.mxu0 0
    %303 = vmatpush1.bf16.msra.mxu0 0
    %304 = vmatprep.subr.bf16.mxu0 0
    %305 = vmatpush1.bf16.msra.mxu0 0
    %306 = vmatprep.subr.bf16.mxu0 0
    %307 = vmatpush1.bf16.msra.mxu0 0
    %308 = vmatprep.mubr.bf16.mxu0 0
    %309 = vmatmul.mubr.bf16.gmra.mrb[0].mxu0 %v274
    %v310 = vpop.f32.mrb[0].mxu0
    %v311 = vadd.f32 %v260, %v310
    %v312 = vpop.f32.mrb[0].mxu0
    %v313 = vpop.f32.mrb[0].mxu0
    %v314 = vadd.f32 %v260, %v313
    %v315 = vpop.f32.mrb[0].mxu0
    %316 = vdwg.mxu0
    %v317 = vld [vmem:[#allocation2 + $0x50] sm:$0xf]
    %v318 = vld [vmem:[#allocation2 + $0x54] sm:$0xf]
    %v319 = vld [vmem:[#allocation2 + $0x58] sm:$0xf]
    %v320 = vld [vmem:[#allocation2 + $0x5c] sm:$0xf]
    %v321 = vld [vmem:[#allocation5 + $0x1] sm:$0x1]
    %v322 = vlaneseq
    %v323 = vshrl.u32 %v322, 7
    %v324 = vsub.s32 0, %v323
    %v325 = vrot.slane %v321, %v324
    %v330 = vunpack.c.l.b16 %v317
    %v331 = vunpack.c.l.b16 %v318
    %v332 = vunpack.c.l.b16 %v319
    %v333 = vunpack.c.l.b16 %v320
    %v334 = vpack.c.b16 %v331, %v330
    %v335 = vpack.c.b16 %v333, %v332
    %338 = vmatprep.subr.bf16.mxu0 0
    %339 = vmatpush1.bf16.msra.mxu0 %v334
    %340 = vmatprep.subr.bf16.mxu0 0
    %341 = vmatpush1.bf16.msra.mxu0 %v335
    %342 = vmatprep.subr.bf16.mxu0 0
    %343 = vmatpush1.bf16.msra.mxu0 0
    %344 = vmatprep.subr.bf16.mxu0 0
    %345 = vmatpush1.bf16.msra.mxu0 0
    %346 = vmatprep.subr.bf16.mxu0 0
    %347 = vmatpush1.bf16.msra.mxu0 0
    %348 = vmatprep.subr.bf16.mxu0 0
    %349 = vmatpush1.bf16.msra.mxu0 0
    %350 = vmatprep.subr.bf16.mxu0 0
    %351 = vmatpush1.bf16.msra.mxu0 0
    %352 = vmatprep.subr.bf16.mxu0 0
    %353 = vmatpush1.bf16.msra.mxu0 0
    %354 = vmatprep.subr.bf16.mxu0 0
    %355 = vmatpush1.bf16.msra.mxu0 0
    %356 = vmatprep.subr.bf16.mxu0 0
    %357 = vmatpush1.bf16.msra.mxu0 0
    %358 = vmatprep.subr.bf16.mxu0 0
    %359 = vmatpush1.bf16.msra.mxu0 0
    %360 = vmatprep.subr.bf16.mxu0 0
    %361 = vmatpush1.bf16.msra.mxu0 0
    %362 = vmatprep.subr.bf16.mxu0 0
    %363 = vmatpush1.bf16.msra.mxu0 0
    %364 = vmatprep.subr.bf16.mxu0 0
    %365 = vmatpush1.bf16.msra.mxu0 0
    %366 = vmatprep.subr.bf16.mxu0 0
    %367 = vmatpush1.bf16.msra.mxu0 0
    %368 = vmatprep.subr.bf16.mxu0 0
    %369 = vmatpush1.bf16.msra.mxu0 0
    %370 = vmatprep.mubr.bf16.mxu0 0
    %371 = vmatmul.mubr.bf16.gmra.mrb[0].mxu0 %v274
    %v372 = vpop.f32.mrb[0].mxu0
    %v373 = vadd.f32 %v325, %v372
    %v374 = vpop.f32.mrb[0].mxu0
    %v375 = vpop.f32.mrb[0].mxu0
    %v376 = vadd.f32 %v325, %v375
    %v377 = vpop.f32.mrb[0].mxu0
    %378 = vdwg.mxu0
    %v379 = vld [vmem:[#allocation2 + $0x60] sm:$0xf]
    %v380 = vld [vmem:[#allocation2 + $0x64] sm:$0xf]
    %v381 = vld [vmem:[#allocation2 + $0x68] sm:$0xf]
    %v382 = vld [vmem:[#allocation2 + $0x6c] sm:$0xf]
    %v383 = vld [vmem:[#allocation5 + $0x2] sm:$0x1]
    %v384 = vlaneseq
    %v385 = vshrl.u32 %v384, 7
    %v386 = vsub.s32 0, %v385
    %v387 = vrot.slane %v383, %v386
    %v392 = vunpack.c.l.b16 %v379
    %v393 = vunpack.c.l.b16 %v380
    %v394 = vunpack.c.l.b16 %v381
    %v395 = vunpack.c.l.b16 %v382
    %v396 = vpack.c.b16 %v393, %v392
    %v397 = vpack.c.b16 %v395, %v394
    %400 = vmatprep.subr.bf16.mxu0 0
    %401 = vmatpush1.bf16.msra.mxu0 %v396
    %402 = vmatprep.subr.bf16.mxu0 0
    %403 = vmatpush1.bf16.msra.mxu0 %v397
    %404 = vmatprep.subr.bf16.mxu0 0
    %405 = vmatpush1.bf16.msra.mxu0 0
    %406 = vmatprep.subr.bf16.mxu0 0
    %407 = vmatpush1.bf16.msra.mxu0 0
    %408 = vmatprep.subr.bf16.mxu0 0
    %409 = vmatpush1.bf16.msra.mxu0 0
    %410 = vmatprep.subr.bf16.mxu0 0
    %411 = vmatpush1.bf16.msra.mxu0 0
    %412 = vmatprep.subr.bf16.mxu0 0
    %413 = vmatpush1.bf16.msra.mxu0 0
    %414 = vmatprep.subr.bf16.mxu0 0
    %415 = vmatpush1.bf16.msra.mxu0 0
    %416 = vmatprep.subr.bf16.mxu0 0
    %417 = vmatpush1.bf16.msra.mxu0 0
    %418 = vmatprep.subr.bf16.mxu0 0
    %419 = vmatpush1.bf16.msra.mxu0 0
    %420 = vmatprep.subr.bf16.mxu0 0
    %421 = vmatpush1.bf16.msra.mxu0 0
    %422 = vmatprep.subr.bf16.mxu0 0
    %423 = vmatpush1.bf16.msra.mxu0 0
    %424 = vmatprep.subr.bf16.mxu0 0
    %425 = vmatpush1.bf16.msra.mxu0 0
    %426 = vmatprep.subr.bf16.mxu0 0
    %427 = vmatpush1.bf16.msra.mxu0 0
    %428 = vmatprep.subr.bf16.mxu0 0
    %429 = vmatpush1.bf16.msra.mxu0 0
    %430 = vmatprep.subr.bf16.mxu0 0
    %431 = vmatpush1.bf16.msra.mxu0 0
    %432 = vmatprep.mubr.bf16.mxu0 0
    %433 = vmatmul.mubr.bf16.gmra.mrb[0].mxu0 %v274
    %v434 = vpop.f32.mrb[0].mxu0
    %v435 = vadd.f32 %v387, %v434
    %v436 = vpop.f32.mrb[0].mxu0
    %v437 = vpop.f32.mrb[0].mxu0
    %v438 = vadd.f32 %v387, %v437
    %v439 = vpop.f32.mrb[0].mxu0
    %440 = vdwg.mxu0
    %v441 = vpack.c.bf16 %v314, %v311
    %v442 = vpack.c.bf16 %v376, %v373
    %vm443 = vcmask 64512
    %v445 = vsel %vm443, %v441, 0
    %v448 = vsel %vm443, %v442, 0
    %450 = vmatprep.subr.bf16.mxu0 0
    %451 = vmatpush1.bf16.xpose.msra.mxu0 %v448
    %452 = vmatprep.subr.bf16.mxu0 0
    %453 = vmatpush1.bf16.xpose.msra.mxu0 0
    %454 = vmatprep.subr.bf16.mxu0 0
    %455 = vmatpush1.bf16.xpose.msra.mxu0 0
    %456 = vmatprep.subr.bf16.mxu0 0
    %457 = vmatpush1.bf16.xpose.msra.mxu0 0
    %458 = vmatprep.subr.bf16.mxu0 0
    %459 = vmatpush1.bf16.xpose.msra.mxu0 0
    %460 = vmatprep.subr.bf16.mxu0 0
    %461 = vmatpush1.bf16.xpose.msra.mxu0 0
    %462 = vmatprep.subr.bf16.mxu0 0
    %463 = vmatpush1.bf16.xpose.msra.mxu0 0
    %464 = vmatprep.subr.bf16.mxu0 0
    %465 = vmatpush1.bf16.xpose.msra.mxu0 0
    %466 = vmatprep.subr.bf16.mxu0 0
    %467 = vmatpush1.bf16.xpose.msra.mxu0 0
    %468 = vmatprep.subr.bf16.mxu0 0
    %469 = vmatpush1.bf16.xpose.msra.mxu0 0
    %470 = vmatprep.subr.bf16.mxu0 0
    %471 = vmatpush1.bf16.xpose.msra.mxu0 0
    %472 = vmatprep.subr.bf16.mxu0 0
    %473 = vmatpush1.bf16.xpose.msra.mxu0 0
    %474 = vmatprep.subr.bf16.mxu0 0
    %475 = vmatpush1.bf16.xpose.msra.mxu0 0
    %476 = vmatprep.subr.bf16.mxu0 0
    %477 = vmatpush1.bf16.xpose.msra.mxu0 0
    %478 = vmatprep.subr.bf16.mxu0 0
    %479 = vmatpush1.bf16.xpose.msra.mxu0 0
    %480 = vmatprep.subr.bf16.mxu0 0
    %481 = vmatpush1.bf16.xpose.msra.mxu0 0
    %482 = vmatprep.mubr.bf16.mxu0 0
    %483 = vmatmul.mubr.bf16.gmra.mrb[0].mxu0 %v445
    %v484 = vpop.f32.mrb[0].mxu0
    %v485 = vadd.f32 0.0, %v484
    %v486 = vpop.f32.mrb[0].mxu0
    %v487 = vpop.f32.mrb[0].mxu0
    %v488 = vadd.f32 0.0, %v487
    %v489 = vpop.f32.mrb[0].mxu0
    %490 = vdwg.mxu0
    %v491 = vsel %vm249, %v485, -1e+09
    %v492 = vsel %vm250, %v488, -1e+09
    %vm493 = vcmask 130048
    %v494 = vsel %vm493, %v491, -inf
    %495 = vmax.xlane.f32.xlu0 %v494
    %v496 = vpop.xlane.xlu0 %495
    %v497 = vsel %vm493, %v492, -inf
    %498 = vmax.xlane.f32.xlu0 %v497
    %v499 = vpop.xlane.xlu0 %498
    %v500 = vsub.f32 %v491, %v496
    %v501 = vsub.f32 %v492, %v499
    %v502 = vmul.f32 %v500, 1.442695
    %v503 = vpow.pop %v502
    %v504 = vmul.f32 %v501, 1.442695
    %v505 = vpow.pop %v504
    %v506 = vsel %vm493, %v503, 0.0
    %507 = vadd.xlane.f32.xlu0 %v506
    %v508 = vpop.xlane.xlu0 %507
    %v509 = vsel %vm493, %v505, 0.0
    %510 = vadd.xlane.f32.xlu0 %v509
    %v511 = vpop.xlane.xlu0 %510
    %v512 = vrcp.pop %v508
    %v513 = vrcp.pop %v511
    %v514 = vmul.f32 %v503, %v512
    %v515 = vmul.f32 %v505, %v513
    %v516 = vpack.c.bf16 %v515, %v514
    %v517 = vpack.c.bf16 %v438, %v435
    %v519 = vsel %vm493, %v516, 0
    %521 = vmatprep.subr.bf16.mxu0 0
    %522 = vmatpush1.bf16.msra.mxu0 %v517
    %523 = vmatprep.subr.bf16.mxu0 0
    %524 = vmatpush1.bf16.msra.mxu0 0
    %525 = vmatprep.subr.bf16.mxu0 0
    %526 = vmatpush1.bf16.msra.mxu0 0
    %527 = vmatprep.subr.bf16.mxu0 0
    %528 = vmatpush1.bf16.msra.mxu0 0
    %529 = vmatprep.subr.bf16.mxu0 0
    %530 = vmatpush1.bf16.msra.mxu0 0
    %531 = vmatprep.subr.bf16.mxu0 0
    %532 = vmatpush1.bf16.msra.mxu0 0
    %533 = vmatprep.subr.bf16.mxu0 0
    %534 = vmatpush1.bf16.msra.mxu0 0
    %535 = vmatprep.subr.bf16.mxu0 0
    %536 = vmatpush1.bf16.msra.mxu0 0
    %537 = vmatprep.subr.bf16.mxu0 0
    %538 = vmatpush1.bf16.msra.mxu0 0
    %539 = vmatprep.subr.bf16.mxu0 0
    %540 = vmatpush1.bf16.msra.mxu0 0
    %541 = vmatprep.subr.bf16.mxu0 0
    %542 = vmatpush1.bf16.msra.mxu0 0
    %543 = vmatprep.subr.bf16.mxu0 0
    %544 = vmatpush1.bf16.msra.mxu0 0
    %545 = vmatprep.subr.bf16.mxu0 0
    %546 = vmatpush1.bf16.msra.mxu0 0
    %547 = vmatprep.subr.bf16.mxu0 0
    %548 = vmatpush1.bf16.msra.mxu0 0
    %549 = vmatprep.subr.bf16.mxu0 0
    %550 = vmatpush1.bf16.msra.mxu0 0
    %551 = vmatprep.subr.bf16.mxu0 0
    %552 = vmatpush1.bf16.msra.mxu0 0
    %553 = vmatprep.mubr.bf16.mxu0 0
    %554 = vmatmul.mubr.bf16.gmra.mrb[0].mxu0 %v519
    %v555 = vpop.f32.mrb[0].mxu0
    %v556 = vadd.f32 0.0, %v555
    %v557 = vpop.f32.mrb[0].mxu0
    %v558 = vpop.f32.mrb[0].mxu0
    %v559 = vadd.f32 0.0, %v558
    %v560 = vpop.f32.mrb[0].mxu0
    %561 = vdwg.mxu0
    %v562 = vld [vmem:[#allocation2 + $0x70] sm:$0xf]
    %v563 = vpack.c.bf16 %v559, %v556
    %564 = vrot.lane.b32.xlu0 %v269, 120
    %v565 = vpop.permute.xlu0 %564
    %566 = vrot.lane.b32.xlu0 %v270, 120
    %v567 = vpop.permute.xlu0 %566
    %571 = vrot.lane.b32.xlu0 %v260, 120
    %v572 = vpop.permute.xlu0 %571
    %574 = vmatprep.subr.bf16.mxu0 0
    %575 = vmatpush1.bf16.msra.mxu0 %v565
    %576 = vmatprep.subr.bf16.mxu0 0
    %577 = vmatpush1.bf16.msra.mxu0 %v567
    %578 = vmatprep.subr.bf16.mxu0 0
    %579 = vmatpush1.bf16.msra.mxu0 0
    %580 = vmatprep.subr.bf16.mxu0 0
    %581 = vmatpush1.bf16.msra.mxu0 0
    %582 = vmatprep.subr.bf16.mxu0 0
    %583 = vmatpush1.bf16.msra.mxu0 0
    %584 = vmatprep.subr.bf16.mxu0 0
    %585 = vmatpush1.bf16.msra.mxu0 0
    %586 = vmatprep.subr.bf16.mxu0 0
    %587 = vmatpush1.bf16.msra.mxu0 0
    %588 = vmatprep.subr.bf16.mxu0 0
    %589 = vmatpush1.bf16.msra.mxu0 0
    %590 = vmatprep.subr.bf16.mxu0 0
    %591 = vmatpush1.bf16.msra.mxu0 0
    %592 = vmatprep.subr.bf16.mxu0 0
    %593 = vmatpush1.bf16.msra.mxu0 0
    %594 = vmatprep.subr.bf16.mxu0 0
    %595 = vmatpush1.bf16.msra.mxu0 0
    %596 = vmatprep.subr.bf16.mxu0 0
    %597 = vmatpush1.bf16.msra.mxu0 0
    %598 = vmatprep.subr.bf16.mxu0 0
    %599 = vmatpush1.bf16.msra.mxu0 0
    %600 = vmatprep.subr.bf16.mxu0 0
    %601 = vmatpush1.bf16.msra.mxu0 0
    %602 = vmatprep.subr.bf16.mxu0 0
    %603 = vmatpush1.bf16.msra.mxu0 0
    %604 = vmatprep.subr.bf16.mxu0 0
    %605 = vmatpush1.bf16.msra.mxu0 0
    %606 = vmatprep.mubr.bf16.mxu0 0
    %607 = vmatmul.mubr.bf16.gmra.mrb[0].mxu0 %v274
    %v608 = vpop.f32.mrb[0].mxu0
    %v609 = vadd.f32 %v572, %v608
    %v610 = vpop.f32.mrb[0].mxu0
    %v611 = vpop.f32.mrb[0].mxu0
    %v612 = vadd.f32 %v572, %v611
    %v613 = vpop.f32.mrb[0].mxu0
    %614 = vdwg.mxu0
    %615 = vrot.lane.b32.xlu0 %v334, 120
    %v616 = vpop.permute.xlu0 %615
    %617 = vrot.lane.b32.xlu0 %v335, 120
    %v618 = vpop.permute.xlu0 %617
    %622 = vrot.lane.b32.xlu0 %v325, 120
    %v623 = vpop.permute.xlu0 %622
    %625 = vmatprep.subr.bf16.mxu0 0
    %626 = vmatpush1.bf16.msra.mxu0 %v616
    %627 = vmatprep.subr.bf16.mxu0 0
    %628 = vmatpush1.bf16.msra.mxu0 %v618
    %629 = vmatprep.subr.bf16.mxu0 0
    %630 = vmatpush1.bf16.msra.mxu0 0
    %631 = vmatprep.subr.bf16.mxu0 0
    %632 = vmatpush1.bf16.msra.mxu0 0
    %633 = vmatprep.subr.bf16.mxu0 0
    %634 = vmatpush1.bf16.msra.mxu0 0
    %635 = vmatprep.subr.bf16.mxu0 0
    %636 = vmatpush1.bf16.msra.mxu0 0
    %637 = vmatprep.subr.bf16.mxu0 0
    %638 = vmatpush1.bf16.msra.mxu0 0
    %639 = vmatprep.subr.bf16.mxu0 0
    %640 = vmatpush1.bf16.msra.mxu0 0
    %641 = vmatprep.subr.bf16.mxu0 0
    %642 = vmatpush1.bf16.msra.mxu0 0
    %643 = vmatprep.subr.bf16.mxu0 0
    %644 = vmatpush1.bf16.msra.mxu0 0
    %645 = vmatprep.subr.bf16.mxu0 0
    %646 = vmatpush1.bf16.msra.mxu0 0
    %647 = vmatprep.subr.bf16.mxu0 0
    %648 = vmatpush1.bf16.msra.mxu0 0
    %649 = vmatprep.subr.bf16.mxu0 0
    %650 = vmatpush1.bf16.msra.mxu0 0
    %651 = vmatprep.subr.bf16.mxu0 0
    %652 = vmatpush1.bf16.msra.mxu0 0
    %653 = vmatprep.subr.bf16.mxu0 0
    %654 = vmatpush1.bf16.msra.mxu0 0
    %655 = vmatprep.subr.bf16.mxu0 0
    %656 = vmatpush1.bf16.msra.mxu0 0
    %657 = vmatprep.mubr.bf16.mxu0 0
    %658 = vmatmul.mubr.bf16.gmra.mrb[0].mxu0 %v274
    %v659 = vpop.f32.mrb[0].mxu0
    %v660 = vadd.f32 %v623, %v659
    %v661 = vpop.f32.mrb[0].mxu0
    %v662 = vpop.f32.mrb[0].mxu0
    %v663 = vadd.f32 %v623, %v662
    %v664 = vpop.f32.mrb[0].mxu0
    %665 = vdwg.mxu0
    %666 = vrot.lane.b32.xlu0 %v396, 120
    %v667 = vpop.permute.xlu0 %666
    %668 = vrot.lane.b32.xlu0 %v397, 120
    %v669 = vpop.permute.xlu0 %668
    %673 = vrot.lane.b32.xlu0 %v387, 120
    %v674 = vpop.permute.xlu0 %673
    %676 = vmatprep.subr.bf16.mxu0 0
    %677 = vmatpush1.bf16.msra.mxu0 %v667
    %678 = vmatprep.subr.bf16.mxu0 0
    %679 = vmatpush1.bf16.msra.mxu0 %v669
    %680 = vmatprep.subr.bf16.mxu0 0
    %681 = vmatpush1.bf16.msra.mxu0 0
    %682 = vmatprep.subr.bf16.mxu0 0
    %683 = vmatpush1.bf16.msra.mxu0 0
    %684 = vmatprep.subr.bf16.mxu0 0
    %685 = vmatpush1.bf16.msra.mxu0 0
    %686 = vmatprep.subr.bf16.mxu0 0
    %687 = vmatpush1.bf16.msra.mxu0 0
    %688 = vmatprep.subr.bf16.mxu0 0
    %689 = vmatpush1.bf16.msra.mxu0 0
    %690 = vmatprep.subr.bf16.mxu0 0
    %691 = vmatpush1.bf16.msra.mxu0 0
    %692 = vmatprep.subr.bf16.mxu0 0
    %693 = vmatpush1.bf16.msra.mxu0 0
    %694 = vmatprep.subr.bf16.mxu0 0
    %695 = vmatpush1.bf16.msra.mxu0 0
    %696 = vmatprep.subr.bf16.mxu0 0
    %697 = vmatpush1.bf16.msra.mxu0 0
    %698 = vmatprep.subr.bf16.mxu0 0
    %699 = vmatpush1.bf16.msra.mxu0 0
    %700 = vmatprep.subr.bf16.mxu0 0
    %701 = vmatpush1.bf16.msra.mxu0 0
    %702 = vmatprep.subr.bf16.mxu0 0
    %703 = vmatpush1.bf16.msra.mxu0 0
    %704 = vmatprep.subr.bf16.mxu0 0
    %705 = vmatpush1.bf16.msra.mxu0 0
    %706 = vmatprep.subr.bf16.mxu0 0
    %707 = vmatpush1.bf16.msra.mxu0 0
    %708 = vmatprep.mubr.bf16.mxu0 0
    %709 = vmatmul.mubr.bf16.gmra.mrb[0].mxu0 %v274
    %v710 = vpop.f32.mrb[0].mxu0
    %v711 = vadd.f32 %v674, %v710
    %v712 = vpop.f32.mrb[0].mxu0
    %v713 = vpop.f32.mrb[0].mxu0
    %v714 = vadd.f32 %v674, %v713
    %v715 = vpop.f32.mrb[0].mxu0
    %716 = vdwg.mxu0
    %v717 = vpack.c.bf16 %v612, %v609
    %v718 = vpack.c.bf16 %v663, %v660
    %v720 = vsel %vm443, %v717, 0
    %v723 = vsel %vm443, %v718, 0
    %725 = vmatprep.subr.bf16.mxu0 0
    %726 = vmatpush1.bf16.xpose.msra.mxu0 %v723
    %727 = vmatprep.subr.bf16.mxu0 0
    %728 = vmatpush1.bf16.xpose.msra.mxu0 0
    %729 = vmatprep.subr.bf16.mxu0 0
    %730 = vmatpush1.bf16.xpose.msra.mxu0 0
    %731 = vmatprep.subr.bf16.mxu0 0
    %732 = vmatpush1.bf16.xpose.msra.mxu0 0
    %733 = vmatprep.subr.bf16.mxu0 0
    %734 = vmatpush1.bf16.xpose.msra.mxu0 0
    %735 = vmatprep.subr.bf16.mxu0 0
    %736 = vmatpush1.bf16.xpose.msra.mxu0 0
    %737 = vmatprep.subr.bf16.mxu0 0
    %738 = vmatpush1.bf16.xpose.msra.mxu0 0
    %739 = vmatprep.subr.bf16.mxu0 0
    %740 = vmatpush1.bf16.xpose.msra.mxu0 0
    %741 = vmatprep.subr.bf16.mxu0 0
    %742 = vmatpush1.bf16.xpose.msra.mxu0 0
    %743 = vmatprep.subr.bf16.mxu0 0
    %744 = vmatpush1.bf16.xpose.msra.mxu0 0
    %745 = vmatprep.subr.bf16.mxu0 0
    %746 = vmatpush1.bf16.xpose.msra.mxu0 0
    %747 = vmatprep.subr.bf16.mxu0 0
    %748 = vmatpush1.bf16.xpose.msra.mxu0 0
    %749 = vmatprep.subr.bf16.mxu0 0
    %750 = vmatpush1.bf16.xpose.msra.mxu0 0
    %751 = vmatprep.subr.bf16.mxu0 0
    %752 = vmatpush1.bf16.xpose.msra.mxu0 0
    %753 = vmatprep.subr.bf16.mxu0 0
    %754 = vmatpush1.bf16.xpose.msra.mxu0 0
    %755 = vmatprep.subr.bf16.mxu0 0
    %756 = vmatpush1.bf16.xpose.msra.mxu0 0
    %757 = vmatprep.mubr.bf16.mxu0 0
    %758 = vmatmul.mubr.bf16.gmra.mrb[0].mxu0 %v720
    %v759 = vpop.f32.mrb[0].mxu0
    %v760 = vadd.f32 0.0, %v759
    %v761 = vpop.f32.mrb[0].mxu0
    %v762 = vpop.f32.mrb[0].mxu0
    %v763 = vadd.f32 0.0, %v762
    %v764 = vpop.f32.mrb[0].mxu0
    %765 = vdwg.mxu0
    %v766 = vsel %vm249, %v760, -1e+09
    %v767 = vsel %vm250, %v763, -1e+09
    %v768 = vsel %vm493, %v766, -inf
    %769 = vmax.xlane.f32.xlu0 %v768
    %v770 = vpop.xlane.xlu0 %769
    %v771 = vsel %vm493, %v767, -inf
    %772 = vmax.xlane.f32.xlu0 %v771
    %v773 = vpop.xlane.xlu0 %772
    %v774 = vsub.f32 %v766, %v770
    %v775 = vsub.f32 %v767, %v773
    %v776 = vmul.f32 %v774, 1.442695
    %v777 = vpow.pop %v776
    %v778 = vmul.f32 %v775, 1.442695
    %v779 = vpow.pop %v778
    %v780 = vsel %vm493, %v777, 0.0
    %781 = vadd.xlane.f32.xlu0 %v780
    %v782 = vpop.xlane.xlu0 %781
    %v783 = vsel %vm493, %v779, 0.0
    %784 = vadd.xlane.f32.xlu0 %v783
    %v785 = vpop.xlane.xlu0 %784
    %v786 = vrcp.pop %v782
    %v787 = vrcp.pop %v785
    %v788 = vmul.f32 %v777, %v786
    %v789 = vmul.f32 %v779, %v787
    %v790 = vpack.c.bf16 %v789, %v788
    %v791 = vpack.c.bf16 %v714, %v711
    %v793 = vsel %vm493, %v790, 0
    %795 = vmatprep.subr.bf16.mxu0 0
    %796 = vmatpush1.bf16.msra.mxu0 %v791
    %797 = vmatprep.subr.bf16.mxu0 0
    %798 = vmatpush1.bf16.msra.mxu0 0
    %799 = vmatprep.subr.bf16.mxu0 0
    %800 = vmatpush1.bf16.msra.mxu0 0
    %801 = vmatprep.subr.bf16.mxu0 0
    %802 = vmatpush1.bf16.msra.mxu0 0
    %803 = vmatprep.subr.bf16.mxu0 0
    %804 = vmatpush1.bf16.msra.mxu0 0
    %805 = vmatprep.subr.bf16.mxu0 0
    %806 = vmatpush1.bf16.msra.mxu0 0
    %807 = vmatprep.subr.bf16.mxu0 0
    %808 = vmatpush1.bf16.msra.mxu0 0
    %809 = vmatprep.subr.bf16.mxu0 0
    %810 = vmatpush1.bf16.msra.mxu0 0
    %811 = vmatprep.subr.bf16.mxu0 0
    %812 = vmatpush1.bf16.msra.mxu0 0
    %813 = vmatprep.subr.bf16.mxu0 0
    %814 = vmatpush1.bf16.msra.mxu0 0
    %815 = vmatprep.subr.bf16.mxu0 0
    %816 = vmatpush1.bf16.msra.mxu0 0
    %817 = vmatprep.subr.bf16.mxu0 0
    %818 = vmatpush1.bf16.msra.mxu0 0
    %819 = vmatprep.subr.bf16.mxu0 0
    %820 = vmatpush1.bf16.msra.mxu0 0
    %821 = vmatprep.subr.bf16.mxu0 0
    %822 = vmatpush1.bf16.msra.mxu0 0
    %823 = vmatprep.subr.bf16.mxu0 0
    %824 = vmatpush1.bf16.msra.mxu0 0
    %825 = vmatprep.subr.bf16.mxu0 0
    %826 = vmatpush1.bf16.msra.mxu0 0
    %827 = vmatprep.mubr.bf16.mxu0 0
    %828 = vmatmul.mubr.bf16.gmra.mrb[0].mxu0 %v793
    %v829 = vpop.f32.mrb[0].mxu0
    %v830 = vadd.f32 0.0, %v829
    %v831 = vpop.f32.mrb[0].mxu0
    %v832 = vpop.f32.mrb[0].mxu0
    %v833 = vadd.f32 0.0, %v832
    %v834 = vpop.f32.mrb[0].mxu0
    %835 = vdwg.mxu0
    %v836 = vld [vmem:[#allocation2 + $0x74] sm:$0xf]
    %v837 = vpack.c.bf16 %v833, %v830
    %v839 = vsel %vm443, %v837, 0
    %vm841 = vcmask 1043456
    %v843 = vsel %vm841, %v836, 0
    %845 = vmatprep.subr.bf16.mxu0 0
    %846 = vmatpush1.bf16.msra.mxu0 %v843
    %847 = vmatprep.subr.bf16.mxu0 0
    %848 = vmatpush1.bf16.msra.mxu0 0
    %849 = vmatprep.subr.bf16.mxu0 0
    %850 = vmatpush1.bf16.msra.mxu0 0
    %851 = vmatprep.subr.bf16.mxu0 0
    %852 = vmatpush1.bf16.msra.mxu0 0
    %853 = vmatprep.subr.bf16.mxu0 0
    %854 = vmatpush1.bf16.msra.mxu0 0
    %855 = vmatprep.subr.bf16.mxu0 0
    %856 = vmatpush1.bf16.msra.mxu0 0
    %857 = vmatprep.subr.bf16.mxu0 0
    %858 = vmatpush1.bf16.msra.mxu0 0
    %859 = vmatprep.subr.bf16.mxu0 0
    %860 = vmatpush1.bf16.msra.mxu0 0
    %861 = vmatprep.subr.bf16.mxu0 0
    %862 = vmatpush1.bf16.msra.mxu0 0
    %863 = vmatprep.subr.bf16.mxu0 0
    %864 = vmatpush1.bf16.msra.mxu0 0
    %865 = vmatprep.subr.bf16.mxu0 0
    %866 = vmatpush1.bf16.msra.mxu0 0
    %867 = vmatprep.subr.bf16.mxu0 0
    %868 = vmatpush1.bf16.msra.mxu0 0
    %869 = vmatprep.subr.bf16.mxu0 0
    %870 = vmatpush1.bf16.msra.mxu0 0
    %871 = vmatprep.subr.bf16.mxu0 0
    %872 = vmatpush1.bf16.msra.mxu0 0
    %873 = vmatprep.subr.bf16.mxu0 0
    %874 = vmatpush1.bf16.msra.mxu0 0
    %875 = vmatprep.subr.bf16.mxu0 0
    %876 = vmatpush1.bf16.msra.mxu0 0
    %877 = vmatprep.mubr.bf16.mxu0 0
    %878 = vmatmul.mubr.bf16.gmra.mrb[0].mxu0 %v839
    %v879 = vpop.f32.mrb[0].mxu0
    %v880 = vadd.f32 0.0, %v879
    %v881 = vpop.f32.mrb[0].mxu0
    %v882 = vpop.f32.mrb[0].mxu0
    %v883 = vadd.f32 0.0, %v882
    %v884 = vpop.f32.mrb[0].mxu0
    %885 = vdwg.mxu0
    %v887 = vsel %vm443, %v563, 0
    %v890 = vsel %vm841, %v562, 0
    %892 = vmatprep.subr.bf16.mxu0 0
    %893 = vmatpush1.bf16.msra.mxu0 %v890
    %894 = vmatprep.subr.bf16.mxu0 0
    %895 = vmatpush1.bf16.msra.mxu0 0
    %896 = vmatprep.subr.bf16.mxu0 0
    %897 = vmatpush1.bf16.msra.mxu0 0
    %898 = vmatprep.subr.bf16.mxu0 0
    %899 = vmatpush1.bf16.msra.mxu0 0
    %900 = vmatprep.subr.bf16.mxu0 0
    %901 = vmatpush1.bf16.msra.mxu0 0
    %902 = vmatprep.subr.bf16.mxu0 0
    %903 = vmatpush1.bf16.msra.mxu0 0
    %904 = vmatprep.subr.bf16.mxu0 0
    %905 = vmatpush1.bf16.msra.mxu0 0
    %906 = vmatprep.subr.bf16.mxu0 0
    %907 = vmatpush1.bf16.msra.mxu0 0
    %908 = vmatprep.subr.bf16.mxu0 0
    %909 = vmatpush1.bf16.msra.mxu0 0
    %910 = vmatprep.subr.bf16.mxu0 0
    %911 = vmatpush1.bf16.msra.mxu0 0
    %912 = vmatprep.subr.bf16.mxu0 0
    %913 = vmatpush1.bf16.msra.mxu0 0
    %914 = vmatprep.subr.bf16.mxu0 0
    %915 = vmatpush1.bf16.msra.mxu0 0
    %916 = vmatprep.subr.bf16.mxu0 0
    %917 = vmatpush1.bf16.msra.mxu0 0
    %918 = vmatprep.subr.bf16.mxu0 0
    %919 = vmatpush1.bf16.msra.mxu0 0
    %920 = vmatprep.subr.bf16.mxu0 0
    %921 = vmatpush1.bf16.msra.mxu0 0
    %922 = vmatprep.subr.bf16.mxu0 0
    %923 = vmatpush1.bf16.msra.mxu0 0
    %924 = vmatprep.mubr.bf16.mxu0 0
    %925 = vmatmul.mubr.bf16.gmra.mrb[0].mxu0 %v887
    %v926 = vpop.f32.mrb[0].mxu0
    %v927 = vadd.f32 %v880, %v926
    %v928 = vpop.f32.mrb[0].mxu0
    %v929 = vpop.f32.mrb[0].mxu0
    %v930 = vadd.f32 %v883, %v929
    %v931 = vpop.f32.mrb[0].mxu0
    %932 = vdwg.mxu0
    %933 = vrot.lane.b32.xlu0 %v269, 112
    %v934 = vpop.permute.xlu0 %933
    %935 = vrot.lane.b32.xlu0 %v270, 112
    %v936 = vpop.permute.xlu0 %935
    %939 = vrot.lane.b32.xlu0 %v260, 112
    %v940 = vpop.permute.xlu0 %939
    %942 = vmatprep.subr.bf16.mxu0 0
    %943 = vmatpush1.bf16.msra.mxu0 %v934
    %944 = vmatprep.subr.bf16.mxu0 0
    %945 = vmatpush1.bf16.msra.mxu0 %v936
    %946 = vmatprep.subr.bf16.mxu0 0
    %947 = vmatpush1.bf16.msra.mxu0 0
    %948 = vmatprep.subr.bf16.mxu0 0
    %949 = vmatpush1.bf16.msra.mxu0 0
    %950 = vmatprep.subr.bf16.mxu0 0
    %951 = vmatpush1.bf16.msra.mxu0 0
    %952 = vmatprep.subr.bf16.mxu0 0
    %953 = vmatpush1.bf16.msra.mxu0 0
    %954 = vmatprep.subr.bf16.mxu0 0
    %955 = vmatpush1.bf16.msra.mxu0 0
    %956 = vmatprep.subr.bf16.mxu0 0
    %957 = vmatpush1.bf16.msra.mxu0 0
    %958 = vmatprep.subr.bf16.mxu0 0
    %959 = vmatpush1.bf16.msra.mxu0 0
    %960 = vmatprep.subr.bf16.mxu0 0
    %961 = vmatpush1.bf16.msra.mxu0 0
    %962 = vmatprep.subr.bf16.mxu0 0
    %963 = vmatpush1.bf16.msra.mxu0 0
    %964 = vmatprep.subr.bf16.mxu0 0
    %965 = vmatpush1.bf16.msra.mxu0 0
    %966 = vmatprep.subr.bf16.mxu0 0
    %967 = vmatpush1.bf16.msra.mxu0 0
    %968 = vmatprep.subr.bf16.mxu0 0
    %969 = vmatpush1.bf16.msra.mxu0 0
    %970 = vmatprep.subr.bf16.mxu0 0
    %971 = vmatpush1.bf16.msra.mxu0 0
    %972 = vmatprep.subr.bf16.mxu0 0
    %973 = vmatpush1.bf16.msra.mxu0 0
    %974 = vmatprep.mubr.bf16.mxu0 0
    %975 = vmatmul.mubr.bf16.gmra.mrb[0].mxu0 %v274
    %v976 = vpop.f32.mrb[0].mxu0
    %v977 = vadd.f32 %v940, %v976
    %v978 = vpop.f32.mrb[0].mxu0
    %v979 = vpop.f32.mrb[0].mxu0
    %v980 = vadd.f32 %v940, %v979
    %v981 = vpop.f32.mrb[0].mxu0
    %982 = vdwg.mxu0
    %983 = vrot.lane.b32.xlu0 %v334, 112
    %v984 = vpop.permute.xlu0 %983
    %985 = vrot.lane.b32.xlu0 %v335, 112
    %v986 = vpop.permute.xlu0 %985
    %989 = vrot.lane.b32.xlu0 %v325, 112
    %v990 = vpop.permute.xlu0 %989
    %992 = vmatprep.subr.bf16.mxu0 0
    %993 = vmatpush1.bf16.msra.mxu0 %v984
    %994 = vmatprep.subr.bf16.mxu0 0
    %995 = vmatpush1.bf16.msra.mxu0 %v986
    %996 = vmatprep.subr.bf16.mxu0 0
    %997 = vmatpush1.bf16.msra.mxu0 0
    %998 = vmatprep.subr.bf16.mxu0 0
    %999 = vmatpush1.bf16.msra.mxu0 0
    %1000 = vmatprep.subr.bf16.mxu0 0
    %1001 = vmatpush1.bf16.msra.mxu0 0
    %1002 = vmatprep.subr.bf16.mxu0 0
    %1003 = vmatpush1.bf16.msra.mxu0 0
    %1004 = vmatprep.subr.bf16.mxu0 0
    %1005 = vmatpush1.bf16.msra.mxu0 0
    %1006 = vmatprep.subr.bf16.mxu0 0
    %1007 = vmatpush1.bf16.msra.mxu0 0
    %1008 = vmatprep.subr.bf16.mxu0 0
    %1009 = vmatpush1.bf16.msra.mxu0 0
    %1010 = vmatprep.subr.bf16.mxu0 0
    %1011 = vmatpush1.bf16.msra.mxu0 0
    %1012 = vmatprep.subr.bf16.mxu0 0
    %1013 = vmatpush1.bf16.msra.mxu0 0
    %1014 = vmatprep.subr.bf16.mxu0 0
    %1015 = vmatpush1.bf16.msra.mxu0 0
    %1016 = vmatprep.subr.bf16.mxu0 0
    %1017 = vmatpush1.bf16.msra.mxu0 0
    %1018 = vmatprep.subr.bf16.mxu0 0
    %1019 = vmatpush1.bf16.msra.mxu0 0
    %1020 = vmatprep.subr.bf16.mxu0 0
    %1021 = vmatpush1.bf16.msra.mxu0 0
    %1022 = vmatprep.subr.bf16.mxu0 0
    %1023 = vmatpush1.bf16.msra.mxu0 0
    %1024 = vmatprep.mubr.bf16.mxu0 0
    %1025 = vmatmul.mubr.bf16.gmra.mrb[0].mxu0 %v274
    %v1026 = vpop.f32.mrb[0].mxu0
    %v1027 = vadd.f32 %v990, %v1026
    %v1028 = vpop.f32.mrb[0].mxu0
    %v1029 = vpop.f32.mrb[0].mxu0
    %v1030 = vadd.f32 %v990, %v1029
    %v1031 = vpop.f32.mrb[0].mxu0
    %1032 = vdwg.mxu0
    %1033 = vrot.lane.b32.xlu0 %v396, 112
    %v1034 = vpop.permute.xlu0 %1033
    %1035 = vrot.lane.b32.xlu0 %v397, 112
    %v1036 = vpop.permute.xlu0 %1035
    %1039 = vrot.lane.b32.xlu0 %v387, 112
    %v1040 = vpop.permute.xlu0 %1039
    %1042 = vmatprep.subr.bf16.mxu0 0
    %1043 = vmatpush1.bf16.msra.mxu0 %v1034
    %1044 = vmatprep.subr.bf16.mxu0 0
    %1045 = vmatpush1.bf16.msra.mxu0 %v1036
    %1046 = vmatprep.subr.bf16.mxu0 0
    %1047 = vmatpush1.bf16.msra.mxu0 0
    %1048 = vmatprep.subr.bf16.mxu0 0
    %1049 = vmatpush1.bf16.msra.mxu0 0
    %1050 = vmatprep.subr.bf16.mxu0 0
    %1051 = vmatpush1.bf16.msra.mxu0 0
    %1052 = vmatprep.subr.bf16.mxu0 0
    %1053 = vmatpush1.bf16.msra.mxu0 0
    %1054 = vmatprep.subr.bf16.mxu0 0
    %1055 = vmatpush1.bf16.msra.mxu0 0
    %1056 = vmatprep.subr.bf16.mxu0 0
    %1057 = vmatpush1.bf16.msra.mxu0 0
    %1058 = vmatprep.subr.bf16.mxu0 0
    %1059 = vmatpush1.bf16.msra.mxu0 0
    %1060 = vmatprep.subr.bf16.mxu0 0
    %1061 = vmatpush1.bf16.msra.mxu0 0
    %1062 = vmatprep.subr.bf16.mxu0 0
    %1063 = vmatpush1.bf16.msra.mxu0 0
    %1064 = vmatprep.subr.bf16.mxu0 0
    %1065 = vmatpush1.bf16.msra.mxu0 0
    %1066 = vmatprep.subr.bf16.mxu0 0
    %1067 = vmatpush1.bf16.msra.mxu0 0
    %1068 = vmatprep.subr.bf16.mxu0 0
    %1069 = vmatpush1.bf16.msra.mxu0 0
    %1070 = vmatprep.subr.bf16.mxu0 0
    %1071 = vmatpush1.bf16.msra.mxu0 0
    %1072 = vmatprep.subr.bf16.mxu0 0
    %1073 = vmatpush1.bf16.msra.mxu0 0
    %1074 = vmatprep.mubr.bf16.mxu0 0
    %1075 = vmatmul.mubr.bf16.gmra.mrb[0].mxu0 %v274
    %v1076 = vpop.f32.mrb[0].mxu0
    %v1077 = vadd.f32 %v1040, %v1076
    %v1078 = vpop.f32.mrb[0].mxu0
    %v1079 = vpop.f32.mrb[0].mxu0
    %v1080 = vadd.f32 %v1040, %v1079
    %v1081 = vpop.f32.mrb[0].mxu0
    %1082 = vdwg.mxu0
    %v1083 = vpack.c.bf16 %v980, %v977
    %v1084 = vpack.c.bf16 %v1030, %v1027
    %v1086 = vsel %vm443, %v1083, 0
    %v1089 = vsel %vm443, %v1084, 0
    %1091 = vmatprep.subr.bf16.mxu0 0
    %1092 = vmatpush1.bf16.xpose.msra.mxu0 %v1089
    %1093 = vmatprep.subr.bf16.mxu0 0
    %1094 = vmatpush1.bf16.xpose.msra.mxu0 0
    %1095 = vmatprep.subr.bf16.mxu0 0
    %1096 = vmatpush1.bf16.xpose.msra.mxu0 0
    %1097 = vmatprep.subr.bf16.mxu0 0
    %1098 = vmatpush1.bf16.xpose.msra.mxu0 0
    %1099 = vmatprep.subr.bf16.mxu0 0
    %1100 = vmatpush1.bf16.xpose.msra.mxu0 0
    %1101 = vmatprep.subr.bf16.mxu0 0
    %1102 = vmatpush1.bf16.xpose.msra.mxu0 0
    %1103 = vmatprep.subr.bf16.mxu0 0
    %1104 = vmatpush1.bf16.xpose.msra.mxu0 0
    %1105 = vmatprep.subr.bf16.mxu0 0
    %1106 = vmatpush1.bf16.xpose.msra.mxu0 0
    %1107 = vmatprep.subr.bf16.mxu0 0
    %1108 = vmatpush1.bf16.xpose.msra.mxu0 0
    %1109 = vmatprep.subr.bf16.mxu0 0
    %1110 = vmatpush1.bf16.xpose.msra.mxu0 0
    %1111 = vmatprep.subr.bf16.mxu0 0
    %1112 = vmatpush1.bf16.xpose.msra.mxu0 0
    %1113 = vmatprep.subr.bf16.mxu0 0
    %1114 = vmatpush1.bf16.xpose.msra.mxu0 0
    %1115 = vmatprep.subr.bf16.mxu0 0
    %1116 = vmatpush1.bf16.xpose.msra.mxu0 0
    %1117 = vmatprep.subr.bf16.mxu0 0
    %1118 = vmatpush1.bf16.xpose.msra.mxu0 0
    %1119 = vmatprep.subr.bf16.mxu0 0
    %1120 = vmatpush1.bf16.xpose.msra.mxu0 0
    %1121 = vmatprep.subr.bf16.mxu0 0
    %1122 = vmatpush1.bf16.xpose.msra.mxu0 0
    %1123 = vmatprep.mubr.bf16.mxu0 0
    %1124 = vmatmul.mubr.bf16.gmra.mrb[0].mxu0 %v1086
    %v1125 = vpop.f32.mrb[0].mxu0
    %v1126 = vadd.f32 0.0, %v1125
    %v1127 = vpop.f32.mrb[0].mxu0
    %v1128 = vpop.f32.mrb[0].mxu0
    %v1129 = vadd.f32 0.0, %v1128
    %v1130 = vpop.f32.mrb[0].mxu0
    %1131 = vdwg.mxu0
    %v1132 = vsel %vm249, %v1126, -1e+09
    %v1133 = vsel %vm250, %v1129, -1e+09
    %v1134 = vsel %vm493, %v1132, -inf
    %1135 = vmax.xlane.f32.xlu0 %v1134
    %v1136 = vpop.xlane.xlu0 %1135
    %v1137 = vsel %vm493, %v1133, -inf
    %1138 = vmax.xlane.f32.xlu0 %v1137
    %v1139 = vpop.xlane.xlu0 %1138
    %v1140 = vsub.f32 %v1132, %v1136
    %v1141 = vsub.f32 %v1133, %v1139
    %v1142 = vmul.f32 %v1140, 1.442695
    %v1143 = vpow.pop %v1142
    %v1144 = vmul.f32 %v1141, 1.442695
    %v1145 = vpow.pop %v1144
    %v1146 = vsel %vm493, %v1143, 0.0
    %1147 = vadd.xlane.f32.xlu0 %v1146
    %v1148 = vpop.xlane.xlu0 %1147
    %v1149 = vsel %vm493, %v1145, 0.0
    %1150 = vadd.xlane.f32.xlu0 %v1149
    %v1151 = vpop.xlane.xlu0 %1150
    %v1152 = vrcp.pop %v1148
    %v1153 = vrcp.pop %v1151
    %v1154 = vmul.f32 %v1143, %v1152
    %v1155 = vmul.f32 %v1145, %v1153
    %v1156 = vpack.c.bf16 %v1155, %v1154
    %v1157 = vpack.c.bf16 %v1080, %v1077
    %v1159 = vsel %vm493, %v1156, 0
    %1161 = vmatprep.subr.bf16.mxu0 0
    %1162 = vmatpush1.bf16.msra.mxu0 %v1157
    %1163 = vmatprep.subr.bf16.mxu0 0
    %1164 = vmatpush1.bf16.msra.mxu0 0
    %1165 = vmatprep.subr.bf16.mxu0 0
    %1166 = vmatpush1.bf16.msra.mxu0 0
    %1167 = vmatprep.subr.bf16.mxu0 0
    %1168 = vmatpush1.bf16.msra.mxu0 0
    %1169 = vmatprep.subr.bf16.mxu0 0
    %1170 = vmatpush1.bf16.msra.mxu0 0
    %1171 = vmatprep.subr.bf16.mxu0 0
    %1172 = vmatpush1.bf16.msra.mxu0 0
    %1173 = vmatprep.subr.bf16.mxu0 0
    %1174 = vmatpush1.bf16.msra.mxu0 0
    %1175 = vmatprep.subr.bf16.mxu0 0
    %1176 = vmatpush1.bf16.msra.mxu0 0
    %1177 = vmatprep.subr.bf16.mxu0 0
    %1178 = vmatpush1.bf16.msra.mxu0 0
    %1179 = vmatprep.subr.bf16.mxu0 0
    %1180 = vmatpush1.bf16.msra.mxu0 0
    %1181 = vmatprep.subr.bf16.mxu0 0
    %1182 = vmatpush1.bf16.msra.mxu0 0
    %1183 = vmatprep.subr.bf16.mxu0 0
    %1184 = vmatpush1.bf16.msra.mxu0 0
    %1185 = vmatprep.subr.bf16.mxu0 0
    %1186 = vmatpush1.bf16.msra.mxu0 0
    %1187 = vmatprep.subr.bf16.mxu0 0
    %1188 = vmatpush1.bf16.msra.mxu0 0
    %1189 = vmatprep.subr.bf16.mxu0 0
    %1190 = vmatpush1.bf16.msra.mxu0 0
    %1191 = vmatprep.subr.bf16.mxu0 0
    %1192 = vmatpush1.bf16.msra.mxu0 0
    %1193 = vmatprep.mubr.bf16.mxu0 0
    %1194 = vmatmul.mubr.bf16.gmra.mrb[0].mxu0 %v1159
    %v1195 = vpop.f32.mrb[0].mxu0
    %v1196 = vadd.f32 0.0, %v1195
    %v1197 = vpop.f32.mrb[0].mxu0
    %v1198 = vpop.f32.mrb[0].mxu0
    %v1199 = vadd.f32 0.0, %v1198
    %v1200 = vpop.f32.mrb[0].mxu0
    %1201 = vdwg.mxu0
    %v1202 = vld [vmem:[#allocation2 + $0x78] sm:$0xf]
    %v1203 = vpack.c.bf16 %v1199, %v1196
    %v1205 = vsel %vm443, %v1203, 0
    %v1208 = vsel %vm841, %v1202, 0
    %1210 = vmatprep.subr.bf16.mxu0 0
    %1211 = vmatpush1.bf16.msra.mxu0 %v1208
    %1212 = vmatprep.subr.bf16.mxu0 0
    %1213 = vmatpush1.bf16.msra.mxu0 0
    %1214 = vmatprep.subr.bf16.mxu0 0
    %1215 = vmatpush1.bf16.msra.mxu0 0
    %1216 = vmatprep.subr.bf16.mxu0 0
    %1217 = vmatpush1.bf16.msra.mxu0 0
    %1218 = vmatprep.subr.bf16.mxu0 0
    %1219 = vmatpush1.bf16.msra.mxu0 0
    %1220 = vmatprep.subr.bf16.mxu0 0
    %1221 = vmatpush1.bf16.msra.mxu0 0
    %1222 = vmatprep.subr.bf16.mxu0 0
    %1223 = vmatpush1.bf16.msra.mxu0 0
    %1224 = vmatprep.subr.bf16.mxu0 0
    %1225 = vmatpush1.bf16.msra.mxu0 0
    %1226 = vmatprep.subr.bf16.mxu0 0
    %1227 = vmatpush1.bf16.msra.mxu0 0
    %1228 = vmatprep.subr.bf16.mxu0 0
    %1229 = vmatpush1.bf16.msra.mxu0 0
    %1230 = vmatprep.subr.bf16.mxu0 0
    %1231 = vmatpush1.bf16.msra.mxu0 0
    %1232 = vmatprep.subr.bf16.mxu0 0
    %1233 = vmatpush1.bf16.msra.mxu0 0
    %1234 = vmatprep.subr.bf16.mxu0 0
    %1235 = vmatpush1.bf16.msra.mxu0 0
    %1236 = vmatprep.subr.bf16.mxu0 0
    %1237 = vmatpush1.bf16.msra.mxu0 0
    %1238 = vmatprep.subr.bf16.mxu0 0
    %1239 = vmatpush1.bf16.msra.mxu0 0
    %1240 = vmatprep.subr.bf16.mxu0 0
    %1241 = vmatpush1.bf16.msra.mxu0 0
    %1242 = vmatprep.mubr.bf16.mxu0 0
    %1243 = vmatmul.mubr.bf16.gmra.mrb[0].mxu0 %v1205
    %v1244 = vpop.f32.mrb[0].mxu0
    %v1245 = vadd.f32 0.0, %v1244
    %v1246 = vpop.f32.mrb[0].mxu0
    %v1247 = vpop.f32.mrb[0].mxu0
    %v1248 = vadd.f32 0.0, %v1247
    %v1249 = vpop.f32.mrb[0].mxu0
    %1250 = vdwg.mxu0
    %v1251 = vadd.f32 %v927, %v1245
    %v1252 = vadd.f32 %v930, %v1248
    %1253 = vrot.lane.b32.xlu0 %v269, 104
    %v1254 = vpop.permute.xlu0 %1253
    %1255 = vrot.lane.b32.xlu0 %v270, 104
    %v1256 = vpop.permute.xlu0 %1255
    %1259 = vrot.lane.b32.xlu0 %v260, 104
    %v1260 = vpop.permute.xlu0 %1259
    %1262 = vmatprep.subr.bf16.mxu0 0
    %1263 = vmatpush1.bf16.msra.mxu0 %v1254
    %1264 = vmatprep.subr.bf16.mxu0 0
    %1265 = vmatpush1.bf16.msra.mxu0 %v1256
    %1266 = vmatprep.subr.bf16.mxu0 0
    %1267 = vmatpush1.bf16.msra.mxu0 0
    %1268 = vmatprep.subr.bf16.mxu0 0
    %1269 = vmatpush1.bf16.msra.mxu0 0
    %1270 = vmatprep.subr.bf16.mxu0 0
    %1271 = vmatpush1.bf16.msra.mxu0 0
    %1272 = vmatprep.subr.bf16.mxu0 0
    %1273 = vmatpush1.bf16.msra.mxu0 0
    %1274 = vmatprep.subr.bf16.mxu0 0
    %1275 = vmatpush1.bf16.msra.mxu0 0
    %1276 = vmatprep.subr.bf16.mxu0 0
    %1277 = vmatpush1.bf16.msra.mxu0 0
    %1278 = vmatprep.subr.bf16.mxu0 0
    %1279 = vmatpush1.bf16.msra.mxu0 0
    %1280 = vmatprep.subr.bf16.mxu0 0
    %1281 = vmatpush1.bf16.msra.mxu0 0
    %1282 = vmatprep.subr.bf16.mxu0 0
    %1283 = vmatpush1.bf16.msra.mxu0 0
    %1284 = vmatprep.subr.bf16.mxu0 0
    %1285 = vmatpush1.bf16.msra.mxu0 0
    %1286 = vmatprep.subr.bf16.mxu0 0
    %1287 = vmatpush1.bf16.msra.mxu0 0
    %1288 = vmatprep.subr.bf16.mxu0 0
    %1289 = vmatpush1.bf16.msra.mxu0 0
    %1290 = vmatprep.subr.bf16.mxu0 0
    %1291 = vmatpush1.bf16.msra.mxu0 0
    %1292 = vmatprep.subr.bf16.mxu0 0
    %1293 = vmatpush1.bf16.msra.mxu0 0
    %1294 = vmatprep.mubr.bf16.mxu0 0
    %1295 = vmatmul.mubr.bf16.gmra.mrb[0].mxu0 %v274
    %v1296 = vpop.f32.mrb[0].mxu0
    %v1297 = vadd.f32 %v1260, %v1296
    %v1298 = vpop.f32.mrb[0].mxu0
    %v1299 = vpop.f32.mrb[0].mxu0
    %v1300 = vadd.f32 %v1260, %v1299
    %v1301 = vpop.f32.mrb[0].mxu0
    %1302 = vdwg.mxu0
    %1303 = vrot.lane.b32.xlu0 %v334, 104
    %v1304 = vpop.permute.xlu0 %1303
    %1305 = vrot.lane.b32.xlu0 %v335, 104
    %v1306 = vpop.permute.xlu0 %1305
    %1309 = vrot.lane.b32.xlu0 %v325, 104
    %v1310 = vpop.permute.xlu0 %1309
    %1312 = vmatprep.subr.bf16.mxu0 0
    %1313 = vmatpush1.bf16.msra.mxu0 %v1304
    %1314 = vmatprep.subr.bf16.mxu0 0
    %1315 = vmatpush1.bf16.msra.mxu0 %v1306
    %1316 = vmatprep.subr.bf16.mxu0 0
    %1317 = vmatpush1.bf16.msra.mxu0 0
    %1318 = vmatprep.subr.bf16.mxu0 0
    %1319 = vmatpush1.bf16.msra.mxu0 0
    %1320 = vmatprep.subr.bf16.mxu0 0
    %1321 = vmatpush1.bf16.msra.mxu0 0
    %1322 = vmatprep.subr.bf16.mxu0 0
    %1323 = vmatpush1.bf16.msra.mxu0 0
    %1324 = vmatprep.subr.bf16.mxu0 0
    %1325 = vmatpush1.bf16.msra.mxu0 0
    %1326 = vmatprep.subr.bf16.mxu0 0
    %1327 = vmatpush1.bf16.msra.mxu0 0
    %1328 = vmatprep.subr.bf16.mxu0 0
    %1329 = vmatpush1.bf16.msra.mxu0 0
    %1330 = vmatprep.subr.bf16.mxu0 0
    %1331 = vmatpush1.bf16.msra.mxu0 0
    %1332 = vmatprep.subr.bf16.mxu0 0
    %1333 = vmatpush1.bf16.msra.mxu0 0
    %1334 = vmatprep.subr.bf16.mxu0 0
    %1335 = vmatpush1.bf16.msra.mxu0 0
    %1336 = vmatprep.subr.bf16.mxu0 0
    %1337 = vmatpush1.bf16.msra.mxu0 0
    %1338 = vmatprep.subr.bf16.mxu0 0
    %1339 = vmatpush1.bf16.msra.mxu0 0
    %1340 = vmatprep.subr.bf16.mxu0 0
    %1341 = vmatpush1.bf16.msra.mxu0 0
    %1342 = vmatprep.subr.bf16.mxu0 0
    %1343 = vmatpush1.bf16.msra.mxu0 0
    %1344 = vmatprep.mubr.bf16.mxu0 0
    %1345 = vmatmul.mubr.bf16.gmra.mrb[0].mxu0 %v274
    %v1346 = vpop.f32.mrb[0].mxu0
    %v1347 = vadd.f32 %v1310, %v1346
    %v1348 = vpop.f32.mrb[0].mxu0
    %v1349 = vpop.f32.mrb[0].mxu0
    %v1350 = vadd.f32 %v1310, %v1349
    %v1351 = vpop.f32.mrb[0].mxu0
    %1352 = vdwg.mxu0
    %1353 = vrot.lane.b32.xlu0 %v396, 104
    %v1354 = vpop.permute.xlu0 %1353
    %1355 = vrot.lane.b32.xlu0 %v397, 104
    %v1356 = vpop.permute.xlu0 %1355
    %1359 = vrot.lane.b32.xlu0 %v387, 104
    %v1360 = vpop.permute.xlu0 %1359
    %1362 = vmatprep.subr.bf16.mxu0 0
    %1363 = vmatpush1.bf16.msra.mxu0 %v1354
    %1364 = vmatprep.subr.bf16.mxu0 0
    %1365 = vmatpush1.bf16.msra.mxu0 %v1356
    %1366 = vmatprep.subr.bf16.mxu0 0
    %1367 = vmatpush1.bf16.msra.mxu0 0
    %1368 = vmatprep.subr.bf16.mxu0 0
    %1369 = vmatpush1.bf16.msra.mxu0 0
    %1370 = vmatprep.subr.bf16.mxu0 0
    %1371 = vmatpush1.bf16.msra.mxu0 0
    %1372 = vmatprep.subr.bf16.mxu0 0
    %1373 = vmatpush1.bf16.msra.mxu0 0
    %1374 = vmatprep.subr.bf16.mxu0 0
    %1375 = vmatpush1.bf16.msra.mxu0 0
    %1376 = vmatprep.subr.bf16.mxu0 0
    %1377 = vmatpush1.bf16.msra.mxu0 0
    %1378 = vmatprep.subr.bf16.mxu0 0
    %1379 = vmatpush1.bf16.msra.mxu0 0
    %1380 = vmatprep.subr.bf16.mxu0 0
    %1381 = vmatpush1.bf16.msra.mxu0 0
    %1382 = vmatprep.subr.bf16.mxu0 0
    %1383 = vmatpush1.bf16.msra.mxu0 0
    %1384 = vmatprep.subr.bf16.mxu0 0
    %1385 = vmatpush1.bf16.msra.mxu0 0
    %1386 = vmatprep.subr.bf16.mxu0 0
    %1387 = vmatpush1.bf16.msra.mxu0 0
    %1388 = vmatprep.subr.bf16.mxu0 0
    %1389 = vmatpush1.bf16.msra.mxu0 0
    %1390 = vmatprep.subr.bf16.mxu0 0
    %1391 = vmatpush1.bf16.msra.mxu0 0
    %1392 = vmatprep.subr.bf16.mxu0 0
    %1393 = vmatpush1.bf16.msra.mxu0 0
    %1394 = vmatprep.mubr.bf16.mxu0 0
    %1395 = vmatmul.mubr.bf16.gmra.mrb[0].mxu0 %v274
    %v1396 = vpop.f32.mrb[0].mxu0
    %v1397 = vadd.f32 %v1360, %v1396
    %v1398 = vpop.f32.mrb[0].mxu0
    %v1399 = vpop.f32.mrb[0].mxu0
    %v1400 = vadd.f32 %v1360, %v1399
    %v1401 = vpop.f32.mrb[0].mxu0
    %1402 = vdwg.mxu0
    %v1403 = vpack.c.bf16 %v1300, %v1297
    %v1404 = vpack.c.bf16 %v1350, %v1347
    %v1406 = vsel %vm443, %v1403, 0
    %v1409 = vsel %vm443, %v1404, 0
    %1411 = vmatprep.subr.bf16.mxu0 0
    %1412 = vmatpush1.bf16.xpose.msra.mxu0 %v1409
    %1413 = vmatprep.subr.bf16.mxu0 0
    %1414 = vmatpush1.bf16.xpose.msra.mxu0 0
    %1415 = vmatprep.subr.bf16.mxu0 0
    %1416 = vmatpush1.bf16.xpose.msra.mxu0 0
    %1417 = vmatprep.subr.bf16.mxu0 0
    %1418 = vmatpush1.bf16.xpose.msra.mxu0 0
    %1419 = vmatprep.subr.bf16.mxu0 0
    %1420 = vmatpush1.bf16.xpose.msra.mxu0 0
    %1421 = vmatprep.subr.bf16.mxu0 0
    %1422 = vmatpush1.bf16.xpose.msra.mxu0 0
    %1423 = vmatprep.subr.bf16.mxu0 0
    %1424 = vmatpush1.bf16.xpose.msra.mxu0 0
    %1425 = vmatprep.subr.bf16.mxu0 0
    %1426 = vmatpush1.bf16.xpose.msra.mxu0 0
    %1427 = vmatprep.subr.bf16.mxu0 0
    %1428 = vmatpush1.bf16.xpose.msra.mxu0 0
    %1429 = vmatprep.subr.bf16.mxu0 0
    %1430 = vmatpush1.bf16.xpose.msra.mxu0 0
    %1431 = vmatprep.subr.bf16.mxu0 0
    %1432 = vmatpush1.bf16.xpose.msra.mxu0 0
    %1433 = vmatprep.subr.bf16.mxu0 0
    %1434 = vmatpush1.bf16.xpose.msra.mxu0 0
    %1435 = vmatprep.subr.bf16.mxu0 0
    %1436 = vmatpush1.bf16.xpose.msra.mxu0 0
    %1437 = vmatprep.subr.bf16.mxu0 0
    %1438 = vmatpush1.bf16.xpose.msra.mxu0 0
    %1439 = vmatprep.subr.bf16.mxu0 0
    %1440 = vmatpush1.bf16.xpose.msra.mxu0 0
    %1441 = vmatprep.subr.bf16.mxu0 0
    %1442 = vmatpush1.bf16.xpose.msra.mxu0 0
    %1443 = vmatprep.mubr.bf16.mxu0 0
    %1444 = vmatmul.mubr.bf16.gmra.mrb[0].mxu0 %v1406
    %v1445 = vpop.f32.mrb[0].mxu0
    %v1446 = vadd.f32 0.0, %v1445
    %v1447 = vpop.f32.mrb[0].mxu0
    %v1448 = vpop.f32.mrb[0].mxu0
    %v1449 = vadd.f32 0.0, %v1448
    %v1450 = vpop.f32.mrb[0].mxu0
    %1451 = vdwg.mxu0
    %v1452 = vsel %vm249, %v1446, -1e+09
    %v1453 = vsel %vm250, %v1449, -1e+09
    %v1454 = vsel %vm493, %v1452, -inf
    %1455 = vmax.xlane.f32.xlu0 %v1454
    %v1456 = vpop.xlane.xlu0 %1455
    %v1457 = vsel %vm493, %v1453, -inf
    %1458 = vmax.xlane.f32.xlu0 %v1457
    %v1459 = vpop.xlane.xlu0 %1458
    %v1460 = vsub.f32 %v1452, %v1456
    %v1461 = vsub.f32 %v1453, %v1459
    %v1462 = vmul.f32 %v1460, 1.442695
    %v1463 = vpow.pop %v1462
    %v1464 = vmul.f32 %v1461, 1.442695
    %v1465 = vpow.pop %v1464
    %v1466 = vsel %vm493, %v1463, 0.0
    %1467 = vadd.xlane.f32.xlu0 %v1466
    %v1468 = vpop.xlane.xlu0 %1467
    %v1469 = vsel %vm493, %v1465, 0.0
    %1470 = vadd.xlane.f32.xlu0 %v1469
    %v1471 = vpop.xlane.xlu0 %1470
    %v1472 = vrcp.pop %v1468
    %v1473 = vrcp.pop %v1471
    %v1474 = vmul.f32 %v1463, %v1472
    %v1475 = vmul.f32 %v1465, %v1473
    %v1476 = vpack.c.bf16 %v1475, %v1474
    %v1477 = vpack.c.bf16 %v1400, %v1397
    %v1479 = vsel %vm493, %v1476, 0
    %1481 = vmatprep.subr.bf16.mxu0 0
    %1482 = vmatpush1.bf16.msra.mxu0 %v1477
    %1483 = vmatprep.subr.bf16.mxu0 0
    %1484 = vmatpush1.bf16.msra.mxu0 0
    %1485 = vmatprep.subr.bf16.mxu0 0
    %1486 = vmatpush1.bf16.msra.mxu0 0
    %1487 = vmatprep.subr.bf16.mxu0 0
    %1488 = vmatpush1.bf16.msra.mxu0 0
    %1489 = vmatprep.subr.bf16.mxu0 0
    %1490 = vmatpush1.bf16.msra.mxu0 0
    %1491 = vmatprep.subr.bf16.mxu0 0
    %1492 = vmatpush1.bf16.msra.mxu0 0
    %1493 = vmatprep.subr.bf16.mxu0 0
    %1494 = vmatpush1.bf16.msra.mxu0 0
    %1495 = vmatprep.subr.bf16.mxu0 0
    %1496 = vmatpush1.bf16.msra.mxu0 0
    %1497 = vmatprep.subr.bf16.mxu0 0
    %1498 = vmatpush1.bf16.msra.mxu0 0
    %1499 = vmatprep.subr.bf16.mxu0 0
    %1500 = vmatpush1.bf16.msra.mxu0 0
    %1501 = vmatprep.subr.bf16.mxu0 0
    %1502 = vmatpush1.bf16.msra.mxu0 0
    %1503 = vmatprep.subr.bf16.mxu0 0
    %1504 = vmatpush1.bf16.msra.mxu0 0
    %1505 = vmatprep.subr.bf16.mxu0 0
    %1506 = vmatpush1.bf16.msra.mxu0 0
    %1507 = vmatprep.subr.bf16.mxu0 0
    %1508 = vmatpush1.bf16.msra.mxu0 0
    %1509 = vmatprep.subr.bf16.mxu0 0
    %1510 = vmatpush1.bf16.msra.mxu0 0
    %1511 = vmatprep.subr.bf16.mxu0 0
    %1512 = vmatpush1.bf16.msra.mxu0 0
    %1513 = vmatprep.mubr.bf16.mxu0 0
    %1514 = vmatmul.mubr.bf16.gmra.mrb[0].mxu0 %v1479
    %v1515 = vpop.f32.mrb[0].mxu0
    %v1516 = vadd.f32 0.0, %v1515
    %v1517 = vpop.f32.mrb[0].mxu0
    %v1518 = vpop.f32.mrb[0].mxu0
    %v1519 = vadd.f32 0.0, %v1518
    %v1520 = vpop.f32.mrb[0].mxu0
    %1521 = vdwg.mxu0
    %v1522 = vld [vmem:[#allocation2 + $0x7c] sm:$0xf]
    %v1523 = vpack.c.bf16 %v1519, %v1516
    %v1525 = vsel %vm443, %v1523, 0
    %v1528 = vsel %vm841, %v1522, 0
    %1530 = vmatprep.subr.bf16.mxu0 0
    %1531 = vmatpush1.bf16.msra.mxu0 %v1528
    %1532 = vmatprep.subr.bf16.mxu0 0
    %1533 = vmatpush1.bf16.msra.mxu0 0
    %1534 = vmatprep.subr.bf16.mxu0 0
    %1535 = vmatpush1.bf16.msra.mxu0 0
    %1536 = vmatprep.subr.bf16.mxu0 0
    %1537 = vmatpush1.bf16.msra.mxu0 0
    %1538 = vmatprep.subr.bf16.mxu0 0
    %1539 = vmatpush1.bf16.msra.mxu0 0
    %1540 = vmatprep.subr.bf16.mxu0 0
    %1541 = vmatpush1.bf16.msra.mxu0 0
    %1542 = vmatprep.subr.bf16.mxu0 0
    %1543 = vmatpush1.bf16.msra.mxu0 0
    %1544 = vmatprep.subr.bf16.mxu0 0
    %1545 = vmatpush1.bf16.msra.mxu0 0
    %1546 = vmatprep.subr.bf16.mxu0 0
    %1547 = vmatpush1.bf16.msra.mxu0 0
    %1548 = vmatprep.subr.bf16.mxu0 0
    %1549 = vmatpush1.bf16.msra.mxu0 0
    %1550 = vmatprep.subr.bf16.mxu0 0
    %1551 = vmatpush1.bf16.msra.mxu0 0
    %1552 = vmatprep.subr.bf16.mxu0 0
    %1553 = vmatpush1.bf16.msra.mxu0 0
    %1554 = vmatprep.subr.bf16.mxu0 0
    %1555 = vmatpush1.bf16.msra.mxu0 0
    %1556 = vmatprep.subr.bf16.mxu0 0
    %1557 = vmatpush1.bf16.msra.mxu0 0
    %1558 = vmatprep.subr.bf16.mxu0 0
    %1559 = vmatpush1.bf16.msra.mxu0 0
    %1560 = vmatprep.subr.bf16.mxu0 0
    %1561 = vmatpush1.bf16.msra.mxu0 0
    %1562 = vmatprep.mubr.bf16.mxu0 0
    %1563 = vmatmul.mubr.bf16.gmra.mrb[0].mxu0 %v1525
    %v1564 = vpop.f32.mrb[0].mxu0
    %v1565 = vadd.f32 0.0, %v1564
    %v1566 = vpop.f32.mrb[0].mxu0
    %v1567 = vpop.f32.mrb[0].mxu0
    %v1568 = vadd.f32 0.0, %v1567
    %v1569 = vpop.f32.mrb[0].mxu0
    %1570 = vdwg.mxu0
    %v1571 = vadd.f32 %v1251, %v1565
    %v1572 = vadd.f32 %v1252, %v1568
    %v1573 = vld [vmem:[#allocation5 + $0x3] sm:$0x1]
    %v1574 = vlaneseq
    %v1575 = vshrl.u32 %v1574, 7
    %v1576 = vsub.s32 0, %v1575
    %v1577 = vrot.slane %v1573, %v1576
    %v1578 = vadd.f32 %v1571, %v1577
    %v1579 = vadd.f32 %v1572, %v1577
    %v1580 = vadd.f32 %v210, %v1578
    %v1581 = vadd.f32 %v211, %v1579
    %v1582 = vld [vmem:[#allocation5 + $0x4] sm:$0x1]
    %v1583 = vld [vmem:[#allocation5 + $0x5] sm:$0x1]
    %v1584 = vsel %vm172, %v1580, 0.0
    %1585 = vadd.xlane.f32.xlu0 %v1584
    %v1586 = vpop.xlane.xlu0 %1585
    %v1587 = vsel %vm172, %v1581, 0.0
    %1588 = vadd.xlane.f32.xlu0 %v1587
    %v1589 = vpop.xlane.xlu0 %1588
    %v1590 = vmul.f32 %v1586, %v179
    %v1591 = vmul.f32 %v1589, %v179
    %v1592 = vsub.f32 %v1580, %v1590
    %v1593 = vsub.f32 %v1581, %v1591
    %v1594 = vmul.f32 %v1592, %v1592
    %v1595 = vmul.f32 %v1593, %v1593
    %v1596 = vsel %vm172, %v1594, 0.0
    %1597 = vadd.xlane.f32.xlu0 %v1596
    %v1598 = vpop.xlane.xlu0 %1597
    %v1599 = vsel %vm172, %v1595, 0.0
    %1600 = vadd.xlane.f32.xlu0 %v1599
    %v1601 = vpop.xlane.xlu0 %1600
    %v1602 = vmul.f32 %v1598, %v179
    %v1603 = vmul.f32 %v1601, %v179
    %v1604 = vadd.f32 %v1602, 1e-12
    %v1605 = vadd.f32 %v1603, 1e-12
    %v1606 = vrsqrt.pop %v1604
    %v1607 = vrsqrt.pop %v1605
    %v1608 = vmul.f32 %v1592, %v1606
    %v1609 = vmul.f32 %v1593, %v1607
    %v1610 = vlaneseq
    %v1611 = vshrl.u32 %v1610, 7
    %v1612 = vsub.s32 0, %v1611
    %v1613 = vrot.slane %v1582, %v1612
    %v1614 = vmul.f32 %v1608, %v1613
    %v1615 = vmul.f32 %v1609, %v1613
    %v1616 = vlaneseq
    %v1617 = vshrl.u32 %v1616, 7
    %v1618 = vsub.s32 0, %v1617
    %v1619 = vrot.slane %v1583, %v1618
    %v1620 = vadd.f32 %v1614, %v1619
    %v1621 = vadd.f32 %v1615, %v1619
    %v1622 = vpack.c.bf16 %v1621, %v1620
    %v1623 = vld [vmem:[#allocation2 + $0x80] sm:$0xf]
    %v1624 = vld [vmem:[#allocation2 + $0x84] sm:$0xf]
    %v1625 = vld [vmem:[#allocation2 + $0x88] sm:$0xf]
    %v1626 = vld [vmem:[#allocation2 + $0x8c] sm:$0xf]
    %v1627 = vld [vmem:[#allocation5 + $0x6] sm:$0x1]
    %v1628 = vlaneseq
    %v1629 = vshrl.u32 %v1628, 7
    %v1630 = vsub.s32 0, %v1629
    %v1631 = vrot.slane %v1627, %v1630
    %v1636 = vunpack.c.l.b16 %v1623
    %v1637 = vunpack.c.l.b16 %v1624
    %v1638 = vunpack.c.l.b16 %v1625
    %v1639 = vunpack.c.l.b16 %v1626
    %v1640 = vpack.c.b16 %v1637, %v1636
    %v1641 = vpack.c.b16 %v1639, %v1638
    %v1645 = vsel %vm172, %v1622, 0
    %1647 = vmatprep.subr.bf16.mxu0 0
    %1648 = vmatpush1.bf16.msra.mxu0 %v1640
    %1649 = vmatprep.subr.bf16.mxu0 0
    %1650 = vmatpush1.bf16.msra.mxu0 %v1641
    %1651 = vmatprep.subr.bf16.mxu0 0
    %1652 = vmatpush1.bf16.msra.mxu0 0
    %1653 = vmatprep.subr.bf16.mxu0 0
    %1654 = vmatpush1.bf16.msra.mxu0 0
    %1655 = vmatprep.subr.bf16.mxu0 0
    %1656 = vmatpush1.bf16.msra.mxu0 0
    %1657 = vmatprep.subr.bf16.mxu0 0
    %1658 = vmatpush1.bf16.msra.mxu0 0
    %1659 = vmatprep.subr.bf16.mxu0 0
    %1660 = vmatpush1.bf16.msra.mxu0 0
    %1661 = vmatprep.subr.bf16.mxu0 0
    %1662 = vmatpush1.bf16.msra.mxu0 0
    %1663 = vmatprep.subr.bf16.mxu0 0
    %1664 = vmatpush1.bf16.msra.mxu0 0
    %1665 = vmatprep.subr.bf16.mxu0 0
    %1666 = vmatpush1.bf16.msra.mxu0 0
    %1667 = vmatprep.subr.bf16.mxu0 0
    %1668 = vmatpush1.bf16.msra.mxu0 0
    %1669 = vmatprep.subr.bf16.mxu0 0
    %1670 = vmatpush1.bf16.msra.mxu0 0
    %1671 = vmatprep.subr.bf16.mxu0 0
    %1672 = vmatpush1.bf16.msra.mxu0 0
    %1673 = vmatprep.subr.bf16.mxu0 0
    %1674 = vmatpush1.bf16.msra.mxu0 0
    %1675 = vmatprep.subr.bf16.mxu0 0
    %1676 = vmatpush1.bf16.msra.mxu0 0
    %1677 = vmatprep.subr.bf16.mxu0 0
    %1678 = vmatpush1.bf16.msra.mxu0 0
    %1679 = vmatprep.mubr.bf16.mxu0 0
    %1680 = vmatmul.mubr.bf16.gmra.mrb[0].mxu0 %v1645
    %v1681 = vpop.f32.mrb[0].mxu0
    %v1682 = vadd.f32 %v1631, %v1681
    %v1683 = vpop.f32.mrb[0].mxu0
    %v1684 = vpop.f32.mrb[0].mxu0
    %v1685 = vadd.f32 %v1631, %v1684
    %v1686 = vpop.f32.mrb[0].mxu0
    %1687 = vdwg.mxu0
    %v1688 = vmul.f32 %v1682, %v1682
    %v1689 = vmul.f32 %v1685, %v1685
    %v1690 = vmul.f32 %v1682, %v1688
    %v1691 = vmul.f32 %v1685, %v1689
    %v1692 = vmul.f32 %v1690, 0.044715
    %v1693 = vmul.f32 %v1691, 0.044715
    %v1694 = vadd.f32 %v1682, %v1692
    %v1695 = vadd.f32 %v1685, %v1693
    %v1696 = vmul.f32 %v1694, 0.7978846
    %v1697 = vmul.f32 %v1695, 0.7978846
    %v1698 = vtanh.pop %v1696
    %v1699 = vtanh.pop %v1697
    %v1700 = vadd.f32 %v1698, 1.0
    %v1701 = vadd.f32 %v1699, 1.0
    %v1702 = vmul.f32 %v1700, 0.5
    %v1703 = vmul.f32 %v1701, 0.5
    %v1704 = vmul.f32 %v1682, %v1702
    %v1705 = vmul.f32 %v1685, %v1703
    %v1706 = vpack.c.bf16 %v1705, %v1704
    %v1707 = vld [vmem:[#allocation2 + $0x90] sm:$0xf]
    %v1708 = vld [vmem:[#allocation2 + $0x94] sm:$0xf]
    %v1709 = vld [vmem:[#allocation2 + $0x98] sm:$0xf]
    %v1710 = vld [vmem:[#allocation2 + $0x9c] sm:$0xf]
    %v1711 = vld [vmem:[#allocation2 + $0xa0] sm:$0xf]
    %v1712 = vld [vmem:[#allocation2 + $0xa4] sm:$0xf]
    %v1713 = vld [vmem:[#allocation2 + $0xa8] sm:$0xf]
    %v1714 = vld [vmem:[#allocation2 + $0xac] sm:$0xf]
    %v1715 = vld [vmem:[#allocation5 + $0x7] sm:$0x1]
    %v1716 = vlaneseq
    %v1717 = vshrl.u32 %v1716, 7
    %v1718 = vsub.s32 0, %v1717
    %v1719 = vrot.slane %v1715, %v1718
    %v1728 = vunpack.c.l.b16 %v1707
    %v1729 = vunpack.c.l.b16 %v1708
    %v1730 = vunpack.c.l.b16 %v1709
    %v1731 = vunpack.c.l.b16 %v1710
    %v1732 = vunpack.c.l.b16 %v1711
    %v1733 = vunpack.c.l.b16 %v1712
    %v1734 = vunpack.c.l.b16 %v1713
    %v1735 = vunpack.c.l.b16 %v1714
    %v1736 = vpack.c.b16 %v1729, %v1728
    %v1737 = vpack.c.b16 %v1731, %v1730
    %v1738 = vpack.c.b16 %v1733, %v1732
    %v1739 = vpack.c.b16 %v1735, %v1734
    %vm1744 = vcmask 523264
    %v1746 = vsel %vm1744, %v1706, 0
    %1748 = vmatprep.subr.bf16.mxu0 0
    %1749 = vmatpush1.bf16.msra.mxu0 %v1736
    %1750 = vmatprep.subr.bf16.mxu0 0
    %1751 = vmatpush1.bf16.msra.mxu0 %v1737
    %1752 = vmatprep.subr.bf16.mxu0 0
    %1753 = vmatpush1.bf16.msra.mxu0 %v1738
    %1754 = vmatprep.subr.bf16.mxu0 0
    %1755 = vmatpush1.bf16.msra.mxu0 %v1739
    %1756 = vmatprep.subr.bf16.mxu0 0
    %1757 = vmatpush1.bf16.msra.mxu0 0
    %1758 = vmatprep.subr.bf16.mxu0 0
    %1759 = vmatpush1.bf16.msra.mxu0 0
    %1760 = vmatprep.subr.bf16.mxu0 0
    %1761 = vmatpush1.bf16.msra.mxu0 0
    %1762 = vmatprep.subr.bf16.mxu0 0
    %1763 = vmatpush1.bf16.msra.mxu0 0
    %1764 = vmatprep.subr.bf16.mxu0 0
    %1765 = vmatpush1.bf16.msra.mxu0 0
    %1766 = vmatprep.subr.bf16.mxu0 0
    %1767 = vmatpush1.bf16.msra.mxu0 0
    %1768 = vmatprep.subr.bf16.mxu0 0
    %1769 = vmatpush1.bf16.msra.mxu0 0
    %1770 = vmatprep.subr.bf16.mxu0 0
    %1771 = vmatpush1.bf16.msra.mxu0 0
    %1772 = vmatprep.subr.bf16.mxu0 0
    %1773 = vmatpush1.bf16.msra.mxu0 0
    %1774 = vmatprep.subr.bf16.mxu0 0
    %1775 = vmatpush1.bf16.msra.mxu0 0
    %1776 = vmatprep.subr.bf16.mxu0 0
    %1777 = vmatpush1.bf16.msra.mxu0 0
    %1778 = vmatprep.subr.bf16.mxu0 0
    %1779 = vmatpush1.bf16.msra.mxu0 0
    %1780 = vmatprep.mubr.bf16.mxu0 0
    %1781 = vmatmul.mubr.bf16.gmra.mrb[0].mxu0 %v1746
    %v1782 = vpop.f32.mrb[0].mxu0
    %v1783 = vadd.f32 %v1719, %v1782
    %v1784 = vpop.f32.mrb[0].mxu0
    %v1785 = vpop.f32.mrb[0].mxu0
    %v1786 = vadd.f32 %v1719, %v1785
    %v1787 = vpop.f32.mrb[0].mxu0
    %1788 = vdwg.mxu0
    %v1789 = vadd.f32 %v1620, %v1783
    %v1790 = vadd.f32 %v1621, %v1786
    %v1791 = vld [vmem:[#allocation5 + $0x8] sm:$0x1]
    %v1792 = vld [vmem:[#allocation5 + $0x9] sm:$0x1]
    %v1793 = vsel %vm172, %v1789, 0.0
    %1794 = vadd.xlane.f32.xlu0 %v1793
    %v1795 = vpop.xlane.xlu0 %1794
    %v1796 = vsel %vm172, %v1790, 0.0
    %1797 = vadd.xlane.f32.xlu0 %v1796
    %v1798 = vpop.xlane.xlu0 %1797
    %v1799 = vmul.f32 %v1795, %v179
    %v1800 = vmul.f32 %v1798, %v179
    %v1801 = vsub.f32 %v1789, %v1799
    %v1802 = vsub.f32 %v1790, %v1800
    %v1803 = vmul.f32 %v1801, %v1801
    %v1804 = vmul.f32 %v1802, %v1802
    %v1805 = vsel %vm172, %v1803, 0.0
    %1806 = vadd.xlane.f32.xlu0 %v1805
    %v1807 = vpop.xlane.xlu0 %1806
    %v1808 = vsel %vm172, %v1804, 0.0
    %1809 = vadd.xlane.f32.xlu0 %v1808
    %v1810 = vpop.xlane.xlu0 %1809
    %v1811 = vmul.f32 %v1807, %v179
    %v1812 = vmul.f32 %v1810, %v179
    %v1813 = vadd.f32 %v1811, 1e-12
    %v1814 = vadd.f32 %v1812, 1e-12
    %v1815 = vrsqrt.pop %v1813
    %v1816 = vrsqrt.pop %v1814
    %v1817 = vmul.f32 %v1801, %v1815
    %v1818 = vmul.f32 %v1802, %v1816
    %v1819 = vlaneseq
    %v1820 = vshrl.u32 %v1819, 7
    %v1821 = vsub.s32 0, %v1820
    %v1822 = vrot.slane %v1791, %v1821
    %v1823 = vmul.f32 %v1817, %v1822
    %v1824 = vmul.f32 %v1818, %v1822
    %v1825 = vlaneseq
    %v1826 = vshrl.u32 %v1825, 7
    %v1827 = vsub.s32 0, %v1826
    %v1828 = vrot.slane %v1792, %v1827
    %v1829 = vadd.f32 %v1823, %v1828
    %v1830 = vadd.f32 %v1824, %v1828
    %v1831 = vpack.c.bf16 %v1830, %v1829
    %v1832 = vld [vmem:[#allocation2 + $0xb0] sm:$0xf]
    %v1833 = vld [vmem:[#allocation2 + $0xb4] sm:$0xf]
    %v1834 = vld [vmem:[#allocation2 + $0xb8] sm:$0xf]
    %v1835 = vld [vmem:[#allocation2 + $0xbc] sm:$0xf]
    %v1836 = vld [vmem:[#allocation5 + $0x10] sm:$0x1]
    %v1837 = vlaneseq
    %v1838 = vshrl.u32 %v1837, 7
    %v1839 = vsub.s32 0, %v1838
    %v1840 = vrot.slane %v1836, %v1839
    %v1845 = vunpack.c.l.b16 %v1832
    %v1846 = vunpack.c.l.b16 %v1833
    %v1847 = vunpack.c.l.b16 %v1834
    %v1848 = vunpack.c.l.b16 %v1835
    %v1849 = vpack.c.b16 %v1846, %v1845
    %v1850 = vpack.c.b16 %v1848, %v1847
    %v1854 = vsel %vm172, %v1831, 0
    %1856 = vmatprep.subr.bf16.mxu0 0
    %1857 = vmatpush1.bf16.msra.mxu0 %v1849
    %1858 = vmatprep.subr.bf16.mxu0 0
    %1859 = vmatpush1.bf16.msra.mxu0 %v1850
    %1860 = vmatprep.subr.bf16.mxu0 0
    %1861 = vmatpush1.bf16.msra.mxu0 0
    %1862 = vmatprep.subr.bf16.mxu0 0
    %1863 = vmatpush1.bf16.msra.mxu0 0
    %1864 = vmatprep.subr.bf16.mxu0 0
    %1865 = vmatpush1.bf16.msra.mxu0 0
    %1866 = vmatprep.subr.bf16.mxu0 0
    %1867 = vmatpush1.bf16.msra.mxu0 0
    %1868 = vmatprep.subr.bf16.mxu0 0
    %1869 = vmatpush1.bf16.msra.mxu0 0
    %1870 = vmatprep.subr.bf16.mxu0 0
    %1871 = vmatpush1.bf16.msra.mxu0 0
    %1872 = vmatprep.subr.bf16.mxu0 0
    %1873 = vmatpush1.bf16.msra.mxu0 0
    %1874 = vmatprep.subr.bf16.mxu0 0
    %1875 = vmatpush1.bf16.msra.mxu0 0
    %1876 = vmatprep.subr.bf16.mxu0 0
    %1877 = vmatpush1.bf16.msra.mxu0 0
    %1878 = vmatprep.subr.bf16.mxu0 0
    %1879 = vmatpush1.bf16.msra.mxu0 0
    %1880 = vmatprep.subr.bf16.mxu0 0
    %1881 = vmatpush1.bf16.msra.mxu0 0
    %1882 = vmatprep.subr.bf16.mxu0 0
    %1883 = vmatpush1.bf16.msra.mxu0 0
    %1884 = vmatprep.subr.bf16.mxu0 0
    %1885 = vmatpush1.bf16.msra.mxu0 0
    %1886 = vmatprep.subr.bf16.mxu0 0
    %1887 = vmatpush1.bf16.msra.mxu0 0
    %1888 = vmatprep.mubr.bf16.mxu0 0
    %1889 = vmatmul.mubr.bf16.gmra.mrb[0].mxu0 %v1854
    %v1890 = vpop.f32.mrb[0].mxu0
    %v1891 = vadd.f32 %v1840, %v1890
    %v1892 = vpop.f32.mrb[0].mxu0
    %v1893 = vpop.f32.mrb[0].mxu0
    %v1894 = vadd.f32 %v1840, %v1893
    %v1895 = vpop.f32.mrb[0].mxu0
    %1896 = vdwg.mxu0
    %v1897 = vld [vmem:[#allocation2 + $0xc0] sm:$0xf]
    %v1898 = vld [vmem:[#allocation2 + $0xc4] sm:$0xf]
    %v1899 = vld [vmem:[#allocation2 + $0xc8] sm:$0xf]
    %v1900 = vld [vmem:[#allocation2 + $0xcc] sm:$0xf]
    %v1901 = vld [vmem:[#allocation5 + $0x11] sm:$0x1]
    %v1902 = vlaneseq
    %v1903 = vshrl.u32 %v1902, 7
    %v1904 = vsub.s32 0, %v1903
    %v1905 = vrot.slane %v1901, %v1904
    %v1910 = vunpack.c.l.b16 %v1897
    %v1911 = vunpack.c.l.b16 %v1898
    %v1912 = vunpack.c.l.b16 %v1899
    %v1913 = vunpack.c.l.b16 %v1900
    %v1914 = vpack.c.b16 %v1911, %v1910
    %v1915 = vpack.c.b16 %v1913, %v1912
    %1918 = vmatprep.subr.bf16.mxu0 0
    %1919 = vmatpush1.bf16.msra.mxu0 %v1914
    %1920 = vmatprep.subr.bf16.mxu0 0
    %1921 = vmatpush1.bf16.msra.mxu0 %v1915
    %1922 = vmatprep.subr.bf16.mxu0 0
    %1923 = vmatpush1.bf16.msra.mxu0 0
    %1924 = vmatprep.subr.bf16.mxu0 0
    %1925 = vmatpush1.bf16.msra.mxu0 0
    %1926 = vmatprep.subr.bf16.mxu0 0
    %1927 = vmatpush1.bf16.msra.mxu0 0
    %1928 = vmatprep.subr.bf16.mxu0 0
    %1929 = vmatpush1.bf16.msra.mxu0 0
    %1930 = vmatprep.subr.bf16.mxu0 0
    %1931 = vmatpush1.bf16.msra.mxu0 0
    %1932 = vmatprep.subr.bf16.mxu0 0
    %1933 = vmatpush1.bf16.msra.mxu0 0
    %1934 = vmatprep.subr.bf16.mxu0 0
    %1935 = vmatpush1.bf16.msra.mxu0 0
    %1936 = vmatprep.subr.bf16.mxu0 0
    %1937 = vmatpush1.bf16.msra.mxu0 0
    %1938 = vmatprep.subr.bf16.mxu0 0
    %1939 = vmatpush1.bf16.msra.mxu0 0
    %1940 = vmatprep.subr.bf16.mxu0 0
    %1941 = vmatpush1.bf16.msra.mxu0 0
    %1942 = vmatprep.subr.bf16.mxu0 0
    %1943 = vmatpush1.bf16.msra.mxu0 0
    %1944 = vmatprep.subr.bf16.mxu0 0
    %1945 = vmatpush1.bf16.msra.mxu0 0
    %1946 = vmatprep.subr.bf16.mxu0 0
    %1947 = vmatpush1.bf16.msra.mxu0 0
    %1948 = vmatprep.subr.bf16.mxu0 0
    %1949 = vmatpush1.bf16.msra.mxu0 0
    %1950 = vmatprep.mubr.bf16.mxu0 0
    %1951 = vmatmul.mubr.bf16.gmra.mrb[0].mxu0 %v1854
    %v1952 = vpop.f32.mrb[0].mxu0
    %v1953 = vadd.f32 %v1905, %v1952
    %v1954 = vpop.f32.mrb[0].mxu0
    %v1955 = vpop.f32.mrb[0].mxu0
    %v1956 = vadd.f32 %v1905, %v1955
    %v1957 = vpop.f32.mrb[0].mxu0
    %1958 = vdwg.mxu0
    %v1959 = vld [vmem:[#allocation2 + $0xd0] sm:$0xf]
    %v1960 = vld [vmem:[#allocation2 + $0xd4] sm:$0xf]
    %v1961 = vld [vmem:[#allocation2 + $0xd8] sm:$0xf]
    %v1962 = vld [vmem:[#allocation2 + $0xdc] sm:$0xf]
    %v1963 = vld [vmem:[#allocation5 + $0x12] sm:$0x1]
    %v1964 = vlaneseq
    %v1965 = vshrl.u32 %v1964, 7
    %v1966 = vsub.s32 0, %v1965
    %v1967 = vrot.slane %v1963, %v1966
    %v1972 = vunpack.c.l.b16 %v1959
    %v1973 = vunpack.c.l.b16 %v1960
    %v1974 = vunpack.c.l.b16 %v1961
    %v1975 = vunpack.c.l.b16 %v1962
    %v1976 = vpack.c.b16 %v1973, %v1972
    %v1977 = vpack.c.b16 %v1975, %v1974
    %1980 = vmatprep.subr.bf16.mxu0 0
    %1981 = vmatpush1.bf16.msra.mxu0 %v1976
    %1982 = vmatprep.subr.bf16.mxu0 0
    %1983 = vmatpush1.bf16.msra.mxu0 %v1977
    %1984 = vmatprep.subr.bf16.mxu0 0
    %1985 = vmatpush1.bf16.msra.mxu0 0
    %1986 = vmatprep.subr.bf16.mxu0 0
    %1987 = vmatpush1.bf16.msra.mxu0 0
    %1988 = vmatprep.subr.bf16.mxu0 0
    %1989 = vmatpush1.bf16.msra.mxu0 0
    %1990 = vmatprep.subr.bf16.mxu0 0
    %1991 = vmatpush1.bf16.msra.mxu0 0
    %1992 = vmatprep.subr.bf16.mxu0 0
    %1993 = vmatpush1.bf16.msra.mxu0 0
    %1994 = vmatprep.subr.bf16.mxu0 0
    %1995 = vmatpush1.bf16.msra.mxu0 0
    %1996 = vmatprep.subr.bf16.mxu0 0
    %1997 = vmatpush1.bf16.msra.mxu0 0
    %1998 = vmatprep.subr.bf16.mxu0 0
    %1999 = vmatpush1.bf16.msra.mxu0 0
    %2000 = vmatprep.subr.bf16.mxu0 0
    %2001 = vmatpush1.bf16.msra.mxu0 0
    %2002 = vmatprep.subr.bf16.mxu0 0
    %2003 = vmatpush1.bf16.msra.mxu0 0
    %2004 = vmatprep.subr.bf16.mxu0 0
    %2005 = vmatpush1.bf16.msra.mxu0 0
    %2006 = vmatprep.subr.bf16.mxu0 0
    %2007 = vmatpush1.bf16.msra.mxu0 0
    %2008 = vmatprep.subr.bf16.mxu0 0
    %2009 = vmatpush1.bf16.msra.mxu0 0
    %2010 = vmatprep.subr.bf16.mxu0 0
    %2011 = vmatpush1.bf16.msra.mxu0 0
    %2012 = vmatprep.mubr.bf16.mxu0 0
    %2013 = vmatmul.mubr.bf16.gmra.mrb[0].mxu0 %v1854
    %v2014 = vpop.f32.mrb[0].mxu0
    %v2015 = vadd.f32 %v1967, %v2014
    %v2016 = vpop.f32.mrb[0].mxu0
    %v2017 = vpop.f32.mrb[0].mxu0
    %v2018 = vadd.f32 %v1967, %v2017
    %v2019 = vpop.f32.mrb[0].mxu0
    %2020 = vdwg.mxu0
    %v2021 = vpack.c.bf16 %v1894, %v1891
    %v2022 = vpack.c.bf16 %v1956, %v1953
    %v2024 = vsel %vm443, %v2021, 0
    %v2027 = vsel %vm443, %v2022, 0
    %2029 = vmatprep.subr.bf16.mxu0 0
    %2030 = vmatpush1.bf16.xpose.msra.mxu0 %v2027
    %2031 = vmatprep.subr.bf16.mxu0 0
    %2032 = vmatpush1.bf16.xpose.msra.mxu0 0
    %2033 = vmatprep.subr.bf16.mxu0 0
    %2034 = vmatpush1.bf16.xpose.msra.mxu0 0
    %2035 = vmatprep.subr.bf16.mxu0 0
    %2036 = vmatpush1.bf16.xpose.msra.mxu0 0
    %2037 = vmatprep.subr.bf16.mxu0 0
    %2038 = vmatpush1.bf16.xpose.msra.mxu0 0
    %2039 = vmatprep.subr.bf16.mxu0 0
    %2040 = vmatpush1.bf16.xpose.msra.mxu0 0
    %2041 = vmatprep.subr.bf16.mxu0 0
    %2042 = vmatpush1.bf16.xpose.msra.mxu0 0
    %2043 = vmatprep.subr.bf16.mxu0 0
    %2044 = vmatpush1.bf16.xpose.msra.mxu0 0
    %2045 = vmatprep.subr.bf16.mxu0 0
    %2046 = vmatpush1.bf16.xpose.msra.mxu0 0
    %2047 = vmatprep.subr.bf16.mxu0 0
    %2048 = vmatpush1.bf16.xpose.msra.mxu0 0
    %2049 = vmatprep.subr.bf16.mxu0 0
    %2050 = vmatpush1.bf16.xpose.msra.mxu0 0
    %2051 = vmatprep.subr.bf16.mxu0 0
    %2052 = vmatpush1.bf16.xpose.msra.mxu0 0
    %2053 = vmatprep.subr.bf16.mxu0 0
    %2054 = vmatpush1.bf16.xpose.msra.mxu0 0
    %2055 = vmatprep.subr.bf16.mxu0 0
    %2056 = vmatpush1.bf16.xpose.msra.mxu0 0
    %2057 = vmatprep.subr.bf16.mxu0 0
    %2058 = vmatpush1.bf16.xpose.msra.mxu0 0
    %2059 = vmatprep.subr.bf16.mxu0 0
    %2060 = vmatpush1.bf16.xpose.msra.mxu0 0
    %2061 = vmatprep.mubr.bf16.mxu0 0
    %2062 = vmatmul.mubr.bf16.gmra.mrb[0].mxu0 %v2024
    %v2063 = vpop.f32.mrb[0].mxu0
    %v2064 = vadd.f32 0.0, %v2063
    %v2065 = vpop.f32.mrb[0].mxu0
    %v2066 = vpop.f32.mrb[0].mxu0
    %v2067 = vadd.f32 0.0, %v2066
    %v2068 = vpop.f32.mrb[0].mxu0
    %2069 = vdwg.mxu0
    %v2070 = vsel %vm249, %v2064, -1e+09
    %v2071 = vsel %vm250, %v2067, -1e+09
    %v2072 = vsel %vm493, %v2070, -inf
    %2073 = vmax.xlane.f32.xlu0 %v2072
    %v2074 = vpop.xlane.xlu0 %2073
    %v2075 = vsel %vm493, %v2071, -inf
    %2076 = vmax.xlane.f32.xlu0 %v2075
    %v2077 = vpop.xlane.xlu0 %2076
    %v2078 = vsub.f32 %v2070, %v2074
    %v2079 = vsub.f32 %v2071, %v2077
    %v2080 = vmul.f32 %v2078, 1.442695
    %v2081 = vpow.pop %v2080
    %v2082 = vmul.f32 %v2079, 1.442695
    %v2083 = vpow.pop %v2082
    %v2084 = vsel %vm493, %v2081, 0.0
    %2085 = vadd.xlane.f32.xlu0 %v2084
    %v2086 = vpop.xlane.xlu0 %2085
    %v2087 = vsel %vm493, %v2083, 0.0
    %2088 = vadd.xlane.f32.xlu0 %v2087
    %v2089 = vpop.xlane.xlu0 %2088
    %v2090 = vrcp.pop %v2086
    %v2091 = vrcp.pop %v2089
    %v2092 = vmul.f32 %v2081, %v2090
    %v2093 = vmul.f32 %v2083, %v2091
    %v2094 = vpack.c.bf16 %v2093, %v2092
    %v2095 = vpack.c.bf16 %v2018, %v2015
    %v2097 = vsel %vm493, %v2094, 0
    %2099 = vmatprep.subr.bf16.mxu0 0
    %2100 = vmatpush1.bf16.msra.mxu0 %v2095
    %2101 = vmatprep.subr.bf16.mxu0 0
    %2102 = vmatpush1.bf16.msra.mxu0 0
    %2103 = vmatprep.subr.bf16.mxu0 0
    %2104 = vmatpush1.bf16.msra.mxu0 0
    %2105 = vmatprep.subr.bf16.mxu0 0
    %2106 = vmatpush1.bf16.msra.mxu0 0
    %2107 = vmatprep.subr.bf16.mxu0 0
    %2108 = vmatpush1.bf16.msra.mxu0 0
    %2109 = vmatprep.subr.bf16.mxu0 0
    %2110 = vmatpush1.bf16.msra.mxu0 0
    %2111 = vmatprep.subr.bf16.mxu0 0
    %2112 = vmatpush1.bf16.msra.mxu0 0
    %2113 = vmatprep.subr.bf16.mxu0 0
    %2114 = vmatpush1.bf16.msra.mxu0 0
    %2115 = vmatprep.subr.bf16.mxu0 0
    %2116 = vmatpush1.bf16.msra.mxu0 0
    %2117 = vmatprep.subr.bf16.mxu0 0
    %2118 = vmatpush1.bf16.msra.mxu0 0
    %2119 = vmatprep.subr.bf16.mxu0 0
    %2120 = vmatpush1.bf16.msra.mxu0 0
    %2121 = vmatprep.subr.bf16.mxu0 0
    %2122 = vmatpush1.bf16.msra.mxu0 0
    %2123 = vmatprep.subr.bf16.mxu0 0
    %2124 = vmatpush1.bf16.msra.mxu0 0
    %2125 = vmatprep.subr.bf16.mxu0 0
    %2126 = vmatpush1.bf16.msra.mxu0 0
    %2127 = vmatprep.subr.bf16.mxu0 0
    %2128 = vmatpush1.bf16.msra.mxu0 0
    %2129 = vmatprep.subr.bf16.mxu0 0
    %2130 = vmatpush1.bf16.msra.mxu0 0
    %2131 = vmatprep.mubr.bf16.mxu0 0
    %2132 = vmatmul.mubr.bf16.gmra.mrb[0].mxu0 %v2097
    %v2133 = vpop.f32.mrb[0].mxu0
    %v2134 = vadd.f32 0.0, %v2133
    %v2135 = vpop.f32.mrb[0].mxu0
    %v2136 = vpop.f32.mrb[0].mxu0
    %v2137 = vadd.f32 0.0, %v2136
    %v2138 = vpop.f32.mrb[0].mxu0
    %2139 = vdwg.mxu0
    %v2140 = vld [vmem:[#allocation2 + $0xe0] sm:$0xf]
    %v2141 = vpack.c.bf16 %v2137, %v2134
    %2142 = vrot.lane.b32.xlu0 %v1849, 120
    %v2143 = vpop.permute.xlu0 %2142
    %2144 = vrot.lane.b32.xlu0 %v1850, 120
    %v2145 = vpop.permute.xlu0 %2144
    %2149 = vrot.lane.b32.xlu0 %v1840, 120
    %v2150 = vpop.permute.xlu0 %2149
    %2152 = vmatprep.subr.bf16.mxu0 0
    %2153 = vmatpush1.bf16.msra.mxu0 %v2143
    %2154 = vmatprep.subr.bf16.mxu0 0
    %2155 = vmatpush1.bf16.msra.mxu0 %v2145
    %2156 = vmatprep.subr.bf16.mxu0 0
    %2157 = vmatpush1.bf16.msra.mxu0 0
    %2158 = vmatprep.subr.bf16.mxu0 0
    %2159 = vmatpush1.bf16.msra.mxu0 0
    %2160 = vmatprep.subr.bf16.mxu0 0
    %2161 = vmatpush1.bf16.msra.mxu0 0
    %2162 = vmatprep.subr.bf16.mxu0 0
    %2163 = vmatpush1.bf16.msra.mxu0 0
    %2164 = vmatprep.subr.bf16.mxu0 0
    %2165 = vmatpush1.bf16.msra.mxu0 0
    %2166 = vmatprep.subr.bf16.mxu0 0
    %2167 = vmatpush1.bf16.msra.mxu0 0
    %2168 = vmatprep.subr.bf16.mxu0 0
    %2169 = vmatpush1.bf16.msra.mxu0 0
    %2170 = vmatprep.subr.bf16.mxu0 0
    %2171 = vmatpush1.bf16.msra.mxu0 0
    %2172 = vmatprep.subr.bf16.mxu0 0
    %2173 = vmatpush1.bf16.msra.mxu0 0
    %2174 = vmatprep.subr.bf16.mxu0 0
    %2175 = vmatpush1.bf16.msra.mxu0 0
    %2176 = vmatprep.subr.bf16.mxu0 0
    %2177 = vmatpush1.bf16.msra.mxu0 0
    %2178 = vmatprep.subr.bf16.mxu0 0
    %2179 = vmatpush1.bf16.msra.mxu0 0
    %2180 = vmatprep.subr.bf16.mxu0 0
    %2181 = vmatpush1.bf16.msra.mxu0 0
    %2182 = vmatprep.subr.bf16.mxu0 0
    %2183 = vmatpush1.bf16.msra.mxu0 0
    %2184 = vmatprep.mubr.bf16.mxu0 0
    %2185 = vmatmul.mubr.bf16.gmra.mrb[0].mxu0 %v1854
    %v2186 = vpop.f32.mrb[0].mxu0
    %v2187 = vadd.f32 %v2150, %v2186
    %v2188 = vpop.f32.mrb[0].mxu0
    %v2189 = vpop.f32.mrb[0].mxu0
    %v2190 = vadd.f32 %v2150, %v2189
    %v2191 = vpop.f32.mrb[0].mxu0
    %2192 = vdwg.mxu0
    %2193 = vrot.lane.b32.xlu0 %v1914, 120
    %v2194 = vpop.permute.xlu0 %2193
    %2195 = vrot.lane.b32.xlu0 %v1915, 120
    %v2196 = vpop.permute.xlu0 %2195
    %2200 = vrot.lane.b32.xlu0 %v1905, 120
    %v2201 = vpop.permute.xlu0 %2200
    %2203 = vmatprep.subr.bf16.mxu0 0
    %2204 = vmatpush1.bf16.msra.mxu0 %v2194
    %2205 = vmatprep.subr.bf16.mxu0 0
    %2206 = vmatpush1.bf16.msra.mxu0 %v2196
    %2207 = vmatprep.subr.bf16.mxu0 0
    %2208 = vmatpush1.bf16.msra.mxu0 0
    %2209 = vmatprep.subr.bf16.mxu0 0
    %2210 = vmatpush1.bf16.msra.mxu0 0
    %2211 = vmatprep.subr.bf16.mxu0 0
    %2212 = vmatpush1.bf16.msra.mxu0 0
    %2213 = vmatprep.subr.bf16.mxu0 0
    %2214 = vmatpush1.bf16.msra.mxu0 0
    %2215 = vmatprep.subr.bf16.mxu0 0
    %2216 = vmatpush1.bf16.msra.mxu0 0
    %2217 = vmatprep.subr.bf16.mxu0 0
    %2218 = vmatpush1.bf16.msra.mxu0 0
    %2219 = vmatprep.subr.bf16.mxu0 0
    %2220 = vmatpush1.bf16.msra.mxu0 0
    %2221 = vmatprep.subr.bf16.mxu0 0
    %2222 = vmatpush1.bf16.msra.mxu0 0
    %2223 = vmatprep.subr.bf16.mxu0 0
    %2224 = vmatpush1.bf16.msra.mxu0 0
    %2225 = vmatprep.subr.bf16.mxu0 0
    %2226 = vmatpush1.bf16.msra.mxu0 0
    %2227 = vmatprep.subr.bf16.mxu0 0
    %2228 = vmatpush1.bf16.msra.mxu0 0
    %2229 = vmatprep.subr.bf16.mxu0 0
    %2230 = vmatpush1.bf16.msra.mxu0 0
    %2231 = vmatprep.subr.bf16.mxu0 0
    %2232 = vmatpush1.bf16.msra.mxu0 0
    %2233 = vmatprep.subr.bf16.mxu0 0
    %2234 = vmatpush1.bf16.msra.mxu0 0
    %2235 = vmatprep.mubr.bf16.mxu0 0
    %2236 = vmatmul.mubr.bf16.gmra.mrb[0].mxu0 %v1854
    %v2237 = vpop.f32.mrb[0].mxu0
    %v2238 = vadd.f32 %v2201, %v2237
    %v2239 = vpop.f32.mrb[0].mxu0
    %v2240 = vpop.f32.mrb[0].mxu0
    %v2241 = vadd.f32 %v2201, %v2240
    %v2242 = vpop.f32.mrb[0].mxu0
    %2243 = vdwg.mxu0
    %2244 = vrot.lane.b32.xlu0 %v1976, 120
    %v2245 = vpop.permute.xlu0 %2244
    %2246 = vrot.lane.b32.xlu0 %v1977, 120
    %v2247 = vpop.permute.xlu0 %2246
    %2251 = vrot.lane.b32.xlu0 %v1967, 120
    %v2252 = vpop.permute.xlu0 %2251
    %2254 = vmatprep.subr.bf16.mxu0 0
    %2255 = vmatpush1.bf16.msra.mxu0 %v2245
    %2256 = vmatprep.subr.bf16.mxu0 0
    %2257 = vmatpush1.bf16.msra.mxu0 %v2247
    %2258 = vmatprep.subr.bf16.mxu0 0
    %2259 = vmatpush1.bf16.msra.mxu0 0
    %2260 = vmatprep.subr.bf16.mxu0 0
    %2261 = vmatpush1.bf16.msra.mxu0 0
    %2262 = vmatprep.subr.bf16.mxu0 0
    %2263 = vmatpush1.bf16.msra.mxu0 0
    %2264 = vmatprep.subr.bf16.mxu0 0
    %2265 = vmatpush1.bf16.msra.mxu0 0
    %2266 = vmatprep.subr.bf16.mxu0 0
    %2267 = vmatpush1.bf16.msra.mxu0 0
    %2268 = vmatprep.subr.bf16.mxu0 0
    %2269 = vmatpush1.bf16.msra.mxu0 0
    %2270 = vmatprep.subr.bf16.mxu0 0
    %2271 = vmatpush1.bf16.msra.mxu0 0
    %2272 = vmatprep.subr.bf16.mxu0 0
    %2273 = vmatpush1.bf16.msra.mxu0 0
    %2274 = vmatprep.subr.bf16.mxu0 0
    %2275 = vmatpush1.bf16.msra.mxu0 0
    %2276 = vmatprep.subr.bf16.mxu0 0
    %2277 = vmatpush1.bf16.msra.mxu0 0
    %2278 = vmatprep.subr.bf16.mxu0 0
    %2279 = vmatpush1.bf16.msra.mxu0 0
    %2280 = vmatprep.subr.bf16.mxu0 0
    %2281 = vmatpush1.bf16.msra.mxu0 0
    %2282 = vmatprep.subr.bf16.mxu0 0
    %2283 = vmatpush1.bf16.msra.mxu0 0
    %2284 = vmatprep.subr.bf16.mxu0 0
    %2285 = vmatpush1.bf16.msra.mxu0 0
    %2286 = vmatprep.mubr.bf16.mxu0 0
    %2287 = vmatmul.mubr.bf16.gmra.mrb[0].mxu0 %v1854
    %v2288 = vpop.f32.mrb[0].mxu0
    %v2289 = vadd.f32 %v2252, %v2288
    %v2290 = vpop.f32.mrb[0].mxu0
    %v2291 = vpop.f32.mrb[0].mxu0
    %v2292 = vadd.f32 %v2252, %v2291
    %v2293 = vpop.f32.mrb[0].mxu0
    %2294 = vdwg.mxu0
    %v2295 = vpack.c.bf16 %v2190, %v2187
    %v2296 = vpack.c.bf16 %v2241, %v2238
    %v2298 = vsel %vm443, %v2295, 0
    %v2301 = vsel %vm443, %v2296, 0
    %2303 = vmatprep.subr.bf16.mxu0 0
    %2304 = vmatpush1.bf16.xpose.msra.mxu0 %v2301
    %2305 = vmatprep.subr.bf16.mxu0 0
    %2306 = vmatpush1.bf16.xpose.msra.mxu0 0
    %2307 = vmatprep.subr.bf16.mxu0 0
    %2308 = vmatpush1.bf16.xpose.msra.mxu0 0
    %2309 = vmatprep.subr.bf16.mxu0 0
    %2310 = vmatpush1.bf16.xpose.msra.mxu0 0
    %2311 = vmatprep.subr.bf16.mxu0 0
    %2312 = vmatpush1.bf16.xpose.msra.mxu0 0
    %2313 = vmatprep.subr.bf16.mxu0 0
    %2314 = vmatpush1.bf16.xpose.msra.mxu0 0
    %2315 = vmatprep.subr.bf16.mxu0 0
    %2316 = vmatpush1.bf16.xpose.msra.mxu0 0
    %2317 = vmatprep.subr.bf16.mxu0 0
    %2318 = vmatpush1.bf16.xpose.msra.mxu0 0
    %2319 = vmatprep.subr.bf16.mxu0 0
    %2320 = vmatpush1.bf16.xpose.msra.mxu0 0
    %2321 = vmatprep.subr.bf16.mxu0 0
    %2322 = vmatpush1.bf16.xpose.msra.mxu0 0
    %2323 = vmatprep.subr.bf16.mxu0 0
    %2324 = vmatpush1.bf16.xpose.msra.mxu0 0
    %2325 = vmatprep.subr.bf16.mxu0 0
    %2326 = vmatpush1.bf16.xpose.msra.mxu0 0
    %2327 = vmatprep.subr.bf16.mxu0 0
    %2328 = vmatpush1.bf16.xpose.msra.mxu0 0
    %2329 = vmatprep.subr.bf16.mxu0 0
    %2330 = vmatpush1.bf16.xpose.msra.mxu0 0
    %2331 = vmatprep.subr.bf16.mxu0 0
    %2332 = vmatpush1.bf16.xpose.msra.mxu0 0
    %2333 = vmatprep.subr.bf16.mxu0 0
    %2334 = vmatpush1.bf16.xpose.msra.mxu0 0
    %2335 = vmatprep.mubr.bf16.mxu0 0
    %2336 = vmatmul.mubr.bf16.gmra.mrb[0].mxu0 %v2298
    %v2337 = vpop.f32.mrb[0].mxu0
    %v2338 = vadd.f32 0.0, %v2337
    %v2339 = vpop.f32.mrb[0].mxu0
    %v2340 = vpop.f32.mrb[0].mxu0
    %v2341 = vadd.f32 0.0, %v2340
    %v2342 = vpop.f32.mrb[0].mxu0
    %2343 = vdwg.mxu0
    %v2344 = vsel %vm249, %v2338, -1e+09
    %v2345 = vsel %vm250, %v2341, -1e+09
    %v2346 = vsel %vm493, %v2344, -inf
    %2347 = vmax.xlane.f32.xlu0 %v2346
    %v2348 = vpop.xlane.xlu0 %2347
    %v2349 = vsel %vm493, %v2345, -inf
    %2350 = vmax.xlane.f32.xlu0 %v2349
    %v2351 = vpop.xlane.xlu0 %2350
    %v2352 = vsub.f32 %v2344, %v2348
    %v2353 = vsub.f32 %v2345, %v2351
    %v2354 = vmul.f32 %v2352, 1.442695
    %v2355 = vpow.pop %v2354
    %v2356 = vmul.f32 %v2353, 1.442695
    %v2357 = vpow.pop %v2356
    %v2358 = vsel %vm493, %v2355, 0.0
    %2359 = vadd.xlane.f32.xlu0 %v2358
    %v2360 = vpop.xlane.xlu0 %2359
    %v2361 = vsel %vm493, %v2357, 0.0
    %2362 = vadd.xlane.f32.xlu0 %v2361
    %v2363 = vpop.xlane.xlu0 %2362
    %v2364 = vrcp.pop %v2360
    %v2365 = vrcp.pop %v2363
    %v2366 = vmul.f32 %v2355, %v2364
    %v2367 = vmul.f32 %v2357, %v2365
    %v2368 = vpack.c.bf16 %v2367, %v2366
    %v2369 = vpack.c.bf16 %v2292, %v2289
    %v2371 = vsel %vm493, %v2368, 0
    %2373 = vmatprep.subr.bf16.mxu0 0
    %2374 = vmatpush1.bf16.msra.mxu0 %v2369
    %2375 = vmatprep.subr.bf16.mxu0 0
    %2376 = vmatpush1.bf16.msra.mxu0 0
    %2377 = vmatprep.subr.bf16.mxu0 0
    %2378 = vmatpush1.bf16.msra.mxu0 0
    %2379 = vmatprep.subr.bf16.mxu0 0
    %2380 = vmatpush1.bf16.msra.mxu0 0
    %2381 = vmatprep.subr.bf16.mxu0 0
    %2382 = vmatpush1.bf16.msra.mxu0 0
    %2383 = vmatprep.subr.bf16.mxu0 0
    %2384 = vmatpush1.bf16.msra.mxu0 0
    %2385 = vmatprep.subr.bf16.mxu0 0
    %2386 = vmatpush1.bf16.msra.mxu0 0
    %2387 = vmatprep.subr.bf16.mxu0 0
    %2388 = vmatpush1.bf16.msra.mxu0 0
    %2389 = vmatprep.subr.bf16.mxu0 0
    %2390 = vmatpush1.bf16.msra.mxu0 0
    %2391 = vmatprep.subr.bf16.mxu0 0
    %2392 = vmatpush1.bf16.msra.mxu0 0
    %2393 = vmatprep.subr.bf16.mxu0 0
    %2394 = vmatpush1.bf16.msra.mxu0 0
    %2395 = vmatprep.subr.bf16.mxu0 0
    %2396 = vmatpush1.bf16.msra.mxu0 0
    %2397 = vmatprep.subr.bf16.mxu0 0
    %2398 = vmatpush1.bf16.msra.mxu0 0
    %2399 = vmatprep.subr.bf16.mxu0 0
    %2400 = vmatpush1.bf16.msra.mxu0 0
    %2401 = vmatprep.subr.bf16.mxu0 0
    %2402 = vmatpush1.bf16.msra.mxu0 0
    %2403 = vmatprep.subr.bf16.mxu0 0
    %2404 = vmatpush1.bf16.msra.mxu0 0
    %2405 = vmatprep.mubr.bf16.mxu0 0
    %2406 = vmatmul.mubr.bf16.gmra.mrb[0].mxu0 %v2371
    %v2407 = vpop.f32.mrb[0].mxu0
    %v2408 = vadd.f32 0.0, %v2407
    %v2409 = vpop.f32.mrb[0].mxu0
    %v2410 = vpop.f32.mrb[0].mxu0
    %v2411 = vadd.f32 0.0, %v2410
    %v2412 = vpop.f32.mrb[0].mxu0
    %2413 = vdwg.mxu0
    %v2414 = vld [vmem:[#allocation2 + $0xe4] sm:$0xf]
    %v2415 = vpack.c.bf16 %v2411, %v2408
    %v2417 = vsel %vm443, %v2415, 0
    %v2420 = vsel %vm841, %v2414, 0
    %2422 = vmatprep.subr.bf16.mxu0 0
    %2423 = vmatpush1.bf16.msra.mxu0 %v2420
    %2424 = vmatprep.subr.bf16.mxu0 0
    %2425 = vmatpush1.bf16.msra.mxu0 0
    %2426 = vmatprep.subr.bf16.mxu0 0
    %2427 = vmatpush1.bf16.msra.mxu0 0
    %2428 = vmatprep.subr.bf16.mxu0 0
    %2429 = vmatpush1.bf16.msra.mxu0 0
    %2430 = vmatprep.subr.bf16.mxu0 0
    %2431 = vmatpush1.bf16.msra.mxu0 0
    %2432 = vmatprep.subr.bf16.mxu0 0
    %2433 = vmatpush1.bf16.msra.mxu0 0
    %2434 = vmatprep.subr.bf16.mxu0 0
    %2435 = vmatpush1.bf16.msra.mxu0 0
    %2436 = vmatprep.subr.bf16.mxu0 0
    %2437 = vmatpush1.bf16.msra.mxu0 0
    %2438 = vmatprep.subr.bf16.mxu0 0
    %2439 = vmatpush1.bf16.msra.mxu0 0
    %2440 = vmatprep.subr.bf16.mxu0 0
    %2441 = vmatpush1.bf16.msra.mxu0 0
    %2442 = vmatprep.subr.bf16.mxu0 0
    %2443 = vmatpush1.bf16.msra.mxu0 0
    %2444 = vmatprep.subr.bf16.mxu0 0
    %2445 = vmatpush1.bf16.msra.mxu0 0
    %2446 = vmatprep.subr.bf16.mxu0 0
    %2447 = vmatpush1.bf16.msra.mxu0 0
    %2448 = vmatprep.subr.bf16.mxu0 0
    %2449 = vmatpush1.bf16.msra.mxu0 0
    %2450 = vmatprep.subr.bf16.mxu0 0
    %2451 = vmatpush1.bf16.msra.mxu0 0
    %2452 = vmatprep.subr.bf16.mxu0 0
    %2453 = vmatpush1.bf16.msra.mxu0 0
    %2454 = vmatprep.mubr.bf16.mxu0 0
    %2455 = vmatmul.mubr.bf16.gmra.mrb[0].mxu0 %v2417
    %v2456 = vpop.f32.mrb[0].mxu0
    %v2457 = vadd.f32 0.0, %v2456
    %v2458 = vpop.f32.mrb[0].mxu0
    %v2459 = vpop.f32.mrb[0].mxu0
    %v2460 = vadd.f32 0.0, %v2459
    %v2461 = vpop.f32.mrb[0].mxu0
    %2462 = vdwg.mxu0
    %v2464 = vsel %vm443, %v2141, 0
    %v2467 = vsel %vm841, %v2140, 0
    %2469 = vmatprep.subr.bf16.mxu0 0
    %2470 = vmatpush1.bf16.msra.mxu0 %v2467
    %2471 = vmatprep.subr.bf16.mxu0 0
    %2472 = vmatpush1.bf16.msra.mxu0 0
    %2473 = vmatprep.subr.bf16.mxu0 0
    %2474 = vmatpush1.bf16.msra.mxu0 0
    %2475 = vmatprep.subr.bf16.mxu0 0
    %2476 = vmatpush1.bf16.msra.mxu0 0
    %2477 = vmatprep.subr.bf16.mxu0 0
    %2478 = vmatpush1.bf16.msra.mxu0 0
    %2479 = vmatprep.subr.bf16.mxu0 0
    %2480 = vmatpush1.bf16.msra.mxu0 0
    %2481 = vmatprep.subr.bf16.mxu0 0
    %2482 = vmatpush1.bf16.msra.mxu0 0
    %2483 = vmatprep.subr.bf16.mxu0 0
    %2484 = vmatpush1.bf16.msra.mxu0 0
    %2485 = vmatprep.subr.bf16.mxu0 0
    %2486 = vmatpush1.bf16.msra.mxu0 0
    %2487 = vmatprep.subr.bf16.mxu0 0
    %2488 = vmatpush1.bf16.msra.mxu0 0
    %2489 = vmatprep.subr.bf16.mxu0 0
    %2490 = vmatpush1.bf16.msra.mxu0 0
    %2491 = vmatprep.subr.bf16.mxu0 0
    %2492 = vmatpush1.bf16.msra.mxu0 0
    %2493 = vmatprep.subr.bf16.mxu0 0
    %2494 = vmatpush1.bf16.msra.mxu0 0
    %2495 = vmatprep.subr.bf16.mxu0 0
    %2496 = vmatpush1.bf16.msra.mxu0 0
    %2497 = vmatprep.subr.bf16.mxu0 0
    %2498 = vmatpush1.bf16.msra.mxu0 0
    %2499 = vmatprep.subr.bf16.mxu0 0
    %2500 = vmatpush1.bf16.msra.mxu0 0
    %2501 = vmatprep.mubr.bf16.mxu0 0
    %2502 = vmatmul.mubr.bf16.gmra.mrb[0].mxu0 %v2464
    %v2503 = vpop.f32.mrb[0].mxu0
    %v2504 = vadd.f32 %v2457, %v2503
    %v2505 = vpop.f32.mrb[0].mxu0
    %v2506 = vpop.f32.mrb[0].mxu0
    %v2507 = vadd.f32 %v2460, %v2506
    %v2508 = vpop.f32.mrb[0].mxu0
    %2509 = vdwg.mxu0
    %2510 = vrot.lane.b32.xlu0 %v1849, 112
    %v2511 = vpop.permute.xlu0 %2510
    %2512 = vrot.lane.b32.xlu0 %v1850, 112
    %v2513 = vpop.permute.xlu0 %2512
    %2516 = vrot.lane.b32.xlu0 %v1840, 112
    %v2517 = vpop.permute.xlu0 %2516
    %2519 = vmatprep.subr.bf16.mxu0 0
    %2520 = vmatpush1.bf16.msra.mxu0 %v2511
    %2521 = vmatprep.subr.bf16.mxu0 0
    %2522 = vmatpush1.bf16.msra.mxu0 %v2513
    %2523 = vmatprep.subr.bf16.mxu0 0
    %2524 = vmatpush1.bf16.msra.mxu0 0
    %2525 = vmatprep.subr.bf16.mxu0 0
    %2526 = vmatpush1.bf16.msra.mxu0 0
    %2527 = vmatprep.subr.bf16.mxu0 0
    %2528 = vmatpush1.bf16.msra.mxu0 0
    %2529 = vmatprep.subr.bf16.mxu0 0
    %2530 = vmatpush1.bf16.msra.mxu0 0
    %2531 = vmatprep.subr.bf16.mxu0 0
    %2532 = vmatpush1.bf16.msra.mxu0 0
    %2533 = vmatprep.subr.bf16.mxu0 0
    %2534 = vmatpush1.bf16.msra.mxu0 0
    %2535 = vmatprep.subr.bf16.mxu0 0
    %2536 = vmatpush1.bf16.msra.mxu0 0
    %2537 = vmatprep.subr.bf16.mxu0 0
    %2538 = vmatpush1.bf16.msra.mxu0 0
    %2539 = vmatprep.subr.bf16.mxu0 0
    %2540 = vmatpush1.bf16.msra.mxu0 0
    %2541 = vmatprep.subr.bf16.mxu0 0
    %2542 = vmatpush1.bf16.msra.mxu0 0
    %2543 = vmatprep.subr.bf16.mxu0 0
    %2544 = vmatpush1.bf16.msra.mxu0 0
    %2545 = vmatprep.subr.bf16.mxu0 0
    %2546 = vmatpush1.bf16.msra.mxu0 0
    %2547 = vmatprep.subr.bf16.mxu0 0
    %2548 = vmatpush1.bf16.msra.mxu0 0
    %2549 = vmatprep.subr.bf16.mxu0 0
    %2550 = vmatpush1.bf16.msra.mxu0 0
    %2551 = vmatprep.mubr.bf16.mxu0 0
    %2552 = vmatmul.mubr.bf16.gmra.mrb[0].mxu0 %v1854
    %v2553 = vpop.f32.mrb[0].mxu0
    %v2554 = vadd.f32 %v2517, %v2553
    %v2555 = vpop.f32.mrb[0].mxu0
    %v2556 = vpop.f32.mrb[0].mxu0
    %v2557 = vadd.f32 %v2517, %v2556
    %v2558 = vpop.f32.mrb[0].mxu0
    %2559 = vdwg.mxu0
    %2560 = vrot.lane.b32.xlu0 %v1914, 112
    %v2561 = vpop.permute.xlu0 %2560
    %2562 = vrot.lane.b32.xlu0 %v1915, 112
    %v2563 = vpop.permute.xlu0 %2562
    %2566 = vrot.lane.b32.xlu0 %v1905, 112
    %v2567 = vpop.permute.xlu0 %2566
    %2569 = vmatprep.subr.bf16.mxu0 0
    %2570 = vmatpush1.bf16.msra.mxu0 %v2561
    %2571 = vmatprep.subr.bf16.mxu0 0
    %2572 = vmatpush1.bf16.msra.mxu0 %v2563
    %2573 = vmatprep.subr.bf16.mxu0 0
    %2574 = vmatpush1.bf16.msra.mxu0 0
    %2575 = vmatprep.subr.bf16.mxu0 0
    %2576 = vmatpush1.bf16.msra.mxu0 0
    %2577 = vmatprep.subr.bf16.mxu0 0
    %2578 = vmatpush1.bf16.msra.mxu0 0
    %2579 = vmatprep.subr.bf16.mxu0 0
    %2580 = vmatpush1.bf16.msra.mxu0 0
    %2581 = vmatprep.subr.bf16.mxu0 0
    %2582 = vmatpush1.bf16.msra.mxu0 0
    %2583 = vmatprep.subr.bf16.mxu0 0
    %2584 = vmatpush1.bf16.msra.mxu0 0
    %2585 = vmatprep.subr.bf16.mxu0 0
    %2586 = vmatpush1.bf16.msra.mxu0 0
    %2587 = vmatprep.subr.bf16.mxu0 0
    %2588 = vmatpush1.bf16.msra.mxu0 0
    %2589 = vmatprep.subr.bf16.mxu0 0
    %2590 = vmatpush1.bf16.msra.mxu0 0
    %2591 = vmatprep.subr.bf16.mxu0 0
    %2592 = vmatpush1.bf16.msra.mxu0 0
    %2593 = vmatprep.subr.bf16.mxu0 0
    %2594 = vmatpush1.bf16.msra.mxu0 0
    %2595 = vmatprep.subr.bf16.mxu0 0
    %2596 = vmatpush1.bf16.msra.mxu0 0
    %2597 = vmatprep.subr.bf16.mxu0 0
    %2598 = vmatpush1.bf16.msra.mxu0 0
    %2599 = vmatprep.subr.bf16.mxu0 0
    %2600 = vmatpush1.bf16.msra.mxu0 0
    %2601 = vmatprep.mubr.bf16.mxu0 0
    %2602 = vmatmul.mubr.bf16.gmra.mrb[0].mxu0 %v1854
    %v2603 = vpop.f32.mrb[0].mxu0
    %v2604 = vadd.f32 %v2567, %v2603
    %v2605 = vpop.f32.mrb[0].mxu0
    %v2606 = vpop.f32.mrb[0].mxu0
    %v2607 = vadd.f32 %v2567, %v2606
    %v2608 = vpop.f32.mrb[0].mxu0
    %2609 = vdwg.mxu0
    %2610 = vrot.lane.b32.xlu0 %v1976, 112
    %v2611 = vpop.permute.xlu0 %2610
    %2612 = vrot.lane.b32.xlu0 %v1977, 112
    %v2613 = vpop.permute.xlu0 %2612
    %2616 = vrot.lane.b32.xlu0 %v1967, 112
    %v2617 = vpop.permute.xlu0 %2616
    %2619 = vmatprep.subr.bf16.mxu0 0
    %2620 = vmatpush1.bf16.msra.mxu0 %v2611
    %2621 = vmatprep.subr.bf16.mxu0 0
    %2622 = vmatpush1.bf16.msra.mxu0 %v2613
    %2623 = vmatprep.subr.bf16.mxu0 0
    %2624 = vmatpush1.bf16.msra.mxu0 0
    %2625 = vmatprep.subr.bf16.mxu0 0
    %2626 = vmatpush1.bf16.msra.mxu0 0
    %2627 = vmatprep.subr.bf16.mxu0 0
    %2628 = vmatpush1.bf16.msra.mxu0 0
    %2629 = vmatprep.subr.bf16.mxu0 0
    %2630 = vmatpush1.bf16.msra.mxu0 0
    %2631 = vmatprep.subr.bf16.mxu0 0
    %2632 = vmatpush1.bf16.msra.mxu0 0
    %2633 = vmatprep.subr.bf16.mxu0 0
    %2634 = vmatpush1.bf16.msra.mxu0 0
    %2635 = vmatprep.subr.bf16.mxu0 0
    %2636 = vmatpush1.bf16.msra.mxu0 0
    %2637 = vmatprep.subr.bf16.mxu0 0
    %2638 = vmatpush1.bf16.msra.mxu0 0
    %2639 = vmatprep.subr.bf16.mxu0 0
    %2640 = vmatpush1.bf16.msra.mxu0 0
    %2641 = vmatprep.subr.bf16.mxu0 0
    %2642 = vmatpush1.bf16.msra.mxu0 0
    %2643 = vmatprep.subr.bf16.mxu0 0
    %2644 = vmatpush1.bf16.msra.mxu0 0
    %2645 = vmatprep.subr.bf16.mxu0 0
    %2646 = vmatpush1.bf16.msra.mxu0 0
    %2647 = vmatprep.subr.bf16.mxu0 0
    %2648 = vmatpush1.bf16.msra.mxu0 0
    %2649 = vmatprep.subr.bf16.mxu0 0
    %2650 = vmatpush1.bf16.msra.mxu0 0
    %2651 = vmatprep.mubr.bf16.mxu0 0
    %2652 = vmatmul.mubr.bf16.gmra.mrb[0].mxu0 %v1854
    %v2653 = vpop.f32.mrb[0].mxu0
    %v2654 = vadd.f32 %v2617, %v2653
    %v2655 = vpop.f32.mrb[0].mxu0
    %v2656 = vpop.f32.mrb[0].mxu0
    %v2657 = vadd.f32 %v2617, %v2656
    %v2658 = vpop.f32.mrb[0].mxu0
    %2659 = vdwg.mxu0
    %v2660 = vpack.c.bf16 %v2557, %v2554
    %v2661 = vpack.c.bf16 %v2607, %v2604
    %v2663 = vsel %vm443, %v2660, 0
    %v2666 = vsel %vm443, %v2661, 0
    %2668 = vmatprep.subr.bf16.mxu0 0
    %2669 = vmatpush1.bf16.xpose.msra.mxu0 %v2666
    %2670 = vmatprep.subr.bf16.mxu0 0
    %2671 = vmatpush1.bf16.xpose.msra.mxu0 0
    %2672 = vmatprep.subr.bf16.mxu0 0
    %2673 = vmatpush1.bf16.xpose.msra.mxu0 0
    %2674 = vmatprep.subr.bf16.mxu0 0
    %2675 = vmatpush1.bf16.xpose.msra.mxu0 0
    %2676 = vmatprep.subr.bf16.mxu0 0
    %2677 = vmatpush1.bf16.xpose.msra.mxu0 0
    %2678 = vmatprep.subr.bf16.mxu0 0
    %2679 = vmatpush1.bf16.xpose.msra.mxu0 0
    %2680 = vmatprep.subr.bf16.mxu0 0
    %2681 = vmatpush1.bf16.xpose.msra.mxu0 0
    %2682 = vmatprep.subr.bf16.mxu0 0
    %2683 = vmatpush1.bf16.xpose.msra.mxu0 0
    %2684 = vmatprep.subr.bf16.mxu0 0
    %2685 = vmatpush1.bf16.xpose.msra.mxu0 0
    %2686 = vmatprep.subr.bf16.mxu0 0
    %2687 = vmatpush1.bf16.xpose.msra.mxu0 0
    %2688 = vmatprep.subr.bf16.mxu0 0
    %2689 = vmatpush1.bf16.xpose.msra.mxu0 0
    %2690 = vmatprep.subr.bf16.mxu0 0
    %2691 = vmatpush1.bf16.xpose.msra.mxu0 0
    %2692 = vmatprep.subr.bf16.mxu0 0
    %2693 = vmatpush1.bf16.xpose.msra.mxu0 0
    %2694 = vmatprep.subr.bf16.mxu0 0
    %2695 = vmatpush1.bf16.xpose.msra.mxu0 0
    %2696 = vmatprep.subr.bf16.mxu0 0
    %2697 = vmatpush1.bf16.xpose.msra.mxu0 0
    %2698 = vmatprep.subr.bf16.mxu0 0
    %2699 = vmatpush1.bf16.xpose.msra.mxu0 0
    %2700 = vmatprep.mubr.bf16.mxu0 0
    %2701 = vmatmul.mubr.bf16.gmra.mrb[0].mxu0 %v2663
    %v2702 = vpop.f32.mrb[0].mxu0
    %v2703 = vadd.f32 0.0, %v2702
    %v2704 = vpop.f32.mrb[0].mxu0
    %v2705 = vpop.f32.mrb[0].mxu0
    %v2706 = vadd.f32 0.0, %v2705
    %v2707 = vpop.f32.mrb[0].mxu0
    %2708 = vdwg.mxu0
    %v2709 = vsel %vm249, %v2703, -1e+09
    %v2710 = vsel %vm250, %v2706, -1e+09
    %v2711 = vsel %vm493, %v2709, -inf
    %2712 = vmax.xlane.f32.xlu0 %v2711
    %v2713 = vpop.xlane.xlu0 %2712
    %v2714 = vsel %vm493, %v2710, -inf
    %2715 = vmax.xlane.f32.xlu0 %v2714
    %v2716 = vpop.xlane.xlu0 %2715
    %v2717 = vsub.f32 %v2709, %v2713
    %v2718 = vsub.f32 %v2710, %v2716
    %v2719 = vmul.f32 %v2717, 1.442695
    %v2720 = vpow.pop %v2719
    %v2721 = vmul.f32 %v2718, 1.442695
    %v2722 = vpow.pop %v2721
    %v2723 = vsel %vm493, %v2720, 0.0
    %2724 = vadd.xlane.f32.xlu0 %v2723
    %v2725 = vpop.xlane.xlu0 %2724
    %v2726 = vsel %vm493, %v2722, 0.0
    %2727 = vadd.xlane.f32.xlu0 %v2726
    %v2728 = vpop.xlane.xlu0 %2727
    %v2729 = vrcp.pop %v2725
    %v2730 = vrcp.pop %v2728
    %v2731 = vmul.f32 %v2720, %v2729
    %v2732 = vmul.f32 %v2722, %v2730
    %v2733 = vpack.c.bf16 %v2732, %v2731
    %v2734 = vpack.c.bf16 %v2657, %v2654
    %v2736 = vsel %vm493, %v2733, 0
    %2738 = vmatprep.subr.bf16.mxu0 0
    %2739 = vmatpush1.bf16.msra.mxu0 %v2734
    %2740 = vmatprep.subr.bf16.mxu0 0
    %2741 = vmatpush1.bf16.msra.mxu0 0
    %2742 = vmatprep.subr.bf16.mxu0 0
    %2743 = vmatpush1.bf16.msra.mxu0 0
    %2744 = vmatprep.subr.bf16.mxu0 0
    %2745 = vmatpush1.bf16.msra.mxu0 0
    %2746 = vmatprep.subr.bf16.mxu0 0
    %2747 = vmatpush1.bf16.msra.mxu0 0
    %2748 = vmatprep.subr.bf16.mxu0 0
    %2749 = vmatpush1.bf16.msra.mxu0 0
    %2750 = vmatprep.subr.bf16.mxu0 0
    %2751 = vmatpush1.bf16.msra.mxu0 0
    %2752 = vmatprep.subr.bf16.mxu0 0
    %2753 = vmatpush1.bf16.msra.mxu0 0
    %2754 = vmatprep.subr.bf16.mxu0 0
    %2755 = vmatpush1.bf16.msra.mxu0 0
    %2756 = vmatprep.subr.bf16.mxu0 0
    %2757 = vmatpush1.bf16.msra.mxu0 0
    %2758 = vmatprep.subr.bf16.mxu0 0
    %2759 = vmatpush1.bf16.msra.mxu0 0
    %2760 = vmatprep.subr.bf16.mxu0 0
    %2761 = vmatpush1.bf16.msra.mxu0 0
    %2762 = vmatprep.subr.bf16.mxu0 0
    %2763 = vmatpush1.bf16.msra.mxu0 0
    %2764 = vmatprep.subr.bf16.mxu0 0
    %2765 = vmatpush1.bf16.msra.mxu0 0
    %2766 = vmatprep.subr.bf16.mxu0 0
    %2767 = vmatpush1.bf16.msra.mxu0 0
    %2768 = vmatprep.subr.bf16.mxu0 0
    %2769 = vmatpush1.bf16.msra.mxu0 0
    %2770 = vmatprep.mubr.bf16.mxu0 0
    %2771 = vmatmul.mubr.bf16.gmra.mrb[0].mxu0 %v2736
    %v2772 = vpop.f32.mrb[0].mxu0
    %v2773 = vadd.f32 0.0, %v2772
    %v2774 = vpop.f32.mrb[0].mxu0
    %v2775 = vpop.f32.mrb[0].mxu0
    %v2776 = vadd.f32 0.0, %v2775
    %v2777 = vpop.f32.mrb[0].mxu0
    %2778 = vdwg.mxu0
    %v2779 = vld [vmem:[#allocation2 + $0xe8] sm:$0xf]
    %v2780 = vpack.c.bf16 %v2776, %v2773
    %v2782 = vsel %vm443, %v2780, 0
    %v2785 = vsel %vm841, %v2779, 0
    %2787 = vmatprep.subr.bf16.mxu0 0
    %2788 = vmatpush1.bf16.msra.mxu0 %v2785
    %2789 = vmatprep.subr.bf16.mxu0 0
    %2790 = vmatpush1.bf16.msra.mxu0 0
    %2791 = vmatprep.subr.bf16.mxu0 0
    %2792 = vmatpush1.bf16.msra.mxu0 0
    %2793 = vmatprep.subr.bf16.mxu0 0
    %2794 = vmatpush1.bf16.msra.mxu0 0
    %2795 = vmatprep.subr.bf16.mxu0 0
    %2796 = vmatpush1.bf16.msra.mxu0 0
    %2797 = vmatprep.subr.bf16.mxu0 0
    %2798 = vmatpush1.bf16.msra.mxu0 0
    %2799 = vmatprep.subr.bf16.mxu0 0
    %2800 = vmatpush1.bf16.msra.mxu0 0
    %2801 = vmatprep.subr.bf16.mxu0 0
    %2802 = vmatpush1.bf16.msra.mxu0 0
    %2803 = vmatprep.subr.bf16.mxu0 0
    %2804 = vmatpush1.bf16.msra.mxu0 0
    %2805 = vmatprep.subr.bf16.mxu0 0
    %2806 = vmatpush1.bf16.msra.mxu0 0
    %2807 = vmatprep.subr.bf16.mxu0 0
    %2808 = vmatpush1.bf16.msra.mxu0 0
    %2809 = vmatprep.subr.bf16.mxu0 0
    %2810 = vmatpush1.bf16.msra.mxu0 0
    %2811 = vmatprep.subr.bf16.mxu0 0
    %2812 = vmatpush1.bf16.msra.mxu0 0
    %2813 = vmatprep.subr.bf16.mxu0 0
    %2814 = vmatpush1.bf16.msra.mxu0 0
    %2815 = vmatprep.subr.bf16.mxu0 0
    %2816 = vmatpush1.bf16.msra.mxu0 0
    %2817 = vmatprep.subr.bf16.mxu0 0
    %2818 = vmatpush1.bf16.msra.mxu0 0
    %2819 = vmatprep.mubr.bf16.mxu0 0
    %2820 = vmatmul.mubr.bf16.gmra.mrb[0].mxu0 %v2782
    %v2821 = vpop.f32.mrb[0].mxu0
    %v2822 = vadd.f32 0.0, %v2821
    %v2823 = vpop.f32.mrb[0].mxu0
    %v2824 = vpop.f32.mrb[0].mxu0
    %v2825 = vadd.f32 0.0, %v2824
    %v2826 = vpop.f32.mrb[0].mxu0
    %2827 = vdwg.mxu0
    %v2828 = vadd.f32 %v2504, %v2822
    %v2829 = vadd.f32 %v2507, %v2825
    %2830 = vrot.lane.b32.xlu0 %v1849, 104
    %v2831 = vpop.permute.xlu0 %2830
    %2832 = vrot.lane.b32.xlu0 %v1850, 104
    %v2833 = vpop.permute.xlu0 %2832
    %2836 = vrot.lane.b32.xlu0 %v1840, 104
    %v2837 = vpop.permute.xlu0 %2836
    %2839 = vmatprep.subr.bf16.mxu0 0
    %2840 = vmatpush1.bf16.msra.mxu0 %v2831
    %2841 = vmatprep.subr.bf16.mxu0 0
    %2842 = vmatpush1.bf16.msra.mxu0 %v2833
    %2843 = vmatprep.subr.bf16.mxu0 0
    %2844 = vmatpush1.bf16.msra.mxu0 0
    %2845 = vmatprep.subr.bf16.mxu0 0
    %2846 = vmatpush1.bf16.msra.mxu0 0
    %2847 = vmatprep.subr.bf16.mxu0 0
    %2848 = vmatpush1.bf16.msra.mxu0 0
    %2849 = vmatprep.subr.bf16.mxu0 0
    %2850 = vmatpush1.bf16.msra.mxu0 0
    %2851 = vmatprep.subr.bf16.mxu0 0
    %2852 = vmatpush1.bf16.msra.mxu0 0
    %2853 = vmatprep.subr.bf16.mxu0 0
    %2854 = vmatpush1.bf16.msra.mxu0 0
    %2855 = vmatprep.subr.bf16.mxu0 0
    %2856 = vmatpush1.bf16.msra.mxu0 0
    %2857 = vmatprep.subr.bf16.mxu0 0
    %2858 = vmatpush1.bf16.msra.mxu0 0
    %2859 = vmatprep.subr.bf16.mxu0 0
    %2860 = vmatpush1.bf16.msra.mxu0 0
    %2861 = vmatprep.subr.bf16.mxu0 0
    %2862 = vmatpush1.bf16.msra.mxu0 0
    %2863 = vmatprep.subr.bf16.mxu0 0
    %2864 = vmatpush1.bf16.msra.mxu0 0
    %2865 = vmatprep.subr.bf16.mxu0 0
    %2866 = vmatpush1.bf16.msra.mxu0 0
    %2867 = vmatprep.subr.bf16.mxu0 0
    %2868 = vmatpush1.bf16.msra.mxu0 0
    %2869 = vmatprep.subr.bf16.mxu0 0
    %2870 = vmatpush1.bf16.msra.mxu0 0
    %2871 = vmatprep.mubr.bf16.mxu0 0
    %2872 = vmatmul.mubr.bf16.gmra.mrb[0].mxu0 %v1854
    %v2873 = vpop.f32.mrb[0].mxu0
    %v2874 = vadd.f32 %v2837, %v2873
    %v2875 = vpop.f32.mrb[0].mxu0
    %v2876 = vpop.f32.mrb[0].mxu0
    %v2877 = vadd.f32 %v2837, %v2876
    %v2878 = vpop.f32.mrb[0].mxu0
    %2879 = vdwg.mxu0
    %2880 = vrot.lane.b32.xlu0 %v1914, 104
    %v2881 = vpop.permute.xlu0 %2880
    %2882 = vrot.lane.b32.xlu0 %v1915, 104
    %v2883 = vpop.permute.xlu0 %2882
    %2886 = vrot.lane.b32.xlu0 %v1905, 104
    %v2887 = vpop.permute.xlu0 %2886
    %2889 = vmatprep.subr.bf16.mxu0 0
    %2890 = vmatpush1.bf16.msra.mxu0 %v2881
    %2891 = vmatprep.subr.bf16.mxu0 0
    %2892 = vmatpush1.bf16.msra.mxu0 %v2883
    %2893 = vmatprep.subr.bf16.mxu0 0
    %2894 = vmatpush1.bf16.msra.mxu0 0
    %2895 = vmatprep.subr.bf16.mxu0 0
    %2896 = vmatpush1.bf16.msra.mxu0 0
    %2897 = vmatprep.subr.bf16.mxu0 0
    %2898 = vmatpush1.bf16.msra.mxu0 0
    %2899 = vmatprep.subr.bf16.mxu0 0
    %2900 = vmatpush1.bf16.msra.mxu0 0
    %2901 = vmatprep.subr.bf16.mxu0 0
    %2902 = vmatpush1.bf16.msra.mxu0 0
    %2903 = vmatprep.subr.bf16.mxu0 0
    %2904 = vmatpush1.bf16.msra.mxu0 0
    %2905 = vmatprep.subr.bf16.mxu0 0
    %2906 = vmatpush1.bf16.msra.mxu0 0
    %2907 = vmatprep.subr.bf16.mxu0 0
    %2908 = vmatpush1.bf16.msra.mxu0 0
    %2909 = vmatprep.subr.bf16.mxu0 0
    %2910 = vmatpush1.bf16.msra.mxu0 0
    %2911 = vmatprep.subr.bf16.mxu0 0
    %2912 = vmatpush1.bf16.msra.mxu0 0
    %2913 = vmatprep.subr.bf16.mxu0 0
    %2914 = vmatpush1.bf16.msra.mxu0 0
    %2915 = vmatprep.subr.bf16.mxu0 0
    %2916 = vmatpush1.bf16.msra.mxu0 0
    %2917 = vmatprep.subr.bf16.mxu0 0
    %2918 = vmatpush1.bf16.msra.mxu0 0
    %2919 = vmatprep.subr.bf16.mxu0 0
    %2920 = vmatpush1.bf16.msra.mxu0 0
    %2921 = vmatprep.mubr.bf16.mxu0 0
    %2922 = vmatmul.mubr.bf16.gmra.mrb[0].mxu0 %v1854
    %v2923 = vpop.f32.mrb[0].mxu0
    %v2924 = vadd.f32 %v2887, %v2923
    %v2925 = vpop.f32.mrb[0].mxu0
    %v2926 = vpop.f32.mrb[0].mxu0
    %v2927 = vadd.f32 %v2887, %v2926
    %v2928 = vpop.f32.mrb[0].mxu0
    %2929 = vdwg.mxu0
    %2930 = vrot.lane.b32.xlu0 %v1976, 104
    %v2931 = vpop.permute.xlu0 %2930
    %2932 = vrot.lane.b32.xlu0 %v1977, 104
    %v2933 = vpop.permute.xlu0 %2932
    %2936 = vrot.lane.b32.xlu0 %v1967, 104
    %v2937 = vpop.permute.xlu0 %2936
    %2939 = vmatprep.subr.bf16.mxu0 0
    %2940 = vmatpush1.bf16.msra.mxu0 %v2931
    %2941 = vmatprep.subr.bf16.mxu0 0
    %2942 = vmatpush1.bf16.msra.mxu0 %v2933
    %2943 = vmatprep.subr.bf16.mxu0 0
    %2944 = vmatpush1.bf16.msra.mxu0 0
    %2945 = vmatprep.subr.bf16.mxu0 0
    %2946 = vmatpush1.bf16.msra.mxu0 0
    %2947 = vmatprep.subr.bf16.mxu0 0
    %2948 = vmatpush1.bf16.msra.mxu0 0
    %2949 = vmatprep.subr.bf16.mxu0 0
    %2950 = vmatpush1.bf16.msra.mxu0 0
    %2951 = vmatprep.subr.bf16.mxu0 0
    %2952 = vmatpush1.bf16.msra.mxu0 0
    %2953 = vmatprep.subr.bf16.mxu0 0
    %2954 = vmatpush1.bf16.msra.mxu0 0
    %2955 = vmatprep.subr.bf16.mxu0 0
    %2956 = vmatpush1.bf16.msra.mxu0 0
    %2957 = vmatprep.subr.bf16.mxu0 0
    %2958 = vmatpush1.bf16.msra.mxu0 0
    %2959 = vmatprep.subr.bf16.mxu0 0
    %2960 = vmatpush1.bf16.msra.mxu0 0
    %2961 = vmatprep.subr.bf16.mxu0 0
    %2962 = vmatpush1.bf16.msra.mxu0 0
    %2963 = vmatprep.subr.bf16.mxu0 0
    %2964 = vmatpush1.bf16.msra.mxu0 0
    %2965 = vmatprep.subr.bf16.mxu0 0
    %2966 = vmatpush1.bf16.msra.mxu0 0
    %2967 = vmatprep.subr.bf16.mxu0 0
    %2968 = vmatpush1.bf16.msra.mxu0 0
    %2969 = vmatprep.subr.bf16.mxu0 0
    %2970 = vmatpush1.bf16.msra.mxu0 0
    %2971 = vmatprep.mubr.bf16.mxu0 0
    %2972 = vmatmul.mubr.bf16.gmra.mrb[0].mxu0 %v1854
    %v2973 = vpop.f32.mrb[0].mxu0
    %v2974 = vadd.f32 %v2937, %v2973
    %v2975 = vpop.f32.mrb[0].mxu0
    %v2976 = vpop.f32.mrb[0].mxu0
    %v2977 = vadd.f32 %v2937, %v2976
    %v2978 = vpop.f32.mrb[0].mxu0
    %2979 = vdwg.mxu0
    %v2980 = vpack.c.bf16 %v2877, %v2874
    %v2981 = vpack.c.bf16 %v2927, %v2924
    %v2983 = vsel %vm443, %v2980, 0
    %v2986 = vsel %vm443, %v2981, 0
    %2988 = vmatprep.subr.bf16.mxu0 0
    %2989 = vmatpush1.bf16.xpose.msra.mxu0 %v2986
    %2990 = vmatprep.subr.bf16.mxu0 0
    %2991 = vmatpush1.bf16.xpose.msra.mxu0 0
    %2992 = vmatprep.subr.bf16.mxu0 0
    %2993 = vmatpush1.bf16.xpose.msra.mxu0 0
    %2994 = vmatprep.subr.bf16.mxu0 0
    %2995 = vmatpush1.bf16.xpose.msra.mxu0 0
    %2996 = vmatprep.subr.bf16.mxu0 0
    %2997 = vmatpush1.bf16.xpose.msra.mxu0 0
    %2998 = vmatprep.subr.bf16.mxu0 0
    %2999 = vmatpush1.bf16.xpose.msra.mxu0 0
    %3000 = vmatprep.subr.bf16.mxu0 0
    %3001 = vmatpush1.bf16.xpose.msra.mxu0 0
    %3002 = vmatprep.subr.bf16.mxu0 0
    %3003 = vmatpush1.bf16.xpose.msra.mxu0 0
    %3004 = vmatprep.subr.bf16.mxu0 0
    %3005 = vmatpush1.bf16.xpose.msra.mxu0 0
    %3006 = vmatprep.subr.bf16.mxu0 0
    %3007 = vmatpush1.bf16.xpose.msra.mxu0 0
    %3008 = vmatprep.subr.bf16.mxu0 0
    %3009 = vmatpush1.bf16.xpose.msra.mxu0 0
    %3010 = vmatprep.subr.bf16.mxu0 0
    %3011 = vmatpush1.bf16.xpose.msra.mxu0 0
    %3012 = vmatprep.subr.bf16.mxu0 0
    %3013 = vmatpush1.bf16.xpose.msra.mxu0 0
    %3014 = vmatprep.subr.bf16.mxu0 0
    %3015 = vmatpush1.bf16.xpose.msra.mxu0 0
    %3016 = vmatprep.subr.bf16.mxu0 0
    %3017 = vmatpush1.bf16.xpose.msra.mxu0 0
    %3018 = vmatprep.subr.bf16.mxu0 0
    %3019 = vmatpush1.bf16.xpose.msra.mxu0 0
    %3020 = vmatprep.mubr.bf16.mxu0 0
    %3021 = vmatmul.mubr.bf16.gmra.mrb[0].mxu0 %v2983
    %v3022 = vpop.f32.mrb[0].mxu0
    %v3023 = vadd.f32 0.0, %v3022
    %v3024 = vpop.f32.mrb[0].mxu0
    %v3025 = vpop.f32.mrb[0].mxu0
    %v3026 = vadd.f32 0.0, %v3025
    %v3027 = vpop.f32.mrb[0].mxu0
    %3028 = vdwg.mxu0
    %v3029 = vsel %vm249, %v3023, -1e+09
    %v3030 = vsel %vm250, %v3026, -1e+09
    %v3031 = vsel %vm493, %v3029, -inf
    %3032 = vmax.xlane.f32.xlu0 %v3031
    %v3033 = vpop.xlane.xlu0 %3032
    %v3034 = vsel %vm493, %v3030, -inf
    %3035 = vmax.xlane.f32.xlu0 %v3034
    %v3036 = vpop.xlane.xlu0 %3035
    %v3037 = vsub.f32 %v3029, %v3033
    %v3038 = vsub.f32 %v3030, %v3036
    %v3039 = vmul.f32 %v3037, 1.442695
    %v3040 = vpow.pop %v3039
    %v3041 = vmul.f32 %v3038, 1.442695
    %v3042 = vpow.pop %v3041
    %v3043 = vsel %vm493, %v3040, 0.0
    %3044 = vadd.xlane.f32.xlu0 %v3043
    %v3045 = vpop.xlane.xlu0 %3044
    %v3046 = vsel %vm493, %v3042, 0.0
    %3047 = vadd.xlane.f32.xlu0 %v3046
    %v3048 = vpop.xlane.xlu0 %3047
    %v3049 = vrcp.pop %v3045
    %v3050 = vrcp.pop %v3048
    %v3051 = vmul.f32 %v3040, %v3049
    %v3052 = vmul.f32 %v3042, %v3050
    %v3053 = vpack.c.bf16 %v3052, %v3051
    %v3054 = vpack.c.bf16 %v2977, %v2974
    %v3056 = vsel %vm493, %v3053, 0
    %3058 = vmatprep.subr.bf16.mxu0 0
    %3059 = vmatpush1.bf16.msra.mxu0 %v3054
    %3060 = vmatprep.subr.bf16.mxu0 0
    %3061 = vmatpush1.bf16.msra.mxu0 0
    %3062 = vmatprep.subr.bf16.mxu0 0
    %3063 = vmatpush1.bf16.msra.mxu0 0
    %3064 = vmatprep.subr.bf16.mxu0 0
    %3065 = vmatpush1.bf16.msra.mxu0 0
    %3066 = vmatprep.subr.bf16.mxu0 0
    %3067 = vmatpush1.bf16.msra.mxu0 0
    %3068 = vmatprep.subr.bf16.mxu0 0
    %3069 = vmatpush1.bf16.msra.mxu0 0
    %3070 = vmatprep.subr.bf16.mxu0 0
    %3071 = vmatpush1.bf16.msra.mxu0 0
    %3072 = vmatprep.subr.bf16.mxu0 0
    %3073 = vmatpush1.bf16.msra.mxu0 0
    %3074 = vmatprep.subr.bf16.mxu0 0
    %3075 = vmatpush1.bf16.msra.mxu0 0
    %3076 = vmatprep.subr.bf16.mxu0 0
    %3077 = vmatpush1.bf16.msra.mxu0 0
    %3078 = vmatprep.subr.bf16.mxu0 0
    %3079 = vmatpush1.bf16.msra.mxu0 0
    %3080 = vmatprep.subr.bf16.mxu0 0
    %3081 = vmatpush1.bf16.msra.mxu0 0
    %3082 = vmatprep.subr.bf16.mxu0 0
    %3083 = vmatpush1.bf16.msra.mxu0 0
    %3084 = vmatprep.subr.bf16.mxu0 0
    %3085 = vmatpush1.bf16.msra.mxu0 0
    %3086 = vmatprep.subr.bf16.mxu0 0
    %3087 = vmatpush1.bf16.msra.mxu0 0
    %3088 = vmatprep.subr.bf16.mxu0 0
    %3089 = vmatpush1.bf16.msra.mxu0 0
    %3090 = vmatprep.mubr.bf16.mxu0 0
    %3091 = vmatmul.mubr.bf16.gmra.mrb[0].mxu0 %v3056
    %v3092 = vpop.f32.mrb[0].mxu0
    %v3093 = vadd.f32 0.0, %v3092
    %v3094 = vpop.f32.mrb[0].mxu0
    %v3095 = vpop.f32.mrb[0].mxu0
    %v3096 = vadd.f32 0.0, %v3095
    %v3097 = vpop.f32.mrb[0].mxu0
    %3098 = vdwg.mxu0
    %v3099 = vld [vmem:[#allocation2 + $0xec] sm:$0xf]
    %v3100 = vpack.c.bf16 %v3096, %v3093
    %v3102 = vsel %vm443, %v3100, 0
    %v3105 = vsel %vm841, %v3099, 0
    %3107 = vmatprep.subr.bf16.mxu0 0
    %3108 = vmatpush1.bf16.msra.mxu0 %v3105
    %3109 = vmatprep.subr.bf16.mxu0 0
    %3110 = vmatpush1.bf16.msra.mxu0 0
    %3111 = vmatprep.subr.bf16.mxu0 0
    %3112 = vmatpush1.bf16.msra.mxu0 0
    %3113 = vmatprep.subr.bf16.mxu0 0
    %3114 = vmatpush1.bf16.msra.mxu0 0
    %3115 = vmatprep.subr.bf16.mxu0 0
    %3116 = vmatpush1.bf16.msra.mxu0 0
    %3117 = vmatprep.subr.bf16.mxu0 0
    %3118 = vmatpush1.bf16.msra.mxu0 0
    %3119 = vmatprep.subr.bf16.mxu0 0
    %3120 = vmatpush1.bf16.msra.mxu0 0
    %3121 = vmatprep.subr.bf16.mxu0 0
    %3122 = vmatpush1.bf16.msra.mxu0 0
    %3123 = vmatprep.subr.bf16.mxu0 0
    %3124 = vmatpush1.bf16.msra.mxu0 0
    %3125 = vmatprep.subr.bf16.mxu0 0
    %3126 = vmatpush1.bf16.msra.mxu0 0
    %3127 = vmatprep.subr.bf16.mxu0 0
    %3128 = vmatpush1.bf16.msra.mxu0 0
    %3129 = vmatprep.subr.bf16.mxu0 0
    %3130 = vmatpush1.bf16.msra.mxu0 0
    %3131 = vmatprep.subr.bf16.mxu0 0
    %3132 = vmatpush1.bf16.msra.mxu0 0
    %3133 = vmatprep.subr.bf16.mxu0 0
    %3134 = vmatpush1.bf16.msra.mxu0 0
    %3135 = vmatprep.subr.bf16.mxu0 0
    %3136 = vmatpush1.bf16.msra.mxu0 0
    %3137 = vmatprep.subr.bf16.mxu0 0
    %3138 = vmatpush1.bf16.msra.mxu0 0
    %3139 = vmatprep.mubr.bf16.mxu0 0
    %3140 = vmatmul.mubr.bf16.gmra.mrb[0].mxu0 %v3102
    %v3141 = vpop.f32.mrb[0].mxu0
    %v3142 = vadd.f32 0.0, %v3141
    %v3143 = vpop.f32.mrb[0].mxu0
    %v3144 = vpop.f32.mrb[0].mxu0
    %v3145 = vadd.f32 0.0, %v3144
    %v3146 = vpop.f32.mrb[0].mxu0
    %3147 = vdwg.mxu0
    %v3148 = vadd.f32 %v2828, %v3142
    %v3149 = vadd.f32 %v2829, %v3145
    %v3150 = vld [vmem:[#allocation5 + $0x13] sm:$0x1]
    %v3151 = vlaneseq
    %v3152 = vshrl.u32 %v3151, 7
    %v3153 = vsub.s32 0, %v3152
    %v3154 = vrot.slane %v3150, %v3153
    %v3155 = vadd.f32 %v3148, %v3154
    %v3156 = vadd.f32 %v3149, %v3154
    %v3157 = vadd.f32 %v1829, %v3155
    %v3158 = vadd.f32 %v1830, %v3156
    %v3159 = vld [vmem:[#allocation5 + $0x14] sm:$0x1]
    %v3160 = vld [vmem:[#allocation5 + $0x15] sm:$0x1]
    %v3161 = vsel %vm172, %v3157, 0.0
    %3162 = vadd.xlane.f32.xlu0 %v3161
    %v3163 = vpop.xlane.xlu0 %3162
    %v3164 = vsel %vm172, %v3158, 0.0
    %3165 = vadd.xlane.f32.xlu0 %v3164
    %v3166 = vpop.xlane.xlu0 %3165
    %v3167 = vmul.f32 %v3163, %v179
    %v3168 = vmul.f32 %v3166, %v179
    %v3169 = vsub.f32 %v3157, %v3167
    %v3170 = vsub.f32 %v3158, %v3168
    %v3171 = vmul.f32 %v3169, %v3169
    %v3172 = vmul.f32 %v3170, %v3170
    %v3173 = vsel %vm172, %v3171, 0.0
    %3174 = vadd.xlane.f32.xlu0 %v3173
    %v3175 = vpop.xlane.xlu0 %3174
    %v3176 = vsel %vm172, %v3172, 0.0
    %3177 = vadd.xlane.f32.xlu0 %v3176
    %v3178 = vpop.xlane.xlu0 %3177
    %v3179 = vmul.f32 %v3175, %v179
    %v3180 = vmul.f32 %v3178, %v179
    %v3181 = vadd.f32 %v3179, 1e-12
    %v3182 = vadd.f32 %v3180, 1e-12
    %v3183 = vrsqrt.pop %v3181
    %v3184 = vrsqrt.pop %v3182
    %v3185 = vmul.f32 %v3169, %v3183
    %v3186 = vmul.f32 %v3170, %v3184
    %v3187 = vlaneseq
    %v3188 = vshrl.u32 %v3187, 7
    %v3189 = vsub.s32 0, %v3188
    %v3190 = vrot.slane %v3159, %v3189
    %v3191 = vmul.f32 %v3185, %v3190
    %v3192 = vmul.f32 %v3186, %v3190
    %v3193 = vlaneseq
    %v3194 = vshrl.u32 %v3193, 7
    %v3195 = vsub.s32 0, %v3194
    %v3196 = vrot.slane %v3160, %v3195
    %v3197 = vadd.f32 %v3191, %v3196
    %v3198 = vadd.f32 %v3192, %v3196
    %v3199 = vpack.c.bf16 %v3198, %v3197
    %v3200 = vld [vmem:[#allocation2 + $0xf0] sm:$0xf]
    %v3201 = vld [vmem:[#allocation2 + $0xf4] sm:$0xf]
    %v3202 = vld [vmem:[#allocation2 + $0xf8] sm:$0xf]
    %v3203 = vld [vmem:[#allocation2 + $0xfc] sm:$0xf]
    %v3204 = vld [vmem:[#allocation5 + $0x16] sm:$0x1]
    %v3205 = vlaneseq
    %v3206 = vshrl.u32 %v3205, 7
    %v3207 = vsub.s32 0, %v3206
    %v3208 = vrot.slane %v3204, %v3207
    %v3213 = vunpack.c.l.b16 %v3200
    %v3214 = vunpack.c.l.b16 %v3201
    %v3215 = vunpack.c.l.b16 %v3202
    %v3216 = vunpack.c.l.b16 %v3203
    %v3217 = vpack.c.b16 %v3214, %v3213
    %v3218 = vpack.c.b16 %v3216, %v3215
    %v3222 = vsel %vm172, %v3199, 0
    %3224 = vmatprep.subr.bf16.mxu0 0
    %3225 = vmatpush1.bf16.msra.mxu0 %v3217
    %3226 = vmatprep.subr.bf16.mxu0 0
    %3227 = vmatpush1.bf16.msra.mxu0 %v3218
    %3228 = vmatprep.subr.bf16.mxu0 0
    %3229 = vmatpush1.bf16.msra.mxu0 0
    %3230 = vmatprep.subr.bf16.mxu0 0
    %3231 = vmatpush1.bf16.msra.mxu0 0
    %3232 = vmatprep.subr.bf16.mxu0 0
    %3233 = vmatpush1.bf16.msra.mxu0 0
    %3234 = vmatprep.subr.bf16.mxu0 0
    %3235 = vmatpush1.bf16.msra.mxu0 0
    %3236 = vmatprep.subr.bf16.mxu0 0
    %3237 = vmatpush1.bf16.msra.mxu0 0
    %3238 = vmatprep.subr.bf16.mxu0 0
    %3239 = vmatpush1.bf16.msra.mxu0 0
    %3240 = vmatprep.subr.bf16.mxu0 0
    %3241 = vmatpush1.bf16.msra.mxu0 0
    %3242 = vmatprep.subr.bf16.mxu0 0
    %3243 = vmatpush1.bf16.msra.mxu0 0
    %3244 = vmatprep.subr.bf16.mxu0 0
    %3245 = vmatpush1.bf16.msra.mxu0 0
    %3246 = vmatprep.subr.bf16.mxu0 0
    %3247 = vmatpush1.bf16.msra.mxu0 0
    %3248 = vmatprep.subr.bf16.mxu0 0
    %3249 = vmatpush1.bf16.msra.mxu0 0
    %3250 = vmatprep.subr.bf16.mxu0 0
    %3251 = vmatpush1.bf16.msra.mxu0 0
    %3252 = vmatprep.subr.bf16.mxu0 0
    %3253 = vmatpush1.bf16.msra.mxu0 0
    %3254 = vmatprep.subr.bf16.mxu0 0
    %3255 = vmatpush1.bf16.msra.mxu0 0
    %3256 = vmatprep.mubr.bf16.mxu0 0
    %3257 = vmatmul.mubr.bf16.gmra.mrb[0].mxu0 %v3222
    %v3258 = vpop.f32.mrb[0].mxu0
    %v3259 = vadd.f32 %v3208, %v3258
    %v3260 = vpop.f32.mrb[0].mxu0
    %v3261 = vpop.f32.mrb[0].mxu0
    %v3262 = vadd.f32 %v3208, %v3261
    %v3263 = vpop.f32.mrb[0].mxu0
    %3264 = vdwg.mxu0
    %v3265 = vmul.f32 %v3259, %v3259
    %v3266 = vmul.f32 %v3262, %v3262
    %v3267 = vmul.f32 %v3259, %v3265
    %v3268 = vmul.f32 %v3262, %v3266
    %v3269 = vmul.f32 %v3267, 0.044715
    %v3270 = vmul.f32 %v3268, 0.044715
    %v3271 = vadd.f32 %v3259, %v3269
    %v3272 = vadd.f32 %v3262, %v3270
    %v3273 = vmul.f32 %v3271, 0.7978846
    %v3274 = vmul.f32 %v3272, 0.7978846
    %v3275 = vtanh.pop %v3273
    %v3276 = vtanh.pop %v3274
    %v3277 = vadd.f32 %v3275, 1.0
    %v3278 = vadd.f32 %v3276, 1.0
    %v3279 = vmul.f32 %v3277, 0.5
    %v3280 = vmul.f32 %v3278, 0.5
    %v3281 = vmul.f32 %v3259, %v3279
    %v3282 = vmul.f32 %v3262, %v3280
    %v3283 = vpack.c.bf16 %v3282, %v3281
    %v3284 = vld [vmem:[#allocation2 + $0x100] sm:$0xf]
    %v3285 = vld [vmem:[#allocation2 + $0x104] sm:$0xf]
    %v3286 = vld [vmem:[#allocation2 + $0x108] sm:$0xf]
    %v3287 = vld [vmem:[#allocation2 + $0x10c] sm:$0xf]
    %v3288 = vld [vmem:[#allocation2 + $0x110] sm:$0xf]
    %v3289 = vld [vmem:[#allocation2 + $0x114] sm:$0xf]
    %v3290 = vld [vmem:[#allocation2 + $0x118] sm:$0xf]
    %v3291 = vld [vmem:[#allocation2 + $0x11c] sm:$0xf]
    %v3292 = vld [vmem:[#allocation5 + $0x17] sm:$0x1]
    %v3293 = vlaneseq
    %v3294 = vshrl.u32 %v3293, 7
    %v3295 = vsub.s32 0, %v3294
    %v3296 = vrot.slane %v3292, %v3295
    %v3305 = vunpack.c.l.b16 %v3284
    %v3306 = vunpack.c.l.b16 %v3285
    %v3307 = vunpack.c.l.b16 %v3286
    %v3308 = vunpack.c.l.b16 %v3287
    %v3309 = vunpack.c.l.b16 %v3288
    %v3310 = vunpack.c.l.b16 %v3289
    %v3311 = vunpack.c.l.b16 %v3290
    %v3312 = vunpack.c.l.b16 %v3291
    %v3313 = vpack.c.b16 %v3306, %v3305
    %v3314 = vpack.c.b16 %v3308, %v3307
    %v3315 = vpack.c.b16 %v3310, %v3309
    %v3316 = vpack.c.b16 %v3312, %v3311
    %v3322 = vsel %vm1744, %v3283, 0
    %3324 = vmatprep.subr.bf16.mxu0 0
    %3325 = vmatpush1.bf16.msra.mxu0 %v3313
    %3326 = vmatprep.subr.bf16.mxu0 0
    %3327 = vmatpush1.bf16.msra.mxu0 %v3314
    %3328 = vmatprep.subr.bf16.mxu0 0
    %3329 = vmatpush1.bf16.msra.mxu0 %v3315
    %3330 = vmatprep.subr.bf16.mxu0 0
    %3331 = vmatpush1.bf16.msra.mxu0 %v3316
    %3332 = vmatprep.subr.bf16.mxu0 0
    %3333 = vmatpush1.bf16.msra.mxu0 0
    %3334 = vmatprep.subr.bf16.mxu0 0
    %3335 = vmatpush1.bf16.msra.mxu0 0
    %3336 = vmatprep.subr.bf16.mxu0 0
    %3337 = vmatpush1.bf16.msra.mxu0 0
    %3338 = vmatprep.subr.bf16.mxu0 0
    %3339 = vmatpush1.bf16.msra.mxu0 0
    %3340 = vmatprep.subr.bf16.mxu0 0
    %3341 = vmatpush1.bf16.msra.mxu0 0
    %3342 = vmatprep.subr.bf16.mxu0 0
    %3343 = vmatpush1.bf16.msra.mxu0 0
    %3344 = vmatprep.subr.bf16.mxu0 0
    %3345 = vmatpush1.bf16.msra.mxu0 0
    %3346 = vmatprep.subr.bf16.mxu0 0
    %3347 = vmatpush1.bf16.msra.mxu0 0
    %3348 = vmatprep.subr.bf16.mxu0 0
    %3349 = vmatpush1.bf16.msra.mxu0 0
    %3350 = vmatprep.subr.bf16.mxu0 0
    %3351 = vmatpush1.bf16.msra.mxu0 0
    %3352 = vmatprep.subr.bf16.mxu0 0
    %3353 = vmatpush1.bf16.msra.mxu0 0
    %3354 = vmatprep.subr.bf16.mxu0 0
    %3355 = vmatpush1.bf16.msra.mxu0 0
    %3356 = vmatprep.mubr.bf16.mxu0 0
    %3357 = vmatmul.mubr.bf16.gmra.mrb[0].mxu0 %v3322
    %v3358 = vpop.f32.mrb[0].mxu0
    %v3359 = vadd.f32 %v3296, %v3358
    %v3360 = vpop.f32.mrb[0].mxu0
    %v3361 = vpop.f32.mrb[0].mxu0
    %v3362 = vadd.f32 %v3296, %v3361
    %v3363 = vpop.f32.mrb[0].mxu0
    %3364 = vdwg.mxu0
    %v3365 = vadd.f32 %v3197, %v3359
    %v3366 = vadd.f32 %v3198, %v3362
    %v3367 = vld [vmem:[#allocation5 + $0x18] sm:$0x1]
    %v3368 = vld [vmem:[#allocation5 + $0x19] sm:$0x1]
    %v3369 = vsel %vm172, %v3365, 0.0
    %3370 = vadd.xlane.f32.xlu0 %v3369
    %v3371 = vpop.xlane.xlu0 %3370
    %v3372 = vsel %vm172, %v3366, 0.0
    %3373 = vadd.xlane.f32.xlu0 %v3372
    %v3374 = vpop.xlane.xlu0 %3373
    %v3375 = vmul.f32 %v3371, %v179
    %v3376 = vmul.f32 %v3374, %v179
    %v3377 = vsub.f32 %v3365, %v3375
    %v3378 = vsub.f32 %v3366, %v3376
    %v3379 = vmul.f32 %v3377, %v3377
    %v3380 = vmul.f32 %v3378, %v3378
    %v3381 = vsel %vm172, %v3379, 0.0
    %3382 = vadd.xlane.f32.xlu0 %v3381
    %v3383 = vpop.xlane.xlu0 %3382
    %v3384 = vsel %vm172, %v3380, 0.0
    %3385 = vadd.xlane.f32.xlu0 %v3384
    %v3386 = vpop.xlane.xlu0 %3385
    %v3387 = vmul.f32 %v3383, %v179
    %v3388 = vmul.f32 %v3386, %v179
    %v3389 = vadd.f32 %v3387, 1e-12
    %v3390 = vadd.f32 %v3388, 1e-12
    %v3391 = vrsqrt.pop %v3389
    %v3392 = vrsqrt.pop %v3390
    %v3393 = vmul.f32 %v3377, %v3391
    %v3394 = vmul.f32 %v3378, %v3392
    %v3395 = vlaneseq
    %v3396 = vshrl.u32 %v3395, 7
    %v3397 = vsub.s32 0, %v3396
    %v3398 = vrot.slane %v3367, %v3397
    %v3399 = vmul.f32 %v3393, %v3398
    %v3400 = vmul.f32 %v3394, %v3398
    %v3401 = vlaneseq
    %v3402 = vshrl.u32 %v3401, 7
    %v3403 = vsub.s32 0, %v3402
    %v3404 = vrot.slane %v3368, %v3403
    %v3405 = vadd.f32 %v3399, %v3404
    %v3406 = vadd.f32 %v3400, %v3404
    %v3408 = vrot.slane %v3406, 7
    %vm3410 = vcmask 1040384
    %v3411 = vsel %vm3410, %v3405, %v3408
    %v3412 = vld [vmem:[#allocation2 + $0x120] sm:$0xf]
    %v3413 = vld [vmem:[#allocation2 + $0x124] sm:$0xf]
    %v3414 = vld [vmem:[#allocation2 + $0x128] sm:$0xf]
    %v3415 = vld [vmem:[#allocation2 + $0x12c] sm:$0xf]
    %v3416 = vld [vmem:[#allocation2 + $0x130] sm:$0xf]
    %v3417 = vld [vmem:[#allocation2 + $0x134] sm:$0xf]
    %v3418 = vld [vmem:[#allocation2 + $0x138] sm:$0xf]
    %v3419 = vld [vmem:[#allocation2 + $0x13c] sm:$0xf]
    %v3420 = vpack.c.bf16 %v3411, %v3411
    %v3421 = vld [vmem:[#allocation5 + $0x32] sm:$0x1]
    %v3422 = vlaneseq
    %v3423 = vshrl.u32 %v3422, 7
    %v3424 = vsub.s32 0, %v3423
    %v3425 = vrot.slane %v3421, %v3424
    %v3430 = vunpack.c.l.b16 %v3412
    %v3431 = vunpack.c.l.b16 %v3413
    %v3432 = vunpack.c.l.b16 %v3414
    %v3433 = vunpack.c.l.b16 %v3415
    %v3434 = vpack.c.b16 %v3431, %v3430
    %v3435 = vpack.c.b16 %v3433, %v3432
    %v3439 = vsel %vm172, %v3420, 0
    %3441 = vmatprep.subr.bf16.mxu0 0
    %3442 = vmatpush1.bf16.msra.mxu0 %v3434
    %3443 = vmatprep.subr.bf16.mxu0 0
    %3444 = vmatpush1.bf16.msra.mxu0 %v3435
    %3445 = vmatprep.subr.bf16.mxu0 0
    %3446 = vmatpush1.bf16.msra.mxu0 0
    %3447 = vmatprep.subr.bf16.mxu0 0
    %3448 = vmatpush1.bf16.msra.mxu0 0
    %3449 = vmatprep.subr.bf16.mxu0 0
    %3450 = vmatpush1.bf16.msra.mxu0 0
    %3451 = vmatprep.subr.bf16.mxu0 0
    %3452 = vmatpush1.bf16.msra.mxu0 0
    %3453 = vmatprep.subr.bf16.mxu0 0
    %3454 = vmatpush1.bf16.msra.mxu0 0
    %3455 = vmatprep.subr.bf16.mxu0 0
    %3456 = vmatpush1.bf16.msra.mxu0 0
    %3457 = vmatprep.subr.bf16.mxu0 0
    %3458 = vmatpush1.bf16.msra.mxu0 0
    %3459 = vmatprep.subr.bf16.mxu0 0
    %3460 = vmatpush1.bf16.msra.mxu0 0
    %3461 = vmatprep.subr.bf16.mxu0 0
    %3462 = vmatpush1.bf16.msra.mxu0 0
    %3463 = vmatprep.subr.bf16.mxu0 0
    %3464 = vmatpush1.bf16.msra.mxu0 0
    %3465 = vmatprep.subr.bf16.mxu0 0
    %3466 = vmatpush1.bf16.msra.mxu0 0
    %3467 = vmatprep.subr.bf16.mxu0 0
    %3468 = vmatpush1.bf16.msra.mxu0 0
    %3469 = vmatprep.subr.bf16.mxu0 0
    %3470 = vmatpush1.bf16.msra.mxu0 0
    %3471 = vmatprep.subr.bf16.mxu0 0
    %3472 = vmatpush1.bf16.msra.mxu0 0
    %3473 = vmatprep.mubr.bf16.mxu0 0
    %3474 = vmatmul.mubr.bf16.gmra.mrb[0].mxu0 %v3439
    %v3475 = vpop.f32.mrb[0].mxu0
    %v3476 = vadd.f32 %v3425, %v3475
    %v3477 = vpop.f32.mrb[0].mxu0
    %v3478 = vpop.f32.mrb[0].mxu0
    %v3479 = vpop.f32.mrb[0].mxu0
    %3480 = vdwg.mxu0
    %v3481 = vtanh.pop %v3476
    %v3482 = vpack.c.bf16 %v3481, %v3481
    %v3483 = vld [vmem:[#allocation5 + $0x33] sm:$0x1]
    %v3484 = vlaneseq
    %v3485 = vshrl.u32 %v3484, 7
    %v3486 = vsub.s32 0, %v3485
    %v3487 = vrot.slane %v3483, %v3486
    %v3492 = vunpack.c.l.b16 %v3416
    %v3493 = vunpack.c.l.b16 %v3417
    %v3494 = vunpack.c.l.b16 %v3418
    %v3495 = vunpack.c.l.b16 %v3419
    %v3496 = vpack.c.b16 %v3493, %v3492
    %v3497 = vpack.c.b16 %v3495, %v3494
    %v3501 = vsel %vm172, %v3482, 0
    %3503 = vmatprep.subr.bf16.mxu0 0
    %3504 = vmatpush1.bf16.msra.mxu0 %v3496
    %3505 = vmatprep.subr.bf16.mxu0 0
    %3506 = vmatpush1.bf16.msra.mxu0 %v3497
    %3507 = vmatprep.subr.bf16.mxu0 0
    %3508 = vmatpush1.bf16.msra.mxu0 0
    %3509 = vmatprep.subr.bf16.mxu0 0
    %3510 = vmatpush1.bf16.msra.mxu0 0
    %3511 = vmatprep.subr.bf16.mxu0 0
    %3512 = vmatpush1.bf16.msra.mxu0 0
    %3513 = vmatprep.subr.bf16.mxu0 0
    %3514 = vmatpush1.bf16.msra.mxu0 0
    %3515 = vmatprep.subr.bf16.mxu0 0
    %3516 = vmatpush1.bf16.msra.mxu0 0
    %3517 = vmatprep.subr.bf16.mxu0 0
    %3518 = vmatpush1.bf16.msra.mxu0 0
    %3519 = vmatprep.subr.bf16.mxu0 0
    %3520 = vmatpush1.bf16.msra.mxu0 0
    %3521 = vmatprep.subr.bf16.mxu0 0
    %3522 = vmatpush1.bf16.msra.mxu0 0
    %3523 = vmatprep.subr.bf16.mxu0 0
    %3524 = vmatpush1.bf16.msra.mxu0 0
    %3525 = vmatprep.subr.bf16.mxu0 0
    %3526 = vmatpush1.bf16.msra.mxu0 0
    %3527 = vmatprep.subr.bf16.mxu0 0
    %3528 = vmatpush1.bf16.msra.mxu0 0
    %3529 = vmatprep.subr.bf16.mxu0 0
    %3530 = vmatpush1.bf16.msra.mxu0 0
    %3531 = vmatprep.subr.bf16.mxu0 0
    %3532 = vmatpush1.bf16.msra.mxu0 0
    %3533 = vmatprep.subr.bf16.mxu0 0
    %3534 = vmatpush1.bf16.msra.mxu0 0
    %3535 = vmatprep.mubr.bf16.mxu0 0
    %3536 = vmatmul.mubr.bf16.gmra.mrb[0].mxu0 %v3501
    %v3537 = vpop.f32.mrb[0].mxu0
    %v3538 = vadd.f32 %v3487, %v3537
    %v3539 = vpop.f32.mrb[0].mxu0
    %v3540 = vpop.f32.mrb[0].mxu0
    %v3541 = vpop.f32.mrb[0].mxu0
    %3542 = vdwg.mxu0
    %3543 = vst [vmem:[#allocation7] sm:$0x3] %v3538
    // Predicated region
    $region26: #{forward.1} parent=1 // pred_check
      _
    $region27: #{forward.1} parent=1 // pred_check_branch
      %3545 = sbr.rel (0) target = $region29
    $region28: #{forward.1} parent=1 // pred_region
      %s3547 = ssub.s32 32, 32
      %3548 = vsyncadd [#allocation4], %s3547
      %s3550 = sshll.u32 [#allocation7], 4
      %s3551 = int_to_ptr.vmem [resolvable:$true] %s3550
      %3553 = dma.vmem_to_hbm [thread:$0]  %s3551, 32, %s4, [#allocation4]
    $region29: #{forward.1} parent=1 // pred_fallthru
      _
    // Predicated region
    $region30: #{forward.1} parent=1 // pred_check
      _
    $region31: #{forward.1} parent=1 // pred_check_branch
      %3555 = sbr.rel (0) target = $region33
    $region32: #{forward.1} parent=1 // pred_region
      %3556 = dma.done [#allocation4], 32
    $region33: #{forward.1} parent=1 // pred_fallthru
      _
    %3557 = vsyncpa [#allocation3], 1
    %3558 = vsyncpa [#allocation6], 1
    %3559 = vsyncpa [#allocation4], 1

</llo_original>
